<compile_context>
chip_gen: v6e
topology: v6e:2x2x1
jax: 0.10.0
libtpu: 0.0.40
codegen_flags: <defaults>
</compile_context>

<pallas_src>
import numpy as np
import jax
import jax.numpy as jnp
from jax import lax
from jax.experimental import pallas as pl
from jax.experimental.pallas import tpu as pltpu

_EPS = 1e-3  # CharbonnierLoss eps


# ----------------------------- host-side constants ---------------------------

def _gauss_band(n):
    """Band matrix G with (G @ x) == 1D cross-correlation of x with
    k = [0.05, 0.25, 0.4, 0.25, 0.05] under replicate padding (pad=2)."""
    k = np.array([0.05, 0.25, 0.4, 0.25, 0.05], dtype=np.float64)
    g = np.zeros((n, n), dtype=np.float64)
    for i in range(n):
        for t in range(5):
            j = min(max(i + t - 2, 0), n - 1)
            g[i, j] += k[t]
    return g


def _build_consts(h, w):
    wh = w // 2 + 1
    # DFT matrices: half spectrum along W, full (symmetric) along H.
    ww = np.arange(w, dtype=np.float64)
    vv = np.arange(wh, dtype=np.float64)
    ang_w = 2.0 * np.pi * np.outer(ww, vv) / w            # (W, Wh)
    hh = np.arange(h, dtype=np.float64)
    ang_h = 2.0 * np.pi * np.outer(hh, hh) / h            # (H, H), symmetric
    cwh, swh = np.cos(ang_w), np.sin(ang_w)
    cht, sht = np.cos(ang_h), np.sin(ang_h)
    # Edge operators with the x4 even-pixel mask folded in:
    #   lap(d) = d - (G_H diag(m_h) G_H) d (G_W^T diag(m_w) G_W^T)
    gh, gw = _gauss_band(h), _gauss_band(w)
    mh = np.where(np.arange(h) % 2 == 0, 2.0, 0.0)
    mw = np.where(np.arange(w) % 2 == 0, 2.0, 0.0)
    lh = gh @ np.diag(mh) @ gh                            # (H, H) left operator
    rw = gw.T @ np.diag(mw) @ gw.T                        # (W, W) right operator
    f32 = np.float32
    return (cwh.astype(f32), swh.astype(f32), cht.astype(f32), sht.astype(f32),
            lh.T.astype(f32),                             # kernel right-multiplies by LH^T
            rw.astype(f32))


# --------------------------------- kernel ------------------------------------

def _mix2_kernel(pred_ref, targ_ref, cwh_ref, swh_ref, cht_ref, sht_ref,
                 lht_ref, rw_ref, charb_ref, fft_ref, edge_ref):
    nt, h, w = pred_ref.shape
    wh = cwh_ref.shape[1]
    f32 = jnp.float32

    def mm(a, b):                       # big 2-D MXU matmul
        return jnp.dot(a, b, preferred_element_type=f32)

    def sum11(x):                       # (M, N) -> (1, 1)
        return jnp.sum(jnp.sum(x, axis=-1, keepdims=True), axis=-2, keepdims=True)

    def t_img(x, rows, cols):           # per-image transpose: (nt*rows, cols) -> (nt*cols, rows)
        return jnp.swapaxes(x.reshape(nt, rows, cols), 1, 2).reshape(nt * cols, rows)

    d = pred_ref[...] - targ_ref[...]                      # (nt, H, W) f32
    d2 = d.reshape(nt * h, w)

    # ---- Charbonnier: sum sqrt(d^2 + eps^2) ---------------------------------
    charb_p = sum11(jnp.sqrt(d2 * d2 + _EPS * _EPS))

    # ---- FFT L1 (exact DFT via MXU matmuls, Hermitian-halved along W) -------
    a = mm(d2, cwh_ref[...])                               # (nt*H, Wh)  sum_w d*cos
    b = mm(d2, swh_ref[...])                               # (nt*H, Wh)  sum_w d*sin
    at = t_img(a, h, wh)                                   # (nt*Wh, H)
    bt = t_img(b, h, wh)                                   # (nt*Wh, H)
    real_t = mm(at, cht_ref[...]) - mm(bt, sht_ref[...])   # (nt*Wh, H) =  Re fft2(d)
    imag_t = mm(at, sht_ref[...]) + mm(bt, cht_ref[...])   # (nt*Wh, H) = -Im fft2(d)
    # column weights: self-conjugate frequency columns count once, others twice
    vi = lax.broadcasted_iota(jnp.int32, (nt * wh, 1), 0) % wh
    if w % 2 == 0:
        self_conj = (vi == 0) | (vi == w // 2)
    else:
        self_conj = vi == 0
    wgt = jnp.where(self_conj, 1.0, 2.0).astype(f32)
    fft_p = sum11(wgt * (jnp.abs(real_t) + jnp.abs(imag_t)))

    # ---- Edge (Laplacian-of-Gaussian) L1:  lap = d - LH @ d @ RW ------------
    e1 = mm(d2, rw_ref[...])                               # (nt*H, W)   d @ RW
    e2 = mm(t_img(e1, h, w), lht_ref[...])                 # (nt*W, H)   LH d RW (n,w,h layout)
    lap = d2 - t_img(e2, w, h)                             # back to (n,h,w)
    edge_p = sum11(jnp.abs(lap))

    charb_ref[...] = jnp.broadcast_to(charb_p, (1, 8, 128))
    fft_ref[...] = jnp.broadcast_to(fft_p, (1, 8, 128))
    edge_ref[...] = jnp.broadcast_to(edge_p, (1, 8, 128))


# --------------------------------- wrapper -----------------------------------

def _pick_tile(n_imgs, h, w, const_bytes, budget_bytes=12 * 1024 * 1024):
    """Largest divisor of n_imgs whose estimated per-step VMEM fits the budget."""
    per_img = 12 * h * w * 4            # rough live f32 bytes per image per step
    avail = max(per_img, budget_bytes - const_bytes)
    cap = max(1, avail // per_img)
    nt = 1
    for t in range(1, n_imgs + 1):
        if n_imgs % t == 0 and t <= cap:
            nt = t
    return nt


def mix2_loss(pred, target, fft_weight=0.01, edge_weight=0.05):
    b, c, h, w = pred.shape
    bc = b * c
    pred_r = pred.astype(jnp.float32).reshape(bc, h, w)
    targ_r = target.astype(jnp.float32).reshape(bc, h, w)

    cwh, swh, cht, sht, lht, rw = _build_consts(h, w)
    wh = cwh.shape[1]
    const_bytes = 4 * (cwh.size + swh.size + cht.size + sht.size + lht.size + rw.size)

    nt = _pick_tile(bc, h, w, const_bytes)
    nb = bc // nt

    img_spec = pl.BlockSpec((nt, h, w), lambda i: (i, 0, 0))

    def const_spec(m):
        return pl.BlockSpec(m.shape, lambda i: (0, 0))

    part_shape = jax.ShapeDtypeStruct((nb, 8, 128), jnp.float32)
    part_spec = pl.BlockSpec((1, 8, 128), lambda i: (i, 0, 0))

    flops_per_img = (4 * h * w * wh              # stage-1 DFT matmuls
                     + 8 * wh * h * h            # stage-2 DFT matmuls
                     + 2 * h * w * w + 2 * w * h * h   # edge matmuls
                     + 16 * h * w)               # elementwise / abs / sums
    cost = pl.CostEstimate(
        flops=int(bc * flops_per_img),
        transcendentals=int(bc * h * w),
        bytes_accessed=int(2 * bc * h * w * 4 + const_bytes + 3 * nb * 8 * 128 * 4),
    )

    charb_part, fft_part, edge_part = pl.pallas_call(
        _mix2_kernel,
        grid=(nb,),
        in_specs=[img_spec, img_spec,
                  const_spec(cwh), const_spec(swh), const_spec(cht),
                  const_spec(sht), const_spec(lht), const_spec(rw)],
        out_specs=(part_spec, part_spec, part_spec),
        out_shape=(part_shape, part_shape, part_shape),
        compiler_params=pltpu.CompilerParams(
            dimension_semantics=("parallel",),
            vmem_limit_bytes=32 * 1024 * 1024),
        cost_estimate=cost,
    )(pred_r, targ_r,
      jnp.asarray(cwh), jnp.asarray(swh), jnp.asarray(cht), jnp.asarray(sht),
      jnp.asarray(lht), jnp.asarray(rw))

    n = bc * h * w
    charb = jnp.sum(charb_part[:, 0, 0]) / n
    fftl = fft_weight * jnp.sum(fft_part[:, 0, 0]) / (n * 2)
    edge = edge_weight * jnp.sum(edge_part[:, 0, 0]) / n
    return charb + fftl + edge


# ------------------------- pure-JAX reference (for check) --------------------

def _reference_loss(pred, target, fft_weight=0.01, edge_weight=0.05):
    d = pred - target
    charb = jnp.mean(jnp.sqrt(d * d + _EPS * _EPS))

    pf = jnp.fft.fft2(pred, axes=(-2, -1))
    tf = jnp.fft.fft2(target, axes=(-2, -1))
    fft_l1 = jnp.mean(jnp.abs(jnp.stack([pf.real - tf.real, pf.imag - tf.imag], axis=-1)))

    k = jnp.array([0.05, 0.25, 0.4, 0.25, 0.05], dtype=jnp.float32)
    kern = jnp.outer(k, k).reshape(1, 1, 5, 5)

    def conv_gauss(img):
        bb, cc, hh, ww = img.shape
        x = jnp.pad(img, ((0, 0), (0, 0), (2, 2), (2, 2)), mode="edge")
        x = x.reshape(bb * cc, 1, hh + 4, ww + 4)
        y = lax.conv_general_dilated(x, kern, window_strides=(1, 1), padding="VALID",
                                     dimension_numbers=("NCHW", "OIHW", "NCHW"))
        return y.reshape(bb, cc, hh, ww)

    def laplacian(img):
        filt = conv_gauss(img)
        new = jnp.zeros_like(filt).at[:, :, ::2, ::2].set(filt[:, :, ::2, ::2] * 4.0)
        return img - conv_gauss(new)

    edge_l1 = jnp.mean(jnp.abs(laplacian(pred) - laplacian(target)))
    return charb + fft_weight * fft_l1 + edge_weight * edge_l1


if __name__ == "__main__":
    key = jax.random.PRNGKey(0)
    k1, k2 = jax.random.split(key)
    # EdgeLoss in the PyTorch module hard-codes 3 channels (groups=3 conv).
    pred = jax.random.normal(k1, (2, 3, 16, 16), dtype=jnp.float32)
    target = jax.random.normal(k2, (2, 3, 16, 16), dtype=jnp.float32)

    loss = mix2_loss(pred, target)
    jax.block_until_ready(loss)

    ref = _reference_loss(pred, target)
    np.testing.assert_allclose(np.asarray(loss), np.asarray(ref), rtol=5e-3, atol=5e-3)

    print("KERNEL_OK")
</pallas_src>

<mosaic_0001>
module attributes {stable_mosaic.version = 11 : i64} {
  func.func @_mix2_kernel(%arg0: i32, %arg1: memref<6x16x16xf32, #tpu.memory_space<vmem>>, %arg2: memref<6x16x16xf32, #tpu.memory_space<vmem>>, %arg3: memref<16x9xf32, #tpu.memory_space<vmem>>, %arg4: memref<16x9xf32, #tpu.memory_space<vmem>>, %arg5: memref<16x16xf32, #tpu.memory_space<vmem>>, %arg6: memref<16x16xf32, #tpu.memory_space<vmem>>, %arg7: memref<16x16xf32, #tpu.memory_space<vmem>>, %arg8: memref<16x16xf32, #tpu.memory_space<vmem>>, %arg9: memref<1x8x128xf32, #tpu.memory_space<vmem>>, %arg10: memref<1x8x128xf32, #tpu.memory_space<vmem>>, %arg11: memref<1x8x128xf32, #tpu.memory_space<vmem>>) attributes {dimension_semantics = [#tpu.dimension_semantics<parallel>], iteration_bounds = array<i64: 1>, scalar_prefetch = 0 : i64, scratch_operands = 0 : i64, tpu.core_type = #tpu.core_type<tc>, window_params = [{transform_indices = @transform_0, window_bounds = array<i64: 6, 16, 16>}, {transform_indices = @transform_1, window_bounds = array<i64: 6, 16, 16>}, {pipeline_mode = #tpu.pipeline_mode<synchronous>, transform_indices = @transform_2, window_bounds = array<i64: 16, 9>}, {pipeline_mode = #tpu.pipeline_mode<synchronous>, transform_indices = @transform_3, window_bounds = array<i64: 16, 9>}, {pipeline_mode = #tpu.pipeline_mode<synchronous>, transform_indices = @transform_4, window_bounds = array<i64: 16, 16>}, {pipeline_mode = #tpu.pipeline_mode<synchronous>, transform_indices = @transform_5, window_bounds = array<i64: 16, 16>}, {pipeline_mode = #tpu.pipeline_mode<synchronous>, transform_indices = @transform_6, window_bounds = array<i64: 16, 16>}, {pipeline_mode = #tpu.pipeline_mode<synchronous>, transform_indices = @transform_7, window_bounds = array<i64: 16, 16>}, {transform_indices = @transform_8, window_bounds = array<i64: 1, 8, 128>}, {transform_indices = @transform_9, window_bounds = array<i64: 1, 8, 128>}, {transform_indices = @transform_10, window_bounds = array<i64: 1, 8, 128>}]} {
    %c0 = arith.constant 0 : index
    %c0_0 = arith.constant 0 : index
    %c0_1 = arith.constant 0 : index
    %0 = vector.load %arg1[%c0, %c0_0, %c0_1] : memref<6x16x16xf32, #tpu.memory_space<vmem>>, vector<6x16x16xf32>
    %c0_2 = arith.constant 0 : index
    %c0_3 = arith.constant 0 : index
    %c0_4 = arith.constant 0 : index
    %1 = vector.load %arg2[%c0_2, %c0_3, %c0_4] : memref<6x16x16xf32, #tpu.memory_space<vmem>>, vector<6x16x16xf32>
    %2 = arith.subf %0, %1 : vector<6x16x16xf32>
    %3 = vector.shape_cast %2 : vector<6x16x16xf32> to vector<96x16xf32>
    %4 = arith.mulf %3, %3 : vector<96x16xf32>
    %cst = arith.constant 9.99999997E-7 : f32
    %5 = vector.broadcast %cst : f32 to vector<96x16xf32>
    %6 = arith.addf %4, %5 : vector<96x16xf32>
    %7 = math.sqrt %6 : vector<96x16xf32>
    %cst_5 = arith.constant dense<0.000000e+00> : vector<96xf32>
    %8 = vector.multi_reduction <add>, %7, %cst_5 [1] : vector<96x16xf32> to vector<96xf32>
    %9 = vector.shape_cast %8 : vector<96xf32> to vector<96x1xf32>
    %cst_6 = arith.constant dense<0.000000e+00> : vector<1xf32>
    %10 = vector.multi_reduction <add>, %9, %cst_6 [0] : vector<96x1xf32> to vector<1xf32>
    %11 = vector.shape_cast %10 : vector<1xf32> to vector<1x1xf32>
    %c0_7 = arith.constant 0 : index
    %c0_8 = arith.constant 0 : index
    %12 = vector.load %arg3[%c0_7, %c0_8] : memref<16x9xf32, #tpu.memory_space<vmem>>, vector<16x9xf32>
    %cst_9 = arith.constant dense<0.000000e+00> : vector<96x9xf32>
    %13 = tpu.matmul %3, %12, %cst_9 {dimension_numbers = #tpu.dot_dimension_numbers<[1], [0], [0], [1], [0, 0, 1, 1], [], []>} : vector<96x16xf32>, vector<16x9xf32>, vector<96x9xf32> -> vector<96x9xf32>
    %c0_10 = arith.constant 0 : index
    %c0_11 = arith.constant 0 : index
    %14 = vector.load %arg4[%c0_10, %c0_11] : memref<16x9xf32, #tpu.memory_space<vmem>>, vector<16x9xf32>
    %cst_12 = arith.constant dense<0.000000e+00> : vector<96x9xf32>
    %15 = tpu.matmul %3, %14, %cst_12 {dimension_numbers = #tpu.dot_dimension_numbers<[1], [0], [0], [1], [0, 0, 1, 1], [], []>} : vector<96x16xf32>, vector<16x9xf32>, vector<96x9xf32> -> vector<96x9xf32>
    %16 = vector.shape_cast %13 : vector<96x9xf32> to vector<6x16x9xf32>
    %17 = tpu.transpose %16, [0, 2, 1] : vector<6x16x9xf32> -> vector<6x9x16xf32>
    %18 = vector.shape_cast %17 : vector<6x9x16xf32> to vector<54x16xf32>
    %19 = vector.shape_cast %15 : vector<96x9xf32> to vector<6x16x9xf32>
    %20 = tpu.transpose %19, [0, 2, 1] : vector<6x16x9xf32> -> vector<6x9x16xf32>
    %21 = vector.shape_cast %20 : vector<6x9x16xf32> to vector<54x16xf32>
    %c0_13 = arith.constant 0 : index
    %c0_14 = arith.constant 0 : index
    %22 = vector.load %arg5[%c0_13, %c0_14] : memref<16x16xf32, #tpu.memory_space<vmem>>, vector<16x16xf32>
    %cst_15 = arith.constant dense<0.000000e+00> : vector<54x16xf32>
    %23 = tpu.matmul %18, %22, %cst_15 {dimension_numbers = #tpu.dot_dimension_numbers<[1], [0], [0], [1], [0, 0, 1, 1], [], []>} : vector<54x16xf32>, vector<16x16xf32>, vector<54x16xf32> -> vector<54x16xf32>
    %c0_16 = arith.constant 0 : index
    %c0_17 = arith.constant 0 : index
    %24 = vector.load %arg6[%c0_16, %c0_17] : memref<16x16xf32, #tpu.memory_space<vmem>>, vector<16x16xf32>
    %cst_18 = arith.constant dense<0.000000e+00> : vector<54x16xf32>
    %25 = tpu.matmul %21, %24, %cst_18 {dimension_numbers = #tpu.dot_dimension_numbers<[1], [0], [0], [1], [0, 0, 1, 1], [], []>} : vector<54x16xf32>, vector<16x16xf32>, vector<54x16xf32> -> vector<54x16xf32>
    %26 = arith.subf %23, %25 : vector<54x16xf32>
    %c0_19 = arith.constant 0 : index
    %c0_20 = arith.constant 0 : index
    %27 = vector.load %arg6[%c0_19, %c0_20] : memref<16x16xf32, #tpu.memory_space<vmem>>, vector<16x16xf32>
    %cst_21 = arith.constant dense<0.000000e+00> : vector<54x16xf32>
    %28 = tpu.matmul %18, %27, %cst_21 {dimension_numbers = #tpu.dot_dimension_numbers<[1], [0], [0], [1], [0, 0, 1, 1], [], []>} : vector<54x16xf32>, vector<16x16xf32>, vector<54x16xf32> -> vector<54x16xf32>
    %c0_22 = arith.constant 0 : index
    %c0_23 = arith.constant 0 : index
    %29 = vector.load %arg5[%c0_22, %c0_23] : memref<16x16xf32, #tpu.memory_space<vmem>>, vector<16x16xf32>
    %cst_24 = arith.constant dense<0.000000e+00> : vector<54x16xf32>
    %30 = tpu.matmul %21, %29, %cst_24 {dimension_numbers = #tpu.dot_dimension_numbers<[1], [0], [0], [1], [0, 0, 1, 1], [], []>} : vector<54x16xf32>, vector<16x16xf32>, vector<54x16xf32> -> vector<54x16xf32>
    %31 = arith.addf %28, %30 : vector<54x16xf32>
    %32 = tpu.iota {dimensions = array<i32: 0>} : vector<54x1xi32>
    %c9_i32 = arith.constant 9 : i32
    %c0_i32 = arith.constant 0 : i32
    %33 = arith.cmpi eq, %c9_i32, %c0_i32 : i32
    %c1_i32 = arith.constant 1 : i32
    %34 = arith.select %33, %c1_i32, %c9_i32 : i32
    %35 = vector.broadcast %34 : i32 to vector<54x1xi32>
    %36 = arith.remsi %32, %35 : vector<54x1xi32>
    %c0_i32_25 = arith.constant 0 : i32
    %37 = vector.broadcast %c0_i32_25 : i32 to vector<54x1xi32>
    %38 = arith.cmpi ne, %36, %37 : vector<54x1xi32>
    %c0_i32_26 = arith.constant 0 : i32
    %39 = vector.broadcast %c0_i32_26 : i32 to vector<54x1xi32>
    %40 = arith.cmpi slt, %36, %39 : vector<54x1xi32>
    %c0_i32_27 = arith.constant 0 : i32
    %41 = arith.cmpi slt, %34, %c0_i32_27 : i32
    %42 = vector.broadcast %41 : i1 to vector<54x1xi1>
    %43 = vector.broadcast %42 : vector<54x1xi1> to vector<54x1xi1>
    %44 = arith.xori %40, %43 : vector<54x1xi1>
    %45 = arith.andi %44, %38 : vector<54x1xi1>
    %46 = vector.broadcast %34 : i32 to vector<54x1xi32>
    %47 = arith.addi %36, %46 : vector<54x1xi32>
    %48 = arith.select %45, %47, %36 : vector<54x1xi1>, vector<54x1xi32>
    %c0_i32_28 = arith.constant 0 : i32
    %49 = vector.broadcast %c0_i32_28 : i32 to vector<54x1xi32>
    %50 = arith.cmpi eq, %48, %49 : vector<54x1xi32>
    %c8_i32 = arith.constant 8 : i32
    %51 = vector.broadcast %c8_i32 : i32 to vector<54x1xi32>
    %52 = arith.cmpi eq, %48, %51 : vector<54x1xi32>
    %53 = arith.ori %50, %52 : vector<54x1xi1>
    %cst_29 = arith.constant 1.000000e+00 : f32
    %cst_30 = arith.constant 2.000000e+00 : f32
    %54 = vector.broadcast %cst_29 : f32 to vector<54x1xf32>
    %55 = vector.broadcast %cst_30 : f32 to vector<54x1xf32>
    %56 = arith.select %53, %54, %55 : vector<54x1xi1>, vector<54x1xf32>
    %57 = math.absf %26 : vector<54x16xf32>
    %58 = math.absf %31 : vector<54x16xf32>
    %59 = arith.addf %57, %58 : vector<54x16xf32>
    %60 = vector.broadcast %56 : vector<54x1xf32> to vector<54x16xf32>
    %61 = arith.mulf %60, %59 : vector<54x16xf32>
    %cst_31 = arith.constant dense<0.000000e+00> : vector<54xf32>
    %62 = vector.multi_reduction <add>, %61, %cst_31 [1] : vector<54x16xf32> to vector<54xf32>
    %63 = vector.shape_cast %62 : vector<54xf32> to vector<54x1xf32>
    %cst_32 = arith.constant dense<0.000000e+00> : vector<1xf32>
    %64 = vector.multi_reduction <add>, %63, %cst_32 [0] : vector<54x1xf32> to vector<1xf32>
    %65 = vector.shape_cast %64 : vector<1xf32> to vector<1x1xf32>
    %c0_33 = arith.constant 0 : index
    %c0_34 = arith.constant 0 : index
    %66 = vector.load %arg8[%c0_33, %c0_34] : memref<16x16xf32, #tpu.memory_space<vmem>>, vector<16x16xf32>
    %cst_35 = arith.constant dense<0.000000e+00> : vector<96x16xf32>
    %67 = tpu.matmul %3, %66, %cst_35 {dimension_numbers = #tpu.dot_dimension_numbers<[1], [0], [0], [1], [0, 0, 1, 1], [], []>} : vector<96x16xf32>, vector<16x16xf32>, vector<96x16xf32> -> vector<96x16xf32>
    %68 = vector.shape_cast %67 : vector<96x16xf32> to vector<6x16x16xf32>
    %69 = tpu.transpose %68, [0, 2, 1] : vector<6x16x16xf32> -> vector<6x16x16xf32>
    %70 = vector.shape_cast %69 : vector<6x16x16xf32> to vector<96x16xf32>
    %c0_36 = arith.constant 0 : index
    %c0_37 = arith.constant 0 : index
    %71 = vector.load %arg7[%c0_36, %c0_37] : memref<16x16xf32, #tpu.memory_space<vmem>>, vector<16x16xf32>
    %cst_38 = arith.constant dense<0.000000e+00> : vector<96x16xf32>
    %72 = tpu.matmul %70, %71, %cst_38 {dimension_numbers = #tpu.dot_dimension_numbers<[1], [0], [0], [1], [0, 0, 1, 1], [], []>} : vector<96x16xf32>, vector<16x16xf32>, vector<96x16xf32> -> vector<96x16xf32>
    %73 = vector.shape_cast %72 : vector<96x16xf32> to vector<6x16x16xf32>
    %74 = tpu.transpose %73, [0, 2, 1] : vector<6x16x16xf32> -> vector<6x16x16xf32>
    %75 = vector.shape_cast %74 : vector<6x16x16xf32> to vector<96x16xf32>
    %76 = arith.subf %3, %75 : vector<96x16xf32>
    %77 = math.absf %76 : vector<96x16xf32>
    %cst_39 = arith.constant dense<0.000000e+00> : vector<96xf32>
    %78 = vector.multi_reduction <add>, %77, %cst_39 [1] : vector<96x16xf32> to vector<96xf32>
    %79 = vector.shape_cast %78 : vector<96xf32> to vector<96x1xf32>
    %cst_40 = arith.constant dense<0.000000e+00> : vector<1xf32>
    %80 = vector.multi_reduction <add>, %79, %cst_40 [0] : vector<96x1xf32> to vector<1xf32>
    %81 = vector.shape_cast %80 : vector<1xf32> to vector<1x1xf32>
    %82 = vector.shape_cast %11 : vector<1x1xf32> to vector<1x1x1xf32>
    %83 = vector.broadcast %82 : vector<1x1x1xf32> to vector<1x8x128xf32>
    %c0_41 = arith.constant 0 : index
    %c0_42 = arith.constant 0 : index
    %c0_43 = arith.constant 0 : index
    %84 = vector.load %arg9[%c0_41, %c0_42, %c0_43] : memref<1x8x128xf32, #tpu.memory_space<vmem>>, vector<1x8x128xf32>
    tpu.vector_store %arg9[%c0_41, %c0_42, %c0_43], %83 {strides = array<i32>} : memref<1x8x128xf32, #tpu.memory_space<vmem>>, vector<1x8x128xf32>,
    %85 = vector.shape_cast %65 : vector<1x1xf32> to vector<1x1x1xf32>
    %86 = vector.broadcast %85 : vector<1x1x1xf32> to vector<1x8x128xf32>
    %c0_44 = arith.constant 0 : index
    %c0_45 = arith.constant 0 : index
    %c0_46 = arith.constant 0 : index
    %87 = vector.load %arg10[%c0_44, %c0_45, %c0_46] : memref<1x8x128xf32, #tpu.memory_space<vmem>>, vector<1x8x128xf32>
    tpu.vector_store %arg10[%c0_44, %c0_45, %c0_46], %86 {strides = array<i32>} : memref<1x8x128xf32, #tpu.memory_space<vmem>>, vector<1x8x128xf32>,
    %88 = vector.shape_cast %81 : vector<1x1xf32> to vector<1x1x1xf32>
    %89 = vector.broadcast %88 : vector<1x1x1xf32> to vector<1x8x128xf32>
    %c0_47 = arith.constant 0 : index
    %c0_48 = arith.constant 0 : index
    %c0_49 = arith.constant 0 : index
    %90 = vector.load %arg11[%c0_47, %c0_48, %c0_49] : memref<1x8x128xf32, #tpu.memory_space<vmem>>, vector<1x8x128xf32>
    tpu.vector_store %arg11[%c0_47, %c0_48, %c0_49], %89 {strides = array<i32>} : memref<1x8x128xf32, #tpu.memory_space<vmem>>, vector<1x8x128xf32>,
    return
  }
  func.func @transform_0(%arg0: i32) -> (i32, i32, i32) {
    %c0_i32 = arith.constant 0 : i32
    %c0_i32_0 = arith.constant 0 : i32
    %c0_i32_1 = arith.constant 0 : i32
    return %arg0, %c0_i32, %c0_i32_0 : i32, i32, i32
  }
  func.func @transform_1(%arg0: i32) -> (i32, i32, i32) {
    %c0_i32 = arith.constant 0 : i32
    %c0_i32_0 = arith.constant 0 : i32
    %c0_i32_1 = arith.constant 0 : i32
    return %arg0, %c0_i32, %c0_i32_0 : i32, i32, i32
  }
  func.func @transform_2(%arg0: i32) -> (i32, i32) {
    %c0_i32 = arith.constant 0 : i32
    %c0_i32_0 = arith.constant 0 : i32
    %c0_i32_1 = arith.constant 0 : i32
    return %c0_i32, %c0_i32_0 : i32, i32
  }
  func.func @transform_3(%arg0: i32) -> (i32, i32) {
    %c0_i32 = arith.constant 0 : i32
    %c0_i32_0 = arith.constant 0 : i32
    %c0_i32_1 = arith.constant 0 : i32
    return %c0_i32, %c0_i32_0 : i32, i32
  }
  func.func @transform_4(%arg0: i32) -> (i32, i32) {
    %c0_i32 = arith.constant 0 : i32
    %c0_i32_0 = arith.constant 0 : i32
    %c0_i32_1 = arith.constant 0 : i32
    return %c0_i32, %c0_i32_0 : i32, i32
  }
  func.func @transform_5(%arg0: i32) -> (i32, i32) {
    %c0_i32 = arith.constant 0 : i32
    %c0_i32_0 = arith.constant 0 : i32
    %c0_i32_1 = arith.constant 0 : i32
    return %c0_i32, %c0_i32_0 : i32, i32
  }
  func.func @transform_6(%arg0: i32) -> (i32, i32) {
    %c0_i32 = arith.constant 0 : i32
    %c0_i32_0 = arith.constant 0 : i32
    %c0_i32_1 = arith.constant 0 : i32
    return %c0_i32, %c0_i32_0 : i32, i32
  }
  func.func @transform_7(%arg0: i32) -> (i32, i32) {
    %c0_i32 = arith.constant 0 : i32
    %c0_i32_0 = arith.constant 0 : i32
    %c0_i32_1 = arith.constant 0 : i32
    return %c0_i32, %c0_i32_0 : i32, i32
  }
  func.func @transform_8(%arg0: i32) -> (i32, i32, i32) {
    %c0_i32 = arith.constant 0 : i32
    %c0_i32_0 = arith.constant 0 : i32
    %c0_i32_1 = arith.constant 0 : i32
    return %arg0, %c0_i32, %c0_i32_0 : i32, i32, i32
  }
  func.func @transform_9(%arg0: i32) -> (i32, i32, i32) {
    %c0_i32 = arith.constant 0 : i32
    %c0_i32_0 = arith.constant 0 : i32
    %c0_i32_1 = arith.constant 0 : i32
    return %arg0, %c0_i32, %c0_i32_0 : i32, i32, i32
  }
  func.func @transform_10(%arg0: i32) -> (i32, i32, i32) {
    %c0_i32 = arith.constant 0 : i32
    %c0_i32_0 = arith.constant 0 : i32
    %c0_i32_1 = arith.constant 0 : i32
    return %arg0, %c0_i32, %c0_i32_0 : i32, i32, i32
  }
}

</mosaic_0001>

<llo_original>
// kernel: tpu_custom_call.1
$region0: #{tpu_custom_call.1}
  #allocation0 [shape = 'u32[]', space=smem, size = 0x4, offset = 0x4, fixed_abs, tag = 'smem constant byte address 0x4 - core index']
  #allocation1 [shape = 'u32[144,128]{1,0:T(1,128)}', space=vmem, size = 0x12000, scoped, tag = 'internal scratch']
  %s0 = inlined_call_operand.hbm [shape: f32[6,16,16], index: 0, kind: input, shape index: {}]
  %s1 = inlined_call_operand.hbm [shape: f32[6,16,16], index: 1, kind: input, shape index: {}]
  %s2 = inlined_call_operand.hbm [shape: f32[16,9], index: 2, kind: input, shape index: {}]
  %s3 = inlined_call_operand.hbm [shape: f32[16,9], index: 3, kind: input, shape index: {}]
  %s4 = inlined_call_operand.hbm [shape: f32[16,16], index: 4, kind: input, shape index: {}]
  %s5 = inlined_call_operand.hbm [shape: f32[16,16], index: 5, kind: input, shape index: {}]
  %s6 = inlined_call_operand.hbm [shape: f32[16,16], index: 6, kind: input, shape index: {}]
  %s7 = inlined_call_operand.hbm [shape: f32[16,16], index: 7, kind: input, shape index: {}]
  %s8 = inlined_call_operand.hbm [shape: f32[1,8,128], index: 8, kind: output, shape index: {0}]
  %s9 = inlined_call_operand.hbm [shape: f32[1,8,128], index: 9, kind: output, shape index: {1}]
  %s10 = inlined_call_operand.hbm [shape: f32[1,8,128], index: 10, kind: output, shape index: {2}]
  %11 = xla_tuple %s8, %s9, %s10
  %s12 = sld [smem:[#allocation0]]
  $region90: #{tpu_custom_call.1} parent=0
    _
  %s14 = ssub.s32 1, %s12
  %s15 = scalar_select 0, %s14, %s12
  $region1: #{tpu_custom_call.1} parent=0
    #allocation2 [shape = 'u8[49152]{0}', space=vmem, size = 0xc000, scoped, tag = 'input window, operand 0, single buffered']
    #allocation3 [shape = 's32[1]{0}', space=sflag, size = 0x4, scoped, tag = 'scoped memory for tpu_custom_call.1']
    #allocation4 [shape = 's32[1]{0}', space=sflag, size = 0x4, scoped, tag = 'scoped memory for tpu_custom_call.1']
    #allocation5 [shape = 'u8[49152]{0}', space=vmem, size = 0xc000, scoped, tag = 'input window, operand 1, single buffered']
    #allocation6 [shape = 's32[1]{0}', space=sflag, size = 0x4, scoped, tag = 'scoped memory for tpu_custom_call.1']
    #allocation7 [shape = 'u8[8192]{0}', space=vmem, size = 0x2000, scoped, tag = 'input window, operand 2, single buffered']
    #allocation8 [shape = 'u8[8192]{0}', space=vmem, size = 0x2000, scoped, tag = 'input window, operand 3, single buffered']
    #allocation9 [shape = 's32[1]{0}', space=sflag, size = 0x4, scoped, tag = 'scoped memory for tpu_custom_call.1']
    #allocation10 [shape = 'u8[8192]{0}', space=vmem, size = 0x2000, scoped, tag = 'input window, operand 4, single buffered']
    #allocation11 [shape = 'u8[8192]{0}', space=vmem, size = 0x2000, scoped, tag = 'input window, operand 5, single buffered']
    #allocation12 [shape = 's32[1]{0}', space=sflag, size = 0x4, scoped, tag = 'scoped memory for tpu_custom_call.1']
    #allocation13 [shape = 'u8[8192]{0}', space=vmem, size = 0x2000, scoped, tag = 'input window, operand 6, single buffered']
    #allocation14 [shape = 'u8[8192]{0}', space=vmem, size = 0x2000, scoped, tag = 'input window, operand 7, single buffered']
    #allocation15 [shape = 's32[1]{0}', space=sflag, size = 0x4, scoped, tag = 'scoped memory for tpu_custom_call.1']
    #allocation16 [shape = 'u8[4096]{0}', space=vmem, size = 0x1000, scoped, tag = 'output window, operand 0, single buffered']
    #allocation17 [shape = 'u8[4096]{0}', space=vmem, size = 0x1000, scoped, tag = 'output window, operand 1, single buffered']
    #allocation18 [shape = 's32[1]{0}', space=sflag, size = 0x4, scoped, tag = 'scoped memory for tpu_custom_call.1']
    #allocation19 [shape = 'u8[4096]{0}', space=vmem, size = 0x1000, scoped, tag = 'output window, operand 2, single buffered']
    %16 = vsyncpa [#allocation3], 0
    %17 = vsyncpa [#allocation6], 0
    %18 = vsyncpa [#allocation9], 0
    %19 = vsyncpa [#allocation12], 0
    %20 = vsyncpa [#allocation15], 0
    %21 = vsyncpa [#allocation4], 0
    %22 = vsyncpa [#allocation18], 0
    // Predicated region
    $region2: #{tpu_custom_call.1} parent=1 // pred_check
      _
    $region3: #{tpu_custom_call.1} parent=1 // pred_check_branch
      %24 = sbr.rel (0) target = $region5
    $region4: #{tpu_custom_call.1} parent=1 // pred_region
      %s26 = ssub.s32 1536, 1536
      %27 = vsyncadd [#allocation3], %s26
      %s28 = sshll.u32 [#allocation2], 4
      %s29 = int_to_ptr.vmem [resolvable:$true] %s28
      %34 = dma.hbm_to_vmem [thread:$0]  %s0, 1536, %s29, [#allocation3], 128, 128, 8
    $region5: #{tpu_custom_call.1} parent=1 // pred_fallthru
      _
    // Predicated region
    $region6: #{tpu_custom_call.1} parent=1 // pred_check
      _
    $region7: #{tpu_custom_call.1} parent=1 // pred_check_branch
      %36 = sbr.rel (0) target = $region9
    $region8: #{tpu_custom_call.1} parent=1 // pred_region
      %s38 = ssub.s32 1536, 1536
      %39 = vsyncadd [#allocation6], %s38
      %s40 = sshll.u32 [#allocation5], 4
      %s41 = int_to_ptr.vmem [resolvable:$true] %s40
      %46 = dma.hbm_to_vmem [thread:$0]  %s1, 1536, %s41, [#allocation6], 128, 128, 8
    $region9: #{tpu_custom_call.1} parent=1 // pred_fallthru
      _
    // Predicated region
    $region10: #{tpu_custom_call.1} parent=1 // pred_check
      _
    $region11: #{tpu_custom_call.1} parent=1 // pred_check_branch
      %48 = sbr.rel (0) target = $region13
    $region12: #{tpu_custom_call.1} parent=1 // pred_region
      %s50 = ssub.s32 256, 256
      %51 = vsyncadd [#allocation6], %s50
      %s52 = sshll.u32 [#allocation7], 4
      %s53 = int_to_ptr.vmem [resolvable:$true] %s52
      %58 = dma.hbm_to_vmem [thread:$0]  %s2, 256, %s53, [#allocation6], 128, 128, 8
    $region13: #{tpu_custom_call.1} parent=1 // pred_fallthru
      _
    // Predicated region
    $region14: #{tpu_custom_call.1} parent=1 // pred_check
      _
    $region15: #{tpu_custom_call.1} parent=1 // pred_check_branch
      %60 = sbr.rel (0) target = $region17
    $region16: #{tpu_custom_call.1} parent=1 // pred_region
      %s62 = ssub.s32 256, 256
      %63 = vsyncadd [#allocation9], %s62
      %s64 = sshll.u32 [#allocation8], 4
      %s65 = int_to_ptr.vmem [resolvable:$true] %s64
      %70 = dma.hbm_to_vmem [thread:$0]  %s3, 256, %s65, [#allocation9], 128, 128, 8
    $region17: #{tpu_custom_call.1} parent=1 // pred_fallthru
      _
    // Predicated region
    $region18: #{tpu_custom_call.1} parent=1 // pred_check
      _
    $region19: #{tpu_custom_call.1} parent=1 // pred_check_branch
      %72 = sbr.rel (0) target = $region21
    $region20: #{tpu_custom_call.1} parent=1 // pred_region
      %s74 = ssub.s32 256, 256
      %75 = vsyncadd [#allocation9], %s74
      %s76 = sshll.u32 [#allocation10], 4
      %s77 = int_to_ptr.vmem [resolvable:$true] %s76
      %82 = dma.hbm_to_vmem [thread:$0]  %s4, 256, %s77, [#allocation9], 128, 128, 8
    $region21: #{tpu_custom_call.1} parent=1 // pred_fallthru
      _
    // Predicated region
    $region22: #{tpu_custom_call.1} parent=1 // pred_check
      _
    $region23: #{tpu_custom_call.1} parent=1 // pred_check_branch
      %84 = sbr.rel (0) target = $region25
    $region24: #{tpu_custom_call.1} parent=1 // pred_region
      %s86 = ssub.s32 256, 256
      %87 = vsyncadd [#allocation12], %s86
      %s88 = sshll.u32 [#allocation11], 4
      %s89 = int_to_ptr.vmem [resolvable:$true] %s88
      %94 = dma.hbm_to_vmem [thread:$0]  %s5, 256, %s89, [#allocation12], 128, 128, 8
    $region25: #{tpu_custom_call.1} parent=1 // pred_fallthru
      _
    // Predicated region
    $region26: #{tpu_custom_call.1} parent=1 // pred_check
      _
    $region27: #{tpu_custom_call.1} parent=1 // pred_check_branch
      %96 = sbr.rel (0) target = $region29
    $region28: #{tpu_custom_call.1} parent=1 // pred_region
      %s98 = ssub.s32 256, 256
      %99 = vsyncadd [#allocation12], %s98
      %s100 = sshll.u32 [#allocation13], 4
      %s101 = int_to_ptr.vmem [resolvable:$true] %s100
      %106 = dma.hbm_to_vmem [thread:$0]  %s6, 256, %s101, [#allocation12], 128, 128, 8
    $region29: #{tpu_custom_call.1} parent=1 // pred_fallthru
      _
    // Predicated region
    $region30: #{tpu_custom_call.1} parent=1 // pred_check
      _
    $region31: #{tpu_custom_call.1} parent=1 // pred_check_branch
      %108 = sbr.rel (0) target = $region33
    $region32: #{tpu_custom_call.1} parent=1 // pred_region
      %s110 = ssub.s32 256, 256
      %111 = vsyncadd [#allocation15], %s110
      %s112 = sshll.u32 [#allocation14], 4
      %s113 = int_to_ptr.vmem [resolvable:$true] %s112
      %118 = dma.hbm_to_vmem [thread:$0]  %s7, 256, %s113, [#allocation15], 128, 128, 8
    $region33: #{tpu_custom_call.1} parent=1 // pred_fallthru
      _
    // Predicated region
    $region34: #{tpu_custom_call.1} parent=1 // pred_check
      _
    $region35: #{tpu_custom_call.1} parent=1 // pred_check_branch
      %120 = sbr.rel (0) target = $region37
    $region36: #{tpu_custom_call.1} parent=1 // pred_region
      %121 = dma.done [#allocation3], 1536
    $region37: #{tpu_custom_call.1} parent=1 // pred_fallthru
      _
    // Predicated region
    $region38: #{tpu_custom_call.1} parent=1 // pred_check
      _
    $region39: #{tpu_custom_call.1} parent=1 // pred_check_branch
      %123 = sbr.rel (0) target = $region41
    $region40: #{tpu_custom_call.1} parent=1 // pred_region
      %124 = dma.done [#allocation6], 1536
    $region41: #{tpu_custom_call.1} parent=1 // pred_fallthru
      _
    // Predicated region
    $region42: #{tpu_custom_call.1} parent=1 // pred_check
      _
    $region43: #{tpu_custom_call.1} parent=1 // pred_check_branch
      %126 = sbr.rel (0) target = $region45
    $region44: #{tpu_custom_call.1} parent=1 // pred_region
      %127 = dma.done [#allocation6], 256
    $region45: #{tpu_custom_call.1} parent=1 // pred_fallthru
      _
    // Predicated region
    $region46: #{tpu_custom_call.1} parent=1 // pred_check
      _
    $region47: #{tpu_custom_call.1} parent=1 // pred_check_branch
      %129 = sbr.rel (0) target = $region49
    $region48: #{tpu_custom_call.1} parent=1 // pred_region
      %130 = dma.done [#allocation9], 256
    $region49: #{tpu_custom_call.1} parent=1 // pred_fallthru
      _
    // Predicated region
    $region50: #{tpu_custom_call.1} parent=1 // pred_check
      _
    $region51: #{tpu_custom_call.1} parent=1 // pred_check_branch
      %132 = sbr.rel (0) target = $region53
    $region52: #{tpu_custom_call.1} parent=1 // pred_region
      %133 = dma.done [#allocation9], 256
    $region53: #{tpu_custom_call.1} parent=1 // pred_fallthru
      _
    // Predicated region
    $region54: #{tpu_custom_call.1} parent=1 // pred_check
      _
    $region55: #{tpu_custom_call.1} parent=1 // pred_check_branch
      %135 = sbr.rel (0) target = $region57
    $region56: #{tpu_custom_call.1} parent=1 // pred_region
      %136 = dma.done [#allocation12], 256
    $region57: #{tpu_custom_call.1} parent=1 // pred_fallthru
      _
    // Predicated region
    $region58: #{tpu_custom_call.1} parent=1 // pred_check
      _
    $region59: #{tpu_custom_call.1} parent=1 // pred_check_branch
      %138 = sbr.rel (0) target = $region61
    $region60: #{tpu_custom_call.1} parent=1 // pred_region
      %139 = dma.done [#allocation12], 256
    $region61: #{tpu_custom_call.1} parent=1 // pred_fallthru
      _
    // Predicated region
    $region62: #{tpu_custom_call.1} parent=1 // pred_check
      _
    $region63: #{tpu_custom_call.1} parent=1 // pred_check_branch
      %141 = sbr.rel (0) target = $region65
    $region64: #{tpu_custom_call.1} parent=1 // pred_region
      %142 = dma.done [#allocation15], 256
    $region65: #{tpu_custom_call.1} parent=1 // pred_fallthru
      _
    %v143 = vld [vmem:[#allocation2] sm:$0xff]
    %v144 = vld [vmem:[#allocation2 + $0x8] sm:$0xff]
    %v145 = vld [vmem:[#allocation2 + $0x10] sm:$0xff]
    %v146 = vld [vmem:[#allocation2 + $0x18] sm:$0xff]
    %v147 = vld [vmem:[#allocation2 + $0x20] sm:$0xff]
    %v148 = vld [vmem:[#allocation2 + $0x28] sm:$0xff]
    %v149 = vld [vmem:[#allocation2 + $0x30] sm:$0xff]
    %v150 = vld [vmem:[#allocation2 + $0x38] sm:$0xff]
    %v151 = vld [vmem:[#allocation2 + $0x40] sm:$0xff]
    %v152 = vld [vmem:[#allocation2 + $0x48] sm:$0xff]
    %v153 = vld [vmem:[#allocation2 + $0x50] sm:$0xff]
    %v154 = vld [vmem:[#allocation2 + $0x58] sm:$0xff]
    %v155 = vld [vmem:[#allocation5] sm:$0xff]
    %v156 = vld [vmem:[#allocation5 + $0x8] sm:$0xff]
    %v157 = vld [vmem:[#allocation5 + $0x10] sm:$0xff]
    %v158 = vld [vmem:[#allocation5 + $0x18] sm:$0xff]
    %v159 = vld [vmem:[#allocation5 + $0x20] sm:$0xff]
    %v160 = vld [vmem:[#allocation5 + $0x28] sm:$0xff]
    %v161 = vld [vmem:[#allocation5 + $0x30] sm:$0xff]
    %v162 = vld [vmem:[#allocation5 + $0x38] sm:$0xff]
    %v163 = vld [vmem:[#allocation5 + $0x40] sm:$0xff]
    %v164 = vld [vmem:[#allocation5 + $0x48] sm:$0xff]
    %v165 = vld [vmem:[#allocation5 + $0x50] sm:$0xff]
    %v166 = vld [vmem:[#allocation5 + $0x58] sm:$0xff]
    %v167 = vsub.f32 %v143, %v155
    %v168 = vsub.f32 %v144, %v156
    %v169 = vsub.f32 %v145, %v157
    %v170 = vsub.f32 %v146, %v158
    %v171 = vsub.f32 %v147, %v159
    %v172 = vsub.f32 %v148, %v160
    %v173 = vsub.f32 %v149, %v161
    %v174 = vsub.f32 %v150, %v162
    %v175 = vsub.f32 %v151, %v163
    %v176 = vsub.f32 %v152, %v164
    %v177 = vsub.f32 %v153, %v165
    %v178 = vsub.f32 %v154, %v166
    %v179 = vmul.f32 %v167, %v167
    %v180 = vmul.f32 %v168, %v168
    %v181 = vmul.f32 %v169, %v169
    %v182 = vmul.f32 %v170, %v170
    %v183 = vmul.f32 %v171, %v171
    %v184 = vmul.f32 %v172, %v172
    %v185 = vmul.f32 %v173, %v173
    %v186 = vmul.f32 %v174, %v174
    %v187 = vmul.f32 %v175, %v175
    %v188 = vmul.f32 %v176, %v176
    %v189 = vmul.f32 %v177, %v177
    %v190 = vmul.f32 %v178, %v178
    %v191 = vadd.f32 %v179, 1e-06
    %v192 = vadd.f32 %v180, 1e-06
    %v193 = vadd.f32 %v181, 1e-06
    %v194 = vadd.f32 %v182, 1e-06
    %v195 = vadd.f32 %v183, 1e-06
    %v196 = vadd.f32 %v184, 1e-06
    %v197 = vadd.f32 %v185, 1e-06
    %v198 = vadd.f32 %v186, 1e-06
    %v199 = vadd.f32 %v187, 1e-06
    %v200 = vadd.f32 %v188, 1e-06
    %v201 = vadd.f32 %v189, 1e-06
    %v202 = vadd.f32 %v190, 1e-06
    %v203 = vrsqrt.pop %v191
    %v204 = vmul.f32 %v191, %v203
    %vm205 = vcmp.eq.f32.partialorder %v191, inf
    %v206 = vsel %vm205, %v191, %v204
    %vm207 = vcmp.eq.f32.partialorder %v191, 0.0
    %v208 = vand.u32 %v191, 2147483648
    %v209 = vsel %vm207, %v208, %v206
    %v210 = vrsqrt.pop %v192
    %v211 = vmul.f32 %v192, %v210
    %vm212 = vcmp.eq.f32.partialorder %v192, inf
    %v213 = vsel %vm212, %v192, %v211
    %vm214 = vcmp.eq.f32.partialorder %v192, 0.0
    %v215 = vand.u32 %v192, 2147483648
    %v216 = vsel %vm214, %v215, %v213
    %v217 = vrsqrt.pop %v193
    %v218 = vmul.f32 %v193, %v217
    %vm219 = vcmp.eq.f32.partialorder %v193, inf
    %v220 = vsel %vm219, %v193, %v218
    %vm221 = vcmp.eq.f32.partialorder %v193, 0.0
    %v222 = vand.u32 %v193, 2147483648
    %v223 = vsel %vm221, %v222, %v220
    %v224 = vrsqrt.pop %v194
    %v225 = vmul.f32 %v194, %v224
    %vm226 = vcmp.eq.f32.partialorder %v194, inf
    %v227 = vsel %vm226, %v194, %v225
    %vm228 = vcmp.eq.f32.partialorder %v194, 0.0
    %v229 = vand.u32 %v194, 2147483648
    %v230 = vsel %vm228, %v229, %v227
    %v231 = vrsqrt.pop %v195
    %v232 = vmul.f32 %v195, %v231
    %vm233 = vcmp.eq.f32.partialorder %v195, inf
    %v234 = vsel %vm233, %v195, %v232
    %vm235 = vcmp.eq.f32.partialorder %v195, 0.0
    %v236 = vand.u32 %v195, 2147483648
    %v237 = vsel %vm235, %v236, %v234
    %v238 = vrsqrt.pop %v196
    %v239 = vmul.f32 %v196, %v238
    %vm240 = vcmp.eq.f32.partialorder %v196, inf
    %v241 = vsel %vm240, %v196, %v239
    %vm242 = vcmp.eq.f32.partialorder %v196, 0.0
    %v243 = vand.u32 %v196, 2147483648
    %v244 = vsel %vm242, %v243, %v241
    %v245 = vrsqrt.pop %v197
    %v246 = vmul.f32 %v197, %v245
    %vm247 = vcmp.eq.f32.partialorder %v197, inf
    %v248 = vsel %vm247, %v197, %v246
    %vm249 = vcmp.eq.f32.partialorder %v197, 0.0
    %v250 = vand.u32 %v197, 2147483648
    %v251 = vsel %vm249, %v250, %v248
    %v252 = vrsqrt.pop %v198
    %v253 = vmul.f32 %v198, %v252
    %vm254 = vcmp.eq.f32.partialorder %v198, inf
    %v255 = vsel %vm254, %v198, %v253
    %vm256 = vcmp.eq.f32.partialorder %v198, 0.0
    %v257 = vand.u32 %v198, 2147483648
    %v258 = vsel %vm256, %v257, %v255
    %v259 = vrsqrt.pop %v199
    %v260 = vmul.f32 %v199, %v259
    %vm261 = vcmp.eq.f32.partialorder %v199, inf
    %v262 = vsel %vm261, %v199, %v260
    %vm263 = vcmp.eq.f32.partialorder %v199, 0.0
    %v264 = vand.u32 %v199, 2147483648
    %v265 = vsel %vm263, %v264, %v262
    %v266 = vrsqrt.pop %v200
    %v267 = vmul.f32 %v200, %v266
    %vm268 = vcmp.eq.f32.partialorder %v200, inf
    %v269 = vsel %vm268, %v200, %v267
    %vm270 = vcmp.eq.f32.partialorder %v200, 0.0
    %v271 = vand.u32 %v200, 2147483648
    %v272 = vsel %vm270, %v271, %v269
    %v273 = vrsqrt.pop %v201
    %v274 = vmul.f32 %v201, %v273
    %vm275 = vcmp.eq.f32.partialorder %v201, inf
    %v276 = vsel %vm275, %v201, %v274
    %vm277 = vcmp.eq.f32.partialorder %v201, 0.0
    %v278 = vand.u32 %v201, 2147483648
    %v279 = vsel %vm277, %v278, %v276
    %v280 = vrsqrt.pop %v202
    %v281 = vmul.f32 %v202, %v280
    %vm282 = vcmp.eq.f32.partialorder %v202, inf
    %v283 = vsel %vm282, %v202, %v281
    %vm284 = vcmp.eq.f32.partialorder %v202, 0.0
    %v285 = vand.u32 %v202, 2147483648
    %v286 = vsel %vm284, %v285, %v283
    %vm287 = vcmask 130048
    %v288 = vsel %vm287, %v209, 0.0
    %289 = vadd.xlane.f32.xlu0 %v288
    %v290 = vpop.xlane.xlu0 %289
    %v291 = vsel %vm287, %v216, 0.0
    %292 = vadd.xlane.f32.xlu0 %v291
    %v293 = vpop.xlane.xlu0 %292
    %v294 = vsel %vm287, %v223, 0.0
    %295 = vadd.xlane.f32.xlu0 %v294
    %v296 = vpop.xlane.xlu0 %295
    %v297 = vsel %vm287, %v230, 0.0
    %298 = vadd.xlane.f32.xlu0 %v297
    %v299 = vpop.xlane.xlu0 %298
    %v300 = vsel %vm287, %v237, 0.0
    %301 = vadd.xlane.f32.xlu0 %v300
    %v302 = vpop.xlane.xlu0 %301
    %v303 = vsel %vm287, %v244, 0.0
    %304 = vadd.xlane.f32.xlu0 %v303
    %v305 = vpop.xlane.xlu0 %304
    %v306 = vsel %vm287, %v251, 0.0
    %307 = vadd.xlane.f32.xlu0 %v306
    %v308 = vpop.xlane.xlu0 %307
    %v309 = vsel %vm287, %v258, 0.0
    %310 = vadd.xlane.f32.xlu0 %v309
    %v311 = vpop.xlane.xlu0 %310
    %v312 = vsel %vm287, %v265, 0.0
    %313 = vadd.xlane.f32.xlu0 %v312
    %v314 = vpop.xlane.xlu0 %313
    %v315 = vsel %vm287, %v272, 0.0
    %316 = vadd.xlane.f32.xlu0 %v315
    %v317 = vpop.xlane.xlu0 %316
    %v318 = vsel %vm287, %v279, 0.0
    %319 = vadd.xlane.f32.xlu0 %v318
    %v320 = vpop.xlane.xlu0 %319
    %v321 = vsel %vm287, %v286, 0.0
    %322 = vadd.xlane.f32.xlu0 %v321
    %v323 = vpop.xlane.xlu0 %322
    %v324 = vadd.f32 %v290, %v293
    %v325 = vadd.f32 %v324, %v296
    %v326 = vadd.f32 %v325, %v299
    %v327 = vadd.f32 %v326, %v302
    %v328 = vadd.f32 %v327, %v305
    %v329 = vadd.f32 %v328, %v308
    %v330 = vadd.f32 %v329, %v311
    %v331 = vadd.f32 %v330, %v314
    %v332 = vadd.f32 %v331, %v317
    %v333 = vadd.f32 %v332, %v320
    %v334 = vadd.f32 %v333, %v323
    %v335 = vrot.slane %v334, 4
    %v336 = vadd.f32 %v334, %v335
    %v337 = vrot.slane %v336, 2
    %v338 = vadd.f32 %v336, %v337
    %v339 = vrot.slane %v338, 1
    %v340 = vadd.f32 %v338, %v339
    %v341 = vld [vmem:[#allocation7] sm:$0xff]
    %v342 = vld [vmem:[#allocation7 + $0x8] sm:$0xff]
    %v344 = vsel %vm287, %v167, 0
    %v347 = vsel %vm287, %v168, 0
    %v350 = vsel %vm287, %v169, 0
    %v353 = vsel %vm287, %v170, 0
    %v356 = vsel %vm287, %v171, 0
    %v359 = vsel %vm287, %v172, 0
    %v362 = vsel %vm287, %v173, 0
    %v365 = vsel %vm287, %v174, 0
    %v368 = vsel %vm287, %v175, 0
    %v371 = vsel %vm287, %v176, 0
    %v374 = vsel %vm287, %v177, 0
    %v377 = vsel %vm287, %v178, 0
    %379 = vmatprep.subr.mxu0 0.0
    %380 = vmatpush1.msra.mxu0 0.0
    %381 = vmatprep.subr.mxu0 0.0
    %382 = vmatpush1.msra.mxu0 0.0
    %383 = vmatprep.subr.mxu0 0.0
    %384 = vmatpush1.msra.mxu0 0.0
    %385 = vmatprep.subr.mxu0 0.0
    %386 = vmatpush1.msra.mxu0 0.0
    %387 = vmatprep.subr.mxu0 0.0
    %388 = vmatpush1.msra.mxu0 0.0
    %389 = vmatprep.subr.mxu0 0.0
    %390 = vmatpush1.msra.mxu0 0.0
    %391 = vmatprep.subr.mxu0 0.0
    %392 = vmatpush1.msra.mxu0 0.0
    %393 = vmatprep.subr.mxu0 0.0
    %394 = vmatpush1.msra.mxu0 0.0
    %395 = vmatprep.subr.mxu0 0.0
    %396 = vmatpush1.msra.mxu0 0.0
    %397 = vmatprep.subr.mxu0 0.0
    %398 = vmatpush1.msra.mxu0 0.0
    %399 = vmatprep.subr.mxu0 0.0
    %400 = vmatpush1.msra.mxu0 0.0
    %401 = vmatprep.subr.mxu0 0.0
    %402 = vmatpush1.msra.mxu0 0.0
    %403 = vmatprep.subr.mxu0 0.0
    %404 = vmatpush1.msra.mxu0 0.0
    %405 = vmatprep.subr.mxu0 0.0
    %406 = vmatpush1.msra.mxu0 0.0
    %407 = vmatprep.subr.mxu0 0.0
    %408 = vmatpush1.msra.mxu0 %v342
    %409 = vmatprep.subr.mxu0 0.0
    %410 = vmatpush1.msra.mxu0 %v341
    %411 = vmatprep.subr.mxu0 0.0
    %412 = vmatpush2.msra.mxu0 0.0
    %413 = vmatprep.subr.mxu0 0.0
    %414 = vmatpush2.msra.mxu0 0.0
    %415 = vmatprep.subr.mxu0 0.0
    %416 = vmatpush2.msra.mxu0 0.0
    %417 = vmatprep.subr.mxu0 0.0
    %418 = vmatpush2.msra.mxu0 0.0
    %419 = vmatprep.subr.mxu0 0.0
    %420 = vmatpush2.msra.mxu0 0.0
    %421 = vmatprep.subr.mxu0 0.0
    %422 = vmatpush2.msra.mxu0 0.0
    %423 = vmatprep.subr.mxu0 0.0
    %424 = vmatpush2.msra.mxu0 0.0
    %425 = vmatprep.subr.mxu0 0.0
    %426 = vmatpush2.msra.mxu0 0.0
    %427 = vmatprep.subr.mxu0 0.0
    %428 = vmatpush2.msra.mxu0 0.0
    %429 = vmatprep.subr.mxu0 0.0
    %430 = vmatpush2.msra.mxu0 0.0
    %431 = vmatprep.subr.mxu0 0.0
    %432 = vmatpush2.msra.mxu0 0.0
    %433 = vmatprep.subr.mxu0 0.0
    %434 = vmatpush2.msra.mxu0 0.0
    %435 = vmatprep.subr.mxu0 0.0
    %436 = vmatpush2.msra.mxu0 0.0
    %437 = vmatprep.subr.mxu0 0.0
    %438 = vmatpush2.msra.mxu0 0.0
    %439 = vmatprep.subr.mxu0 0.0
    %440 = vmatpush2.msra.mxu0 0.0
    %441 = vmatprep.subr.mxu0 0.0
    %442 = vmatpush2.msra.mxu0 0.0
    %443 = vmatprep.mubr.f32.mxu0 0.0
    %444 = vmatmul.mubr.f32.gmra.mxu0 %v344
    %v445 = vpop.f32.mrf.mxu0
    %v446 = vadd.f32 0.0, %v445
    %v447 = vpop.f32.mrf.mxu0
    %448 = vmatprep.mubr.f32.mxu0 0.0
    %449 = vmatmul.mubr.f32.gmra.mxu0 %v347
    %v450 = vpop.f32.mrf.mxu0
    %v451 = vadd.f32 0.0, %v450
    %v452 = vpop.f32.mrf.mxu0
    %453 = vmatprep.mubr.f32.mxu0 0.0
    %454 = vmatmul.mubr.f32.gmra.mxu0 %v350
    %v455 = vpop.f32.mrf.mxu0
    %v456 = vadd.f32 0.0, %v455
    %v457 = vpop.f32.mrf.mxu0
    %458 = vmatprep.mubr.f32.mxu0 0.0
    %459 = vmatmul.mubr.f32.gmra.mxu0 %v353
    %v460 = vpop.f32.mrf.mxu0
    %v461 = vadd.f32 0.0, %v460
    %v462 = vpop.f32.mrf.mxu0
    %463 = vmatprep.mubr.f32.mxu0 0.0
    %464 = vmatmul.mubr.f32.gmra.mxu0 %v356
    %v465 = vpop.f32.mrf.mxu0
    %v466 = vadd.f32 0.0, %v465
    %v467 = vpop.f32.mrf.mxu0
    %468 = vmatprep.mubr.f32.mxu0 0.0
    %469 = vmatmul.mubr.f32.gmra.mxu0 %v359
    %v470 = vpop.f32.mrf.mxu0
    %v471 = vadd.f32 0.0, %v470
    %v472 = vpop.f32.mrf.mxu0
    %473 = vmatprep.mubr.f32.mxu0 0.0
    %474 = vmatmul.mubr.f32.gmra.mxu0 %v362
    %v475 = vpop.f32.mrf.mxu0
    %v476 = vadd.f32 0.0, %v475
    %v477 = vpop.f32.mrf.mxu0
    %478 = vmatprep.mubr.f32.mxu0 0.0
    %479 = vmatmul.mubr.f32.gmra.mxu0 %v365
    %v480 = vpop.f32.mrf.mxu0
    %v481 = vadd.f32 0.0, %v480
    %v482 = vpop.f32.mrf.mxu0
    %483 = vmatprep.mubr.f32.mxu0 0.0
    %484 = vmatmul.mubr.f32.gmra.mxu0 %v368
    %v485 = vpop.f32.mrf.mxu0
    %v486 = vadd.f32 0.0, %v485
    %v487 = vpop.f32.mrf.mxu0
    %488 = vmatprep.mubr.f32.mxu0 0.0
    %489 = vmatmul.mubr.f32.gmra.mxu0 %v371
    %v490 = vpop.f32.mrf.mxu0
    %v491 = vadd.f32 0.0, %v490
    %v492 = vpop.f32.mrf.mxu0
    %493 = vmatprep.mubr.f32.mxu0 0.0
    %494 = vmatmul.mubr.f32.gmra.mxu0 %v374
    %v495 = vpop.f32.mrf.mxu0
    %v496 = vadd.f32 0.0, %v495
    %v497 = vpop.f32.mrf.mxu0
    %498 = vmatprep.mubr.f32.mxu0 0.0
    %499 = vmatmul.mubr.f32.gmra.mxu0 %v377
    %v500 = vpop.f32.mrf.mxu0
    %v501 = vadd.f32 0.0, %v500
    %v502 = vpop.f32.mrf.mxu0
    %503 = vdwg.mxu0
    %v504 = vld [vmem:[#allocation8] sm:$0xff]
    %v505 = vld [vmem:[#allocation8 + $0x8] sm:$0xff]
    %506 = vmatprep.subr.mxu0 0.0
    %507 = vmatpush1.msra.mxu0 0.0
    %508 = vmatprep.subr.mxu0 0.0
    %509 = vmatpush1.msra.mxu0 0.0
    %510 = vmatprep.subr.mxu0 0.0
    %511 = vmatpush1.msra.mxu0 0.0
    %512 = vmatprep.subr.mxu0 0.0
    %513 = vmatpush1.msra.mxu0 0.0
    %514 = vmatprep.subr.mxu0 0.0
    %515 = vmatpush1.msra.mxu0 0.0
    %516 = vmatprep.subr.mxu0 0.0
    %517 = vmatpush1.msra.mxu0 0.0
    %518 = vmatprep.subr.mxu0 0.0
    %519 = vmatpush1.msra.mxu0 0.0
    %520 = vmatprep.subr.mxu0 0.0
    %521 = vmatpush1.msra.mxu0 0.0
    %522 = vmatprep.subr.mxu0 0.0
    %523 = vmatpush1.msra.mxu0 0.0
    %524 = vmatprep.subr.mxu0 0.0
    %525 = vmatpush1.msra.mxu0 0.0
    %526 = vmatprep.subr.mxu0 0.0
    %527 = vmatpush1.msra.mxu0 0.0
    %528 = vmatprep.subr.mxu0 0.0
    %529 = vmatpush1.msra.mxu0 0.0
    %530 = vmatprep.subr.mxu0 0.0
    %531 = vmatpush1.msra.mxu0 0.0
    %532 = vmatprep.subr.mxu0 0.0
    %533 = vmatpush1.msra.mxu0 0.0
    %534 = vmatprep.subr.mxu0 0.0
    %535 = vmatpush1.msra.mxu0 %v505
    %536 = vmatprep.subr.mxu0 0.0
    %537 = vmatpush1.msra.mxu0 %v504
    %538 = vmatprep.subr.mxu0 0.0
    %539 = vmatpush2.msra.mxu0 0.0
    %540 = vmatprep.subr.mxu0 0.0
    %541 = vmatpush2.msra.mxu0 0.0
    %542 = vmatprep.subr.mxu0 0.0
    %543 = vmatpush2.msra.mxu0 0.0
    %544 = vmatprep.subr.mxu0 0.0
    %545 = vmatpush2.msra.mxu0 0.0
    %546 = vmatprep.subr.mxu0 0.0
    %547 = vmatpush2.msra.mxu0 0.0
    %548 = vmatprep.subr.mxu0 0.0
    %549 = vmatpush2.msra.mxu0 0.0
    %550 = vmatprep.subr.mxu0 0.0
    %551 = vmatpush2.msra.mxu0 0.0
    %552 = vmatprep.subr.mxu0 0.0
    %553 = vmatpush2.msra.mxu0 0.0
    %554 = vmatprep.subr.mxu0 0.0
    %555 = vmatpush2.msra.mxu0 0.0
    %556 = vmatprep.subr.mxu0 0.0
    %557 = vmatpush2.msra.mxu0 0.0
    %558 = vmatprep.subr.mxu0 0.0
    %559 = vmatpush2.msra.mxu0 0.0
    %560 = vmatprep.subr.mxu0 0.0
    %561 = vmatpush2.msra.mxu0 0.0
    %562 = vmatprep.subr.mxu0 0.0
    %563 = vmatpush2.msra.mxu0 0.0
    %564 = vmatprep.subr.mxu0 0.0
    %565 = vmatpush2.msra.mxu0 0.0
    %566 = vmatprep.subr.mxu0 0.0
    %567 = vmatpush2.msra.mxu0 0.0
    %568 = vmatprep.subr.mxu0 0.0
    %569 = vmatpush2.msra.mxu0 0.0
    %570 = vmatprep.mubr.f32.mxu0 0.0
    %571 = vmatmul.mubr.f32.gmra.mxu0 %v344
    %v572 = vpop.f32.mrf.mxu0
    %v573 = vadd.f32 0.0, %v572
    %v574 = vpop.f32.mrf.mxu0
    %575 = vmatprep.mubr.f32.mxu0 0.0
    %576 = vmatmul.mubr.f32.gmra.mxu0 %v347
    %v577 = vpop.f32.mrf.mxu0
    %v578 = vadd.f32 0.0, %v577
    %v579 = vpop.f32.mrf.mxu0
    %580 = vmatprep.mubr.f32.mxu0 0.0
    %581 = vmatmul.mubr.f32.gmra.mxu0 %v350
    %v582 = vpop.f32.mrf.mxu0
    %v583 = vadd.f32 0.0, %v582
    %v584 = vpop.f32.mrf.mxu0
    %585 = vmatprep.mubr.f32.mxu0 0.0
    %586 = vmatmul.mubr.f32.gmra.mxu0 %v353
    %v587 = vpop.f32.mrf.mxu0
    %v588 = vadd.f32 0.0, %v587
    %v589 = vpop.f32.mrf.mxu0
    %590 = vmatprep.mubr.f32.mxu0 0.0
    %591 = vmatmul.mubr.f32.gmra.mxu0 %v356
    %v592 = vpop.f32.mrf.mxu0
    %v593 = vadd.f32 0.0, %v592
    %v594 = vpop.f32.mrf.mxu0
    %595 = vmatprep.mubr.f32.mxu0 0.0
    %596 = vmatmul.mubr.f32.gmra.mxu0 %v359
    %v597 = vpop.f32.mrf.mxu0
    %v598 = vadd.f32 0.0, %v597
    %v599 = vpop.f32.mrf.mxu0
    %600 = vmatprep.mubr.f32.mxu0 0.0
    %601 = vmatmul.mubr.f32.gmra.mxu0 %v362
    %v602 = vpop.f32.mrf.mxu0
    %v603 = vadd.f32 0.0, %v602
    %v604 = vpop.f32.mrf.mxu0
    %605 = vmatprep.mubr.f32.mxu0 0.0
    %606 = vmatmul.mubr.f32.gmra.mxu0 %v365
    %v607 = vpop.f32.mrf.mxu0
    %v608 = vadd.f32 0.0, %v607
    %v609 = vpop.f32.mrf.mxu0
    %610 = vmatprep.mubr.f32.mxu0 0.0
    %611 = vmatmul.mubr.f32.gmra.mxu0 %v368
    %v612 = vpop.f32.mrf.mxu0
    %v613 = vadd.f32 0.0, %v612
    %v614 = vpop.f32.mrf.mxu0
    %615 = vmatprep.mubr.f32.mxu0 0.0
    %616 = vmatmul.mubr.f32.gmra.mxu0 %v371
    %v617 = vpop.f32.mrf.mxu0
    %v618 = vadd.f32 0.0, %v617
    %v619 = vpop.f32.mrf.mxu0
    %620 = vmatprep.mubr.f32.mxu0 0.0
    %621 = vmatmul.mubr.f32.gmra.mxu0 %v374
    %v622 = vpop.f32.mrf.mxu0
    %v623 = vadd.f32 0.0, %v622
    %v624 = vpop.f32.mrf.mxu0
    %625 = vmatprep.mubr.f32.mxu0 0.0
    %626 = vmatmul.mubr.f32.gmra.mxu0 %v377
    %v627 = vpop.f32.mrf.mxu0
    %v628 = vadd.f32 0.0, %v627
    %v629 = vpop.f32.mrf.mxu0
    %630 = vdwg.mxu0
    %631 = vxpose.xlu0.b32.start [1/16] %v446, 128
    %632 = vxpose.xlu0.b32.cont [2/16] %v451, 128
    %633 = vxpose.xlu0.b32.cont [3/16] 0.0, 128
    %634 = vxpose.xlu0.b32.cont [4/16] 0.0, 128
    %635 = vxpose.xlu0.b32.cont [5/16] 0.0, 128
    %636 = vxpose.xlu0.b32.cont [6/16] 0.0, 128
    %637 = vxpose.xlu0.b32.cont [7/16] 0.0, 128
    %638 = vxpose.xlu0.b32.cont [8/16] 0.0, 128
    %639 = vxpose.xlu0.b32.cont [9/16] 0.0, 128
    %640 = vxpose.xlu0.b32.cont [10/16] 0.0, 128
    %641 = vxpose.xlu0.b32.cont [11/16] 0.0, 128
    %642 = vxpose.xlu0.b32.cont [12/16] 0.0, 128
    %643 = vxpose.xlu0.b32.cont [13/16] 0.0, 128
    %644 = vxpose.xlu0.b32.cont [14/16] 0.0, 128
    %645 = vxpose.xlu0.b32.cont [15/16] 0.0, 128
    %646 = vxpose.xlu0.b32.end [16/16] 0.0, 128
    %v647 = vpop.trf.xlu0
    %v648 = vpop.trf.xlu0
    %v649 = vpop.trf.xlu0
    %v650 = vpop.trf.xlu0
    %v651 = vpop.trf.xlu0
    %v652 = vpop.trf.xlu0
    %v653 = vpop.trf.xlu0
    %v654 = vpop.trf.xlu0
    %v655 = vpop.trf.xlu0
    %v656 = vpop.trf.xlu0
    %v657 = vpop.trf.xlu0
    %v658 = vpop.trf.xlu0
    %v659 = vpop.trf.xlu0
    %v660 = vpop.trf.xlu0
    %v661 = vpop.trf.xlu0
    %v662 = vpop.trf.xlu0
    %663 = vxpose.xlu0.b32.start [1/16] %v456, 128
    %664 = vxpose.xlu0.b32.cont [2/16] %v461, 128
    %665 = vxpose.xlu0.b32.cont [3/16] 0.0, 128
    %666 = vxpose.xlu0.b32.cont [4/16] 0.0, 128
    %667 = vxpose.xlu0.b32.cont [5/16] 0.0, 128
    %668 = vxpose.xlu0.b32.cont [6/16] 0.0, 128
    %669 = vxpose.xlu0.b32.cont [7/16] 0.0, 128
    %670 = vxpose.xlu0.b32.cont [8/16] 0.0, 128
    %671 = vxpose.xlu0.b32.cont [9/16] 0.0, 128
    %672 = vxpose.xlu0.b32.cont [10/16] 0.0, 128
    %673 = vxpose.xlu0.b32.cont [11/16] 0.0, 128
    %674 = vxpose.xlu0.b32.cont [12/16] 0.0, 128
    %675 = vxpose.xlu0.b32.cont [13/16] 0.0, 128
    %676 = vxpose.xlu0.b32.cont [14/16] 0.0, 128
    %677 = vxpose.xlu0.b32.cont [15/16] 0.0, 128
    %678 = vxpose.xlu0.b32.end [16/16] 0.0, 128
    %v679 = vpop.trf.xlu0
    %v680 = vpop.trf.xlu0
    %v681 = vpop.trf.xlu0
    %v682 = vpop.trf.xlu0
    %v683 = vpop.trf.xlu0
    %v684 = vpop.trf.xlu0
    %v685 = vpop.trf.xlu0
    %v686 = vpop.trf.xlu0
    %v687 = vpop.trf.xlu0
    %v688 = vpop.trf.xlu0
    %v689 = vpop.trf.xlu0
    %v690 = vpop.trf.xlu0
    %v691 = vpop.trf.xlu0
    %v692 = vpop.trf.xlu0
    %v693 = vpop.trf.xlu0
    %v694 = vpop.trf.xlu0
    %695 = vxpose.xlu0.b32.start [1/16] %v466, 128
    %696 = vxpose.xlu0.b32.cont [2/16] %v471, 128
    %697 = vxpose.xlu0.b32.cont [3/16] 0.0, 128
    %698 = vxpose.xlu0.b32.cont [4/16] 0.0, 128
    %699 = vxpose.xlu0.b32.cont [5/16] 0.0, 128
    %700 = vxpose.xlu0.b32.cont [6/16] 0.0, 128
    %701 = vxpose.xlu0.b32.cont [7/16] 0.0, 128
    %702 = vxpose.xlu0.b32.cont [8/16] 0.0, 128
    %703 = vxpose.xlu0.b32.cont [9/16] 0.0, 128
    %704 = vxpose.xlu0.b32.cont [10/16] 0.0, 128
    %705 = vxpose.xlu0.b32.cont [11/16] 0.0, 128
    %706 = vxpose.xlu0.b32.cont [12/16] 0.0, 128
    %707 = vxpose.xlu0.b32.cont [13/16] 0.0, 128
    %708 = vxpose.xlu0.b32.cont [14/16] 0.0, 128
    %709 = vxpose.xlu0.b32.cont [15/16] 0.0, 128
    %710 = vxpose.xlu0.b32.end [16/16] 0.0, 128
    %v711 = vpop.trf.xlu0
    %v712 = vpop.trf.xlu0
    %v713 = vpop.trf.xlu0
    %v714 = vpop.trf.xlu0
    %v715 = vpop.trf.xlu0
    %v716 = vpop.trf.xlu0
    %v717 = vpop.trf.xlu0
    %v718 = vpop.trf.xlu0
    %v719 = vpop.trf.xlu0
    %v720 = vpop.trf.xlu0
    %v721 = vpop.trf.xlu0
    %v722 = vpop.trf.xlu0
    %v723 = vpop.trf.xlu0
    %v724 = vpop.trf.xlu0
    %v725 = vpop.trf.xlu0
    %v726 = vpop.trf.xlu0
    %727 = vxpose.xlu0.b32.start [1/16] %v476, 128
    %728 = vxpose.xlu0.b32.cont [2/16] %v481, 128
    %729 = vxpose.xlu0.b32.cont [3/16] 0.0, 128
    %730 = vxpose.xlu0.b32.cont [4/16] 0.0, 128
    %731 = vxpose.xlu0.b32.cont [5/16] 0.0, 128
    %732 = vxpose.xlu0.b32.cont [6/16] 0.0, 128
    %733 = vxpose.xlu0.b32.cont [7/16] 0.0, 128
    %734 = vxpose.xlu0.b32.cont [8/16] 0.0, 128
    %735 = vxpose.xlu0.b32.cont [9/16] 0.0, 128
    %736 = vxpose.xlu0.b32.cont [10/16] 0.0, 128
    %737 = vxpose.xlu0.b32.cont [11/16] 0.0, 128
    %738 = vxpose.xlu0.b32.cont [12/16] 0.0, 128
    %739 = vxpose.xlu0.b32.cont [13/16] 0.0, 128
    %740 = vxpose.xlu0.b32.cont [14/16] 0.0, 128
    %741 = vxpose.xlu0.b32.cont [15/16] 0.0, 128
    %742 = vxpose.xlu0.b32.end [16/16] 0.0, 128
    %v743 = vpop.trf.xlu0
    %v744 = vpop.trf.xlu0
    %v745 = vpop.trf.xlu0
    %v746 = vpop.trf.xlu0
    %v747 = vpop.trf.xlu0
    %v748 = vpop.trf.xlu0
    %v749 = vpop.trf.xlu0
    %v750 = vpop.trf.xlu0
    %v751 = vpop.trf.xlu0
    %v752 = vpop.trf.xlu0
    %v753 = vpop.trf.xlu0
    %v754 = vpop.trf.xlu0
    %v755 = vpop.trf.xlu0
    %v756 = vpop.trf.xlu0
    %v757 = vpop.trf.xlu0
    %v758 = vpop.trf.xlu0
    %759 = vxpose.xlu0.b32.start [1/16] %v486, 128
    %760 = vxpose.xlu0.b32.cont [2/16] %v491, 128
    %761 = vxpose.xlu0.b32.cont [3/16] 0.0, 128
    %762 = vxpose.xlu0.b32.cont [4/16] 0.0, 128
    %763 = vxpose.xlu0.b32.cont [5/16] 0.0, 128
    %764 = vxpose.xlu0.b32.cont [6/16] 0.0, 128
    %765 = vxpose.xlu0.b32.cont [7/16] 0.0, 128
    %766 = vxpose.xlu0.b32.cont [8/16] 0.0, 128
    %767 = vxpose.xlu0.b32.cont [9/16] 0.0, 128
    %768 = vxpose.xlu0.b32.cont [10/16] 0.0, 128
    %769 = vxpose.xlu0.b32.cont [11/16] 0.0, 128
    %770 = vxpose.xlu0.b32.cont [12/16] 0.0, 128
    %771 = vxpose.xlu0.b32.cont [13/16] 0.0, 128
    %772 = vxpose.xlu0.b32.cont [14/16] 0.0, 128
    %773 = vxpose.xlu0.b32.cont [15/16] 0.0, 128
    %774 = vxpose.xlu0.b32.end [16/16] 0.0, 128
    %v775 = vpop.trf.xlu0
    %v776 = vpop.trf.xlu0
    %v777 = vpop.trf.xlu0
    %v778 = vpop.trf.xlu0
    %v779 = vpop.trf.xlu0
    %v780 = vpop.trf.xlu0
    %v781 = vpop.trf.xlu0
    %v782 = vpop.trf.xlu0
    %v783 = vpop.trf.xlu0
    %v784 = vpop.trf.xlu0
    %v785 = vpop.trf.xlu0
    %v786 = vpop.trf.xlu0
    %v787 = vpop.trf.xlu0
    %v788 = vpop.trf.xlu0
    %v789 = vpop.trf.xlu0
    %v790 = vpop.trf.xlu0
    %791 = vxpose.xlu0.b32.start [1/16] %v496, 128
    %792 = vxpose.xlu0.b32.cont [2/16] %v501, 128
    %793 = vxpose.xlu0.b32.cont [3/16] 0.0, 128
    %794 = vxpose.xlu0.b32.cont [4/16] 0.0, 128
    %795 = vxpose.xlu0.b32.cont [5/16] 0.0, 128
    %796 = vxpose.xlu0.b32.cont [6/16] 0.0, 128
    %797 = vxpose.xlu0.b32.cont [7/16] 0.0, 128
    %798 = vxpose.xlu0.b32.cont [8/16] 0.0, 128
    %799 = vxpose.xlu0.b32.cont [9/16] 0.0, 128
    %800 = vxpose.xlu0.b32.cont [10/16] 0.0, 128
    %801 = vxpose.xlu0.b32.cont [11/16] 0.0, 128
    %802 = vxpose.xlu0.b32.cont [12/16] 0.0, 128
    %803 = vxpose.xlu0.b32.cont [13/16] 0.0, 128
    %804 = vxpose.xlu0.b32.cont [14/16] 0.0, 128
    %805 = vxpose.xlu0.b32.cont [15/16] 0.0, 128
    %806 = vxpose.xlu0.b32.end [16/16] 0.0, 128
    %v807 = vpop.trf.xlu0
    %v808 = vpop.trf.xlu0
    %v809 = vpop.trf.xlu0
    %v810 = vpop.trf.xlu0
    %v811 = vpop.trf.xlu0
    %v812 = vpop.trf.xlu0
    %v813 = vpop.trf.xlu0
    %v814 = vpop.trf.xlu0
    %v815 = vpop.trf.xlu0
    %v816 = vpop.trf.xlu0
    %v817 = vpop.trf.xlu0
    %v818 = vpop.trf.xlu0
    %v819 = vpop.trf.xlu0
    %v820 = vpop.trf.xlu0
    %v821 = vpop.trf.xlu0
    %v822 = vpop.trf.xlu0
    %v835 = vcombine.high %v647, %v647
    %v837 = vunpack.c.l.s4 1966171168
    %v838 = vunpack.c.0.s8 %v837
    %v839 = vlaneseq
    %v840 = vshrl.u32 %v839, 7
    %v841 = vsub.s32 %v838, %v840
    %v842 = vrot.slane %v647, %v841
    %v844 = vunpack.c.l.s4 1966171168
    %v845 = vunpack.c.0.s8 %v844
    %v846 = vlaneseq
    %v847 = vshrl.u32 %v846, 7
    %v848 = vsub.s32 %v845, %v847
    %v849 = vrot.slane %v835, %v848
    %v850 = vcombine.high %v842, %v842
    %v851 = vcombine.high %v849, %v849
    %v853 = vunpack.c.l.s4 1966171168
    %v854 = vunpack.c.0.s8 %v853
    %v855 = vlaneseq
    %v856 = vshrl.u32 %v855, 7
    %v857 = vsub.s32 %v854, %v856
    %v858 = vrot.slane %v842, %v857
    %v860 = vunpack.c.l.s4 1966171168
    %v861 = vunpack.c.0.s8 %v860
    %v862 = vlaneseq
    %v863 = vshrl.u32 %v862, 7
    %v864 = vsub.s32 %v861, %v863
    %v865 = vrot.slane %v849, %v864
    %v867 = vunpack.c.l.s4 1966171168
    %v868 = vunpack.c.0.s8 %v867
    %v869 = vlaneseq
    %v870 = vshrl.u32 %v869, 7
    %v871 = vsub.s32 %v868, %v870
    %v872 = vrot.slane %v850, %v871
    %v874 = vunpack.c.l.s4 1966171168
    %v875 = vunpack.c.0.s8 %v874
    %v876 = vlaneseq
    %v877 = vshrl.u32 %v876, 7
    %v878 = vsub.s32 %v875, %v877
    %v879 = vrot.slane %v851, %v878
    %v880 = vcombine.high %v858, %v858
    %v881 = vcombine.high %v865, %v865
    %v882 = vcombine.high %v872, %v872
    %v883 = vcombine.high %v879, %v879
    %v885 = vunpack.c.l.s4 1966171168
    %v886 = vunpack.c.0.s8 %v885
    %v887 = vlaneseq
    %v888 = vshrl.u32 %v887, 7
    %v889 = vsub.s32 %v886, %v888
    %v890 = vrot.slane %v648, %v889
    %v892 = vunpack.c.l.s4 1966171168
    %v893 = vunpack.c.0.s8 %v892
    %v894 = vlaneseq
    %v895 = vshrl.u32 %v894, 7
    %v896 = vsub.s32 %v893, %v895
    %v897 = vrot.slane %v890, %v896
    %v898 = vcombine.high %v679, %v679
    %v900 = vunpack.c.l.s4 1966171168
    %v901 = vunpack.c.0.s8 %v900
    %v902 = vlaneseq
    %v903 = vshrl.u32 %v902, 7
    %v904 = vsub.s32 %v901, %v903
    %v905 = vrot.slane %v679, %v904
    %v907 = vunpack.c.l.s4 1966171168
    %v908 = vunpack.c.0.s8 %v907
    %v909 = vlaneseq
    %v910 = vshrl.u32 %v909, 7
    %v911 = vsub.s32 %v908, %v910
    %v912 = vrot.slane %v898, %v911
    %v913 = vcombine.high %v905, %v905
    %v914 = vcombine.high %v912, %v912
    %v916 = vunpack.c.l.s4 1966171168
    %v917 = vunpack.c.0.s8 %v916
    %v918 = vlaneseq
    %v919 = vshrl.u32 %v918, 7
    %v920 = vsub.s32 %v917, %v919
    %v921 = vrot.slane %v905, %v920
    %v923 = vunpack.c.l.s4 1966171168
    %v924 = vunpack.c.0.s8 %v923
    %v925 = vlaneseq
    %v926 = vshrl.u32 %v925, 7
    %v927 = vsub.s32 %v924, %v926
    %v928 = vrot.slane %v912, %v927
    %v930 = vunpack.c.l.s4 1966171168
    %v931 = vunpack.c.0.s8 %v930
    %v932 = vlaneseq
    %v933 = vshrl.u32 %v932, 7
    %v934 = vsub.s32 %v931, %v933
    %v935 = vrot.slane %v913, %v934
    %v937 = vunpack.c.l.s4 1966171168
    %v938 = vunpack.c.0.s8 %v937
    %v939 = vlaneseq
    %v940 = vshrl.u32 %v939, 7
    %v941 = vsub.s32 %v938, %v940
    %v942 = vrot.slane %v914, %v941
    %v943 = vcombine.high %v921, %v921
    %v944 = vcombine.high %v928, %v928
    %v945 = vcombine.high %v935, %v935
    %v946 = vcombine.high %v942, %v942
    %v948 = vunpack.c.l.s4 1966171168
    %v949 = vunpack.c.0.s8 %v948
    %v950 = vlaneseq
    %v951 = vshrl.u32 %v950, 7
    %v952 = vsub.s32 %v949, %v951
    %v953 = vrot.slane %v680, %v952
    %v955 = vunpack.c.l.s4 1966171168
    %v956 = vunpack.c.0.s8 %v955
    %v957 = vlaneseq
    %v958 = vshrl.u32 %v957, 7
    %v959 = vsub.s32 %v956, %v958
    %v960 = vrot.slane %v953, %v959
    %v961 = vcombine.high %v711, %v711
    %v963 = vunpack.c.l.s4 1966171168
    %v964 = vunpack.c.0.s8 %v963
    %v965 = vlaneseq
    %v966 = vshrl.u32 %v965, 7
    %v967 = vsub.s32 %v964, %v966
    %v968 = vrot.slane %v711, %v967
    %v970 = vunpack.c.l.s4 1966171168
    %v971 = vunpack.c.0.s8 %v970
    %v972 = vlaneseq
    %v973 = vshrl.u32 %v972, 7
    %v974 = vsub.s32 %v971, %v973
    %v975 = vrot.slane %v961, %v974
    %v976 = vcombine.high %v968, %v968
    %v977 = vcombine.high %v975, %v975
    %v979 = vunpack.c.l.s4 1966171168
    %v980 = vunpack.c.0.s8 %v979
    %v981 = vlaneseq
    %v982 = vshrl.u32 %v981, 7
    %v983 = vsub.s32 %v980, %v982
    %v984 = vrot.slane %v968, %v983
    %v986 = vunpack.c.l.s4 1966171168
    %v987 = vunpack.c.0.s8 %v986
    %v988 = vlaneseq
    %v989 = vshrl.u32 %v988, 7
    %v990 = vsub.s32 %v987, %v989
    %v991 = vrot.slane %v975, %v990
    %v993 = vunpack.c.l.s4 1966171168
    %v994 = vunpack.c.0.s8 %v993
    %v995 = vlaneseq
    %v996 = vshrl.u32 %v995, 7
    %v997 = vsub.s32 %v994, %v996
    %v998 = vrot.slane %v976, %v997
    %v1000 = vunpack.c.l.s4 1966171168
    %v1001 = vunpack.c.0.s8 %v1000
    %v1002 = vlaneseq
    %v1003 = vshrl.u32 %v1002, 7
    %v1004 = vsub.s32 %v1001, %v1003
    %v1005 = vrot.slane %v977, %v1004
    %v1006 = vcombine.high %v984, %v984
    %v1007 = vcombine.high %v991, %v991
    %v1008 = vcombine.high %v998, %v998
    %v1009 = vcombine.high %v1005, %v1005
    %v1011 = vunpack.c.l.s4 1966171168
    %v1012 = vunpack.c.0.s8 %v1011
    %v1013 = vlaneseq
    %v1014 = vshrl.u32 %v1013, 7
    %v1015 = vsub.s32 %v1012, %v1014
    %v1016 = vrot.slane %v712, %v1015
    %v1018 = vunpack.c.l.s4 1966171168
    %v1019 = vunpack.c.0.s8 %v1018
    %v1020 = vlaneseq
    %v1021 = vshrl.u32 %v1020, 7
    %v1022 = vsub.s32 %v1019, %v1021
    %v1023 = vrot.slane %v1016, %v1022
    %v1024 = vcombine.high %v743, %v743
    %v1026 = vunpack.c.l.s4 1966171168
    %v1027 = vunpack.c.0.s8 %v1026
    %v1028 = vlaneseq
    %v1029 = vshrl.u32 %v1028, 7
    %v1030 = vsub.s32 %v1027, %v1029
    %v1031 = vrot.slane %v743, %v1030
    %v1033 = vunpack.c.l.s4 1966171168
    %v1034 = vunpack.c.0.s8 %v1033
    %v1035 = vlaneseq
    %v1036 = vshrl.u32 %v1035, 7
    %v1037 = vsub.s32 %v1034, %v1036
    %v1038 = vrot.slane %v1024, %v1037
    %v1039 = vcombine.high %v1031, %v1031
    %v1040 = vcombine.high %v1038, %v1038
    %v1042 = vunpack.c.l.s4 1966171168
    %v1043 = vunpack.c.0.s8 %v1042
    %v1044 = vlaneseq
    %v1045 = vshrl.u32 %v1044, 7
    %v1046 = vsub.s32 %v1043, %v1045
    %v1047 = vrot.slane %v1031, %v1046
    %v1049 = vunpack.c.l.s4 1966171168
    %v1050 = vunpack.c.0.s8 %v1049
    %v1051 = vlaneseq
    %v1052 = vshrl.u32 %v1051, 7
    %v1053 = vsub.s32 %v1050, %v1052
    %v1054 = vrot.slane %v1038, %v1053
    %v1056 = vunpack.c.l.s4 1966171168
    %v1057 = vunpack.c.0.s8 %v1056
    %v1058 = vlaneseq
    %v1059 = vshrl.u32 %v1058, 7
    %v1060 = vsub.s32 %v1057, %v1059
    %v1061 = vrot.slane %v1039, %v1060
    %v1063 = vunpack.c.l.s4 1966171168
    %v1064 = vunpack.c.0.s8 %v1063
    %v1065 = vlaneseq
    %v1066 = vshrl.u32 %v1065, 7
    %v1067 = vsub.s32 %v1064, %v1066
    %v1068 = vrot.slane %v1040, %v1067
    %v1069 = vcombine.high %v1047, %v1047
    %v1070 = vcombine.high %v1054, %v1054
    %v1071 = vcombine.high %v1061, %v1061
    %v1072 = vcombine.high %v1068, %v1068
    %v1074 = vunpack.c.l.s4 1966171168
    %v1075 = vunpack.c.0.s8 %v1074
    %v1076 = vlaneseq
    %v1077 = vshrl.u32 %v1076, 7
    %v1078 = vsub.s32 %v1075, %v1077
    %v1079 = vrot.slane %v744, %v1078
    %v1081 = vunpack.c.l.s4 1966171168
    %v1082 = vunpack.c.0.s8 %v1081
    %v1083 = vlaneseq
    %v1084 = vshrl.u32 %v1083, 7
    %v1085 = vsub.s32 %v1082, %v1084
    %v1086 = vrot.slane %v1079, %v1085
    %v1087 = vcombine.high %v775, %v775
    %v1089 = vunpack.c.l.s4 1966171168
    %v1090 = vunpack.c.0.s8 %v1089
    %v1091 = vlaneseq
    %v1092 = vshrl.u32 %v1091, 7
    %v1093 = vsub.s32 %v1090, %v1092
    %v1094 = vrot.slane %v775, %v1093
    %v1096 = vunpack.c.l.s4 1966171168
    %v1097 = vunpack.c.0.s8 %v1096
    %v1098 = vlaneseq
    %v1099 = vshrl.u32 %v1098, 7
    %v1100 = vsub.s32 %v1097, %v1099
    %v1101 = vrot.slane %v1087, %v1100
    %v1102 = vcombine.high %v1094, %v1094
    %v1103 = vcombine.high %v1101, %v1101
    %v1105 = vunpack.c.l.s4 1966171168
    %v1106 = vunpack.c.0.s8 %v1105
    %v1107 = vlaneseq
    %v1108 = vshrl.u32 %v1107, 7
    %v1109 = vsub.s32 %v1106, %v1108
    %v1110 = vrot.slane %v1094, %v1109
    %v1112 = vunpack.c.l.s4 1966171168
    %v1113 = vunpack.c.0.s8 %v1112
    %v1114 = vlaneseq
    %v1115 = vshrl.u32 %v1114, 7
    %v1116 = vsub.s32 %v1113, %v1115
    %v1117 = vrot.slane %v1101, %v1116
    %v1119 = vunpack.c.l.s4 1966171168
    %v1120 = vunpack.c.0.s8 %v1119
    %v1121 = vlaneseq
    %v1122 = vshrl.u32 %v1121, 7
    %v1123 = vsub.s32 %v1120, %v1122
    %v1124 = vrot.slane %v1102, %v1123
    %v1126 = vunpack.c.l.s4 1966171168
    %v1127 = vunpack.c.0.s8 %v1126
    %v1128 = vlaneseq
    %v1129 = vshrl.u32 %v1128, 7
    %v1130 = vsub.s32 %v1127, %v1129
    %v1131 = vrot.slane %v1103, %v1130
    %v1132 = vcombine.high %v1110, %v1110
    %v1133 = vcombine.high %v1117, %v1117
    %v1134 = vcombine.high %v1124, %v1124
    %v1135 = vcombine.high %v1131, %v1131
    %v1137 = vunpack.c.l.s4 1966171168
    %v1138 = vunpack.c.0.s8 %v1137
    %v1139 = vlaneseq
    %v1140 = vshrl.u32 %v1139, 7
    %v1141 = vsub.s32 %v1138, %v1140
    %v1142 = vrot.slane %v776, %v1141
    %v1144 = vunpack.c.l.s4 1966171168
    %v1145 = vunpack.c.0.s8 %v1144
    %v1146 = vlaneseq
    %v1147 = vshrl.u32 %v1146, 7
    %v1148 = vsub.s32 %v1145, %v1147
    %v1149 = vrot.slane %v1142, %v1148
    %v1150 = vcombine.high %v807, %v807
    %v1152 = vunpack.c.l.s4 1966171168
    %v1153 = vunpack.c.0.s8 %v1152
    %v1154 = vlaneseq
    %v1155 = vshrl.u32 %v1154, 7
    %v1156 = vsub.s32 %v1153, %v1155
    %v1157 = vrot.slane %v807, %v1156
    %v1159 = vunpack.c.l.s4 1966171168
    %v1160 = vunpack.c.0.s8 %v1159
    %v1161 = vlaneseq
    %v1162 = vshrl.u32 %v1161, 7
    %v1163 = vsub.s32 %v1160, %v1162
    %v1164 = vrot.slane %v1150, %v1163
    %v1165 = vcombine.high %v1157, %v1157
    %v1166 = vcombine.high %v1164, %v1164
    %v1168 = vunpack.c.l.s4 1966171168
    %v1169 = vunpack.c.0.s8 %v1168
    %v1170 = vlaneseq
    %v1171 = vshrl.u32 %v1170, 7
    %v1172 = vsub.s32 %v1169, %v1171
    %v1173 = vrot.slane %v1157, %v1172
    %v1175 = vunpack.c.l.s4 1966171168
    %v1176 = vunpack.c.0.s8 %v1175
    %v1177 = vlaneseq
    %v1178 = vshrl.u32 %v1177, 7
    %v1179 = vsub.s32 %v1176, %v1178
    %v1180 = vrot.slane %v1164, %v1179
    %v1182 = vunpack.c.l.s4 1966171168
    %v1183 = vunpack.c.0.s8 %v1182
    %v1184 = vlaneseq
    %v1185 = vshrl.u32 %v1184, 7
    %v1186 = vsub.s32 %v1183, %v1185
    %v1187 = vrot.slane %v1165, %v1186
    %v1189 = vunpack.c.l.s4 1966171168
    %v1190 = vunpack.c.0.s8 %v1189
    %v1191 = vlaneseq
    %v1192 = vshrl.u32 %v1191, 7
    %v1193 = vsub.s32 %v1190, %v1192
    %v1194 = vrot.slane %v1166, %v1193
    %v1195 = vcombine.high %v1173, %v1173
    %v1196 = vcombine.high %v1180, %v1180
    %v1197 = vcombine.high %v1187, %v1187
    %v1198 = vcombine.high %v1194, %v1194
    %v1200 = vunpack.c.l.s4 1966171168
    %v1201 = vunpack.c.0.s8 %v1200
    %v1202 = vlaneseq
    %v1203 = vshrl.u32 %v1202, 7
    %v1204 = vsub.s32 %v1201, %v1203
    %v1205 = vrot.slane %v808, %v1204
    %v1207 = vunpack.c.l.s4 1966171168
    %v1208 = vunpack.c.0.s8 %v1207
    %v1209 = vlaneseq
    %v1210 = vshrl.u32 %v1209, 7
    %v1211 = vsub.s32 %v1208, %v1210
    %v1212 = vrot.slane %v1205, %v1211
    %1213 = vxpose.xlu0.b32.start [1/16] %v573, 128
    %1214 = vxpose.xlu0.b32.cont [2/16] %v578, 128
    %1215 = vxpose.xlu0.b32.cont [3/16] 0.0, 128
    %1216 = vxpose.xlu0.b32.cont [4/16] 0.0, 128
    %1217 = vxpose.xlu0.b32.cont [5/16] 0.0, 128
    %1218 = vxpose.xlu0.b32.cont [6/16] 0.0, 128
    %1219 = vxpose.xlu0.b32.cont [7/16] 0.0, 128
    %1220 = vxpose.xlu0.b32.cont [8/16] 0.0, 128
    %1221 = vxpose.xlu0.b32.cont [9/16] 0.0, 128
    %1222 = vxpose.xlu0.b32.cont [10/16] 0.0, 128
    %1223 = vxpose.xlu0.b32.cont [11/16] 0.0, 128
    %1224 = vxpose.xlu0.b32.cont [12/16] 0.0, 128
    %1225 = vxpose.xlu0.b32.cont [13/16] 0.0, 128
    %1226 = vxpose.xlu0.b32.cont [14/16] 0.0, 128
    %1227 = vxpose.xlu0.b32.cont [15/16] 0.0, 128
    %1228 = vxpose.xlu0.b32.end [16/16] 0.0, 128
    %v1229 = vpop.trf.xlu0
    %v1230 = vpop.trf.xlu0
    %v1231 = vpop.trf.xlu0
    %v1232 = vpop.trf.xlu0
    %v1233 = vpop.trf.xlu0
    %v1234 = vpop.trf.xlu0
    %v1235 = vpop.trf.xlu0
    %v1236 = vpop.trf.xlu0
    %v1237 = vpop.trf.xlu0
    %v1238 = vpop.trf.xlu0
    %v1239 = vpop.trf.xlu0
    %v1240 = vpop.trf.xlu0
    %v1241 = vpop.trf.xlu0
    %v1242 = vpop.trf.xlu0
    %v1243 = vpop.trf.xlu0
    %v1244 = vpop.trf.xlu0
    %1245 = vxpose.xlu0.b32.start [1/16] %v583, 128
    %1246 = vxpose.xlu0.b32.cont [2/16] %v588, 128
    %1247 = vxpose.xlu0.b32.cont [3/16] 0.0, 128
    %1248 = vxpose.xlu0.b32.cont [4/16] 0.0, 128
    %1249 = vxpose.xlu0.b32.cont [5/16] 0.0, 128
    %1250 = vxpose.xlu0.b32.cont [6/16] 0.0, 128
    %1251 = vxpose.xlu0.b32.cont [7/16] 0.0, 128
    %1252 = vxpose.xlu0.b32.cont [8/16] 0.0, 128
    %1253 = vxpose.xlu0.b32.cont [9/16] 0.0, 128
    %1254 = vxpose.xlu0.b32.cont [10/16] 0.0, 128
    %1255 = vxpose.xlu0.b32.cont [11/16] 0.0, 128
    %1256 = vxpose.xlu0.b32.cont [12/16] 0.0, 128
    %1257 = vxpose.xlu0.b32.cont [13/16] 0.0, 128
    %1258 = vxpose.xlu0.b32.cont [14/16] 0.0, 128
    %1259 = vxpose.xlu0.b32.cont [15/16] 0.0, 128
    %1260 = vxpose.xlu0.b32.end [16/16] 0.0, 128
    %v1261 = vpop.trf.xlu0
    %v1262 = vpop.trf.xlu0
    %v1263 = vpop.trf.xlu0
    %v1264 = vpop.trf.xlu0
    %v1265 = vpop.trf.xlu0
    %v1266 = vpop.trf.xlu0
    %v1267 = vpop.trf.xlu0
    %v1268 = vpop.trf.xlu0
    %v1269 = vpop.trf.xlu0
    %v1270 = vpop.trf.xlu0
    %v1271 = vpop.trf.xlu0
    %v1272 = vpop.trf.xlu0
    %v1273 = vpop.trf.xlu0
    %v1274 = vpop.trf.xlu0
    %v1275 = vpop.trf.xlu0
    %v1276 = vpop.trf.xlu0
    %1277 = vxpose.xlu0.b32.start [1/16] %v593, 128
    %1278 = vxpose.xlu0.b32.cont [2/16] %v598, 128
    %1279 = vxpose.xlu0.b32.cont [3/16] 0.0, 128
    %1280 = vxpose.xlu0.b32.cont [4/16] 0.0, 128
    %1281 = vxpose.xlu0.b32.cont [5/16] 0.0, 128
    %1282 = vxpose.xlu0.b32.cont [6/16] 0.0, 128
    %1283 = vxpose.xlu0.b32.cont [7/16] 0.0, 128
    %1284 = vxpose.xlu0.b32.cont [8/16] 0.0, 128
    %1285 = vxpose.xlu0.b32.cont [9/16] 0.0, 128
    %1286 = vxpose.xlu0.b32.cont [10/16] 0.0, 128
    %1287 = vxpose.xlu0.b32.cont [11/16] 0.0, 128
    %1288 = vxpose.xlu0.b32.cont [12/16] 0.0, 128
    %1289 = vxpose.xlu0.b32.cont [13/16] 0.0, 128
    %1290 = vxpose.xlu0.b32.cont [14/16] 0.0, 128
    %1291 = vxpose.xlu0.b32.cont [15/16] 0.0, 128
    %1292 = vxpose.xlu0.b32.end [16/16] 0.0, 128
    %v1293 = vpop.trf.xlu0
    %v1294 = vpop.trf.xlu0
    %v1295 = vpop.trf.xlu0
    %v1296 = vpop.trf.xlu0
    %v1297 = vpop.trf.xlu0
    %v1298 = vpop.trf.xlu0
    %v1299 = vpop.trf.xlu0
    %v1300 = vpop.trf.xlu0
    %v1301 = vpop.trf.xlu0
    %v1302 = vpop.trf.xlu0
    %v1303 = vpop.trf.xlu0
    %v1304 = vpop.trf.xlu0
    %v1305 = vpop.trf.xlu0
    %v1306 = vpop.trf.xlu0
    %v1307 = vpop.trf.xlu0
    %v1308 = vpop.trf.xlu0
    %1309 = vxpose.xlu0.b32.start [1/16] %v603, 128
    %1310 = vxpose.xlu0.b32.cont [2/16] %v608, 128
    %1311 = vxpose.xlu0.b32.cont [3/16] 0.0, 128
    %1312 = vxpose.xlu0.b32.cont [4/16] 0.0, 128
    %1313 = vxpose.xlu0.b32.cont [5/16] 0.0, 128
    %1314 = vxpose.xlu0.b32.cont [6/16] 0.0, 128
    %1315 = vxpose.xlu0.b32.cont [7/16] 0.0, 128
    %1316 = vxpose.xlu0.b32.cont [8/16] 0.0, 128
    %1317 = vxpose.xlu0.b32.cont [9/16] 0.0, 128
    %1318 = vxpose.xlu0.b32.cont [10/16] 0.0, 128
    %1319 = vxpose.xlu0.b32.cont [11/16] 0.0, 128
    %1320 = vxpose.xlu0.b32.cont [12/16] 0.0, 128
    %1321 = vxpose.xlu0.b32.cont [13/16] 0.0, 128
    %1322 = vxpose.xlu0.b32.cont [14/16] 0.0, 128
    %1323 = vxpose.xlu0.b32.cont [15/16] 0.0, 128
    %1324 = vxpose.xlu0.b32.end [16/16] 0.0, 128
    %v1325 = vpop.trf.xlu0
    %v1326 = vpop.trf.xlu0
    %v1327 = vpop.trf.xlu0
    %v1328 = vpop.trf.xlu0
    %v1329 = vpop.trf.xlu0
    %v1330 = vpop.trf.xlu0
    %v1331 = vpop.trf.xlu0
    %v1332 = vpop.trf.xlu0
    %v1333 = vpop.trf.xlu0
    %v1334 = vpop.trf.xlu0
    %v1335 = vpop.trf.xlu0
    %v1336 = vpop.trf.xlu0
    %v1337 = vpop.trf.xlu0
    %v1338 = vpop.trf.xlu0
    %v1339 = vpop.trf.xlu0
    %v1340 = vpop.trf.xlu0
    %1341 = vxpose.xlu0.b32.start [1/16] %v613, 128
    %1342 = vxpose.xlu0.b32.cont [2/16] %v618, 128
    %1343 = vxpose.xlu0.b32.cont [3/16] 0.0, 128
    %1344 = vxpose.xlu0.b32.cont [4/16] 0.0, 128
    %1345 = vxpose.xlu0.b32.cont [5/16] 0.0, 128
    %1346 = vxpose.xlu0.b32.cont [6/16] 0.0, 128
    %1347 = vxpose.xlu0.b32.cont [7/16] 0.0, 128
    %1348 = vxpose.xlu0.b32.cont [8/16] 0.0, 128
    %1349 = vxpose.xlu0.b32.cont [9/16] 0.0, 128
    %1350 = vxpose.xlu0.b32.cont [10/16] 0.0, 128
    %1351 = vxpose.xlu0.b32.cont [11/16] 0.0, 128
    %1352 = vxpose.xlu0.b32.cont [12/16] 0.0, 128
    %1353 = vxpose.xlu0.b32.cont [13/16] 0.0, 128
    %1354 = vxpose.xlu0.b32.cont [14/16] 0.0, 128
    %1355 = vxpose.xlu0.b32.cont [15/16] 0.0, 128
    %1356 = vxpose.xlu0.b32.end [16/16] 0.0, 128
    %v1357 = vpop.trf.xlu0
    %v1358 = vpop.trf.xlu0
    %v1359 = vpop.trf.xlu0
    %v1360 = vpop.trf.xlu0
    %v1361 = vpop.trf.xlu0
    %v1362 = vpop.trf.xlu0
    %v1363 = vpop.trf.xlu0
    %v1364 = vpop.trf.xlu0
    %v1365 = vpop.trf.xlu0
    %v1366 = vpop.trf.xlu0
    %v1367 = vpop.trf.xlu0
    %v1368 = vpop.trf.xlu0
    %v1369 = vpop.trf.xlu0
    %v1370 = vpop.trf.xlu0
    %v1371 = vpop.trf.xlu0
    %v1372 = vpop.trf.xlu0
    %1373 = vxpose.xlu0.b32.start [1/16] %v623, 128
    %1374 = vxpose.xlu0.b32.cont [2/16] %v628, 128
    %1375 = vxpose.xlu0.b32.cont [3/16] 0.0, 128
    %1376 = vxpose.xlu0.b32.cont [4/16] 0.0, 128
    %1377 = vxpose.xlu0.b32.cont [5/16] 0.0, 128
    %1378 = vxpose.xlu0.b32.cont [6/16] 0.0, 128
    %1379 = vxpose.xlu0.b32.cont [7/16] 0.0, 128
    %1380 = vxpose.xlu0.b32.cont [8/16] 0.0, 128
    %1381 = vxpose.xlu0.b32.cont [9/16] 0.0, 128
    %1382 = vxpose.xlu0.b32.cont [10/16] 0.0, 128
    %1383 = vxpose.xlu0.b32.cont [11/16] 0.0, 128
    %1384 = vxpose.xlu0.b32.cont [12/16] 0.0, 128
    %1385 = vxpose.xlu0.b32.cont [13/16] 0.0, 128
    %1386 = vxpose.xlu0.b32.cont [14/16] 0.0, 128
    %1387 = vxpose.xlu0.b32.cont [15/16] 0.0, 128
    %1388 = vxpose.xlu0.b32.end [16/16] 0.0, 128
    %v1389 = vpop.trf.xlu0
    %v1390 = vpop.trf.xlu0
    %v1391 = vpop.trf.xlu0
    %v1392 = vpop.trf.xlu0
    %v1393 = vpop.trf.xlu0
    %v1394 = vpop.trf.xlu0
    %v1395 = vpop.trf.xlu0
    %v1396 = vpop.trf.xlu0
    %v1397 = vpop.trf.xlu0
    %v1398 = vpop.trf.xlu0
    %v1399 = vpop.trf.xlu0
    %v1400 = vpop.trf.xlu0
    %v1401 = vpop.trf.xlu0
    %v1402 = vpop.trf.xlu0
    %v1403 = vpop.trf.xlu0
    %v1404 = vpop.trf.xlu0
    %v1417 = vcombine.high %v1229, %v1229
    %v1419 = vunpack.c.l.s4 1966171168
    %v1420 = vunpack.c.0.s8 %v1419
    %v1421 = vlaneseq
    %v1422 = vshrl.u32 %v1421, 7
    %v1423 = vsub.s32 %v1420, %v1422
    %v1424 = vrot.slane %v1229, %v1423
    %v1426 = vunpack.c.l.s4 1966171168
    %v1427 = vunpack.c.0.s8 %v1426
    %v1428 = vlaneseq
    %v1429 = vshrl.u32 %v1428, 7
    %v1430 = vsub.s32 %v1427, %v1429
    %v1431 = vrot.slane %v1417, %v1430
    %v1432 = vcombine.high %v1424, %v1424
    %v1433 = vcombine.high %v1431, %v1431
    %v1435 = vunpack.c.l.s4 1966171168
    %v1436 = vunpack.c.0.s8 %v1435
    %v1437 = vlaneseq
    %v1438 = vshrl.u32 %v1437, 7
    %v1439 = vsub.s32 %v1436, %v1438
    %v1440 = vrot.slane %v1424, %v1439
    %v1442 = vunpack.c.l.s4 1966171168
    %v1443 = vunpack.c.0.s8 %v1442
    %v1444 = vlaneseq
    %v1445 = vshrl.u32 %v1444, 7
    %v1446 = vsub.s32 %v1443, %v1445
    %v1447 = vrot.slane %v1431, %v1446
    %v1449 = vunpack.c.l.s4 1966171168
    %v1450 = vunpack.c.0.s8 %v1449
    %v1451 = vlaneseq
    %v1452 = vshrl.u32 %v1451, 7
    %v1453 = vsub.s32 %v1450, %v1452
    %v1454 = vrot.slane %v1432, %v1453
    %v1456 = vunpack.c.l.s4 1966171168
    %v1457 = vunpack.c.0.s8 %v1456
    %v1458 = vlaneseq
    %v1459 = vshrl.u32 %v1458, 7
    %v1460 = vsub.s32 %v1457, %v1459
    %v1461 = vrot.slane %v1433, %v1460
    %v1462 = vcombine.high %v1440, %v1440
    %v1463 = vcombine.high %v1447, %v1447
    %v1464 = vcombine.high %v1454, %v1454
    %v1465 = vcombine.high %v1461, %v1461
    %v1467 = vunpack.c.l.s4 1966171168
    %v1468 = vunpack.c.0.s8 %v1467
    %v1469 = vlaneseq
    %v1470 = vshrl.u32 %v1469, 7
    %v1471 = vsub.s32 %v1468, %v1470
    %v1472 = vrot.slane %v1230, %v1471
    %v1474 = vunpack.c.l.s4 1966171168
    %v1475 = vunpack.c.0.s8 %v1474
    %v1476 = vlaneseq
    %v1477 = vshrl.u32 %v1476, 7
    %v1478 = vsub.s32 %v1475, %v1477
    %v1479 = vrot.slane %v1472, %v1478
    %v1480 = vcombine.high %v1261, %v1261
    %v1482 = vunpack.c.l.s4 1966171168
    %v1483 = vunpack.c.0.s8 %v1482
    %v1484 = vlaneseq
    %v1485 = vshrl.u32 %v1484, 7
    %v1486 = vsub.s32 %v1483, %v1485
    %v1487 = vrot.slane %v1261, %v1486
    %v1489 = vunpack.c.l.s4 1966171168
    %v1490 = vunpack.c.0.s8 %v1489
    %v1491 = vlaneseq
    %v1492 = vshrl.u32 %v1491, 7
    %v1493 = vsub.s32 %v1490, %v1492
    %v1494 = vrot.slane %v1480, %v1493
    %v1495 = vcombine.high %v1487, %v1487
    %v1496 = vcombine.high %v1494, %v1494
    %v1498 = vunpack.c.l.s4 1966171168
    %v1499 = vunpack.c.0.s8 %v1498
    %v1500 = vlaneseq
    %v1501 = vshrl.u32 %v1500, 7
    %v1502 = vsub.s32 %v1499, %v1501
    %v1503 = vrot.slane %v1487, %v1502
    %v1505 = vunpack.c.l.s4 1966171168
    %v1506 = vunpack.c.0.s8 %v1505
    %v1507 = vlaneseq
    %v1508 = vshrl.u32 %v1507, 7
    %v1509 = vsub.s32 %v1506, %v1508
    %v1510 = vrot.slane %v1494, %v1509
    %v1512 = vunpack.c.l.s4 1966171168
    %v1513 = vunpack.c.0.s8 %v1512
    %v1514 = vlaneseq
    %v1515 = vshrl.u32 %v1514, 7
    %v1516 = vsub.s32 %v1513, %v1515
    %v1517 = vrot.slane %v1495, %v1516
    %v1519 = vunpack.c.l.s4 1966171168
    %v1520 = vunpack.c.0.s8 %v1519
    %v1521 = vlaneseq
    %v1522 = vshrl.u32 %v1521, 7
    %v1523 = vsub.s32 %v1520, %v1522
    %v1524 = vrot.slane %v1496, %v1523
    %v1525 = vcombine.high %v1503, %v1503
    %v1526 = vcombine.high %v1510, %v1510
    %v1527 = vcombine.high %v1517, %v1517
    %v1528 = vcombine.high %v1524, %v1524
    %v1530 = vunpack.c.l.s4 1966171168
    %v1531 = vunpack.c.0.s8 %v1530
    %v1532 = vlaneseq
    %v1533 = vshrl.u32 %v1532, 7
    %v1534 = vsub.s32 %v1531, %v1533
    %v1535 = vrot.slane %v1262, %v1534
    %v1537 = vunpack.c.l.s4 1966171168
    %v1538 = vunpack.c.0.s8 %v1537
    %v1539 = vlaneseq
    %v1540 = vshrl.u32 %v1539, 7
    %v1541 = vsub.s32 %v1538, %v1540
    %v1542 = vrot.slane %v1535, %v1541
    %v1543 = vcombine.high %v1293, %v1293
    %v1545 = vunpack.c.l.s4 1966171168
    %v1546 = vunpack.c.0.s8 %v1545
    %v1547 = vlaneseq
    %v1548 = vshrl.u32 %v1547, 7
    %v1549 = vsub.s32 %v1546, %v1548
    %v1550 = vrot.slane %v1293, %v1549
    %v1552 = vunpack.c.l.s4 1966171168
    %v1553 = vunpack.c.0.s8 %v1552
    %v1554 = vlaneseq
    %v1555 = vshrl.u32 %v1554, 7
    %v1556 = vsub.s32 %v1553, %v1555
    %v1557 = vrot.slane %v1543, %v1556
    %v1558 = vcombine.high %v1550, %v1550
    %v1559 = vcombine.high %v1557, %v1557
    %v1561 = vunpack.c.l.s4 1966171168
    %v1562 = vunpack.c.0.s8 %v1561
    %v1563 = vlaneseq
    %v1564 = vshrl.u32 %v1563, 7
    %v1565 = vsub.s32 %v1562, %v1564
    %v1566 = vrot.slane %v1550, %v1565
    %v1568 = vunpack.c.l.s4 1966171168
    %v1569 = vunpack.c.0.s8 %v1568
    %v1570 = vlaneseq
    %v1571 = vshrl.u32 %v1570, 7
    %v1572 = vsub.s32 %v1569, %v1571
    %v1573 = vrot.slane %v1557, %v1572
    %v1575 = vunpack.c.l.s4 1966171168
    %v1576 = vunpack.c.0.s8 %v1575
    %v1577 = vlaneseq
    %v1578 = vshrl.u32 %v1577, 7
    %v1579 = vsub.s32 %v1576, %v1578
    %v1580 = vrot.slane %v1558, %v1579
    %v1582 = vunpack.c.l.s4 1966171168
    %v1583 = vunpack.c.0.s8 %v1582
    %v1584 = vlaneseq
    %v1585 = vshrl.u32 %v1584, 7
    %v1586 = vsub.s32 %v1583, %v1585
    %v1587 = vrot.slane %v1559, %v1586
    %v1588 = vcombine.high %v1566, %v1566
    %v1589 = vcombine.high %v1573, %v1573
    %v1590 = vcombine.high %v1580, %v1580
    %v1591 = vcombine.high %v1587, %v1587
    %v1593 = vunpack.c.l.s4 1966171168
    %v1594 = vunpack.c.0.s8 %v1593
    %v1595 = vlaneseq
    %v1596 = vshrl.u32 %v1595, 7
    %v1597 = vsub.s32 %v1594, %v1596
    %v1598 = vrot.slane %v1294, %v1597
    %v1600 = vunpack.c.l.s4 1966171168
    %v1601 = vunpack.c.0.s8 %v1600
    %v1602 = vlaneseq
    %v1603 = vshrl.u32 %v1602, 7
    %v1604 = vsub.s32 %v1601, %v1603
    %v1605 = vrot.slane %v1598, %v1604
    %v1606 = vcombine.high %v1325, %v1325
    %v1608 = vunpack.c.l.s4 1966171168
    %v1609 = vunpack.c.0.s8 %v1608
    %v1610 = vlaneseq
    %v1611 = vshrl.u32 %v1610, 7
    %v1612 = vsub.s32 %v1609, %v1611
    %v1613 = vrot.slane %v1325, %v1612
    %v1615 = vunpack.c.l.s4 1966171168
    %v1616 = vunpack.c.0.s8 %v1615
    %v1617 = vlaneseq
    %v1618 = vshrl.u32 %v1617, 7
    %v1619 = vsub.s32 %v1616, %v1618
    %v1620 = vrot.slane %v1606, %v1619
    %v1621 = vcombine.high %v1613, %v1613
    %v1622 = vcombine.high %v1620, %v1620
    %v1624 = vunpack.c.l.s4 1966171168
    %v1625 = vunpack.c.0.s8 %v1624
    %v1626 = vlaneseq
    %v1627 = vshrl.u32 %v1626, 7
    %v1628 = vsub.s32 %v1625, %v1627
    %v1629 = vrot.slane %v1613, %v1628
    %v1631 = vunpack.c.l.s4 1966171168
    %v1632 = vunpack.c.0.s8 %v1631
    %v1633 = vlaneseq
    %v1634 = vshrl.u32 %v1633, 7
    %v1635 = vsub.s32 %v1632, %v1634
    %v1636 = vrot.slane %v1620, %v1635
    %v1638 = vunpack.c.l.s4 1966171168
    %v1639 = vunpack.c.0.s8 %v1638
    %v1640 = vlaneseq
    %v1641 = vshrl.u32 %v1640, 7
    %v1642 = vsub.s32 %v1639, %v1641
    %v1643 = vrot.slane %v1621, %v1642
    %v1645 = vunpack.c.l.s4 1966171168
    %v1646 = vunpack.c.0.s8 %v1645
    %v1647 = vlaneseq
    %v1648 = vshrl.u32 %v1647, 7
    %v1649 = vsub.s32 %v1646, %v1648
    %v1650 = vrot.slane %v1622, %v1649
    %v1651 = vcombine.high %v1629, %v1629
    %v1652 = vcombine.high %v1636, %v1636
    %v1653 = vcombine.high %v1643, %v1643
    %v1654 = vcombine.high %v1650, %v1650
    %v1656 = vunpack.c.l.s4 1966171168
    %v1657 = vunpack.c.0.s8 %v1656
    %v1658 = vlaneseq
    %v1659 = vshrl.u32 %v1658, 7
    %v1660 = vsub.s32 %v1657, %v1659
    %v1661 = vrot.slane %v1326, %v1660
    %v1663 = vunpack.c.l.s4 1966171168
    %v1664 = vunpack.c.0.s8 %v1663
    %v1665 = vlaneseq
    %v1666 = vshrl.u32 %v1665, 7
    %v1667 = vsub.s32 %v1664, %v1666
    %v1668 = vrot.slane %v1661, %v1667
    %v1669 = vcombine.high %v1357, %v1357
    %v1671 = vunpack.c.l.s4 1966171168
    %v1672 = vunpack.c.0.s8 %v1671
    %v1673 = vlaneseq
    %v1674 = vshrl.u32 %v1673, 7
    %v1675 = vsub.s32 %v1672, %v1674
    %v1676 = vrot.slane %v1357, %v1675
    %v1678 = vunpack.c.l.s4 1966171168
    %v1679 = vunpack.c.0.s8 %v1678
    %v1680 = vlaneseq
    %v1681 = vshrl.u32 %v1680, 7
    %v1682 = vsub.s32 %v1679, %v1681
    %v1683 = vrot.slane %v1669, %v1682
    %v1684 = vcombine.high %v1676, %v1676
    %v1685 = vcombine.high %v1683, %v1683
    %v1687 = vunpack.c.l.s4 1966171168
    %v1688 = vunpack.c.0.s8 %v1687
    %v1689 = vlaneseq
    %v1690 = vshrl.u32 %v1689, 7
    %v1691 = vsub.s32 %v1688, %v1690
    %v1692 = vrot.slane %v1676, %v1691
    %v1694 = vunpack.c.l.s4 1966171168
    %v1695 = vunpack.c.0.s8 %v1694
    %v1696 = vlaneseq
    %v1697 = vshrl.u32 %v1696, 7
    %v1698 = vsub.s32 %v1695, %v1697
    %v1699 = vrot.slane %v1683, %v1698
    %v1701 = vunpack.c.l.s4 1966171168
    %v1702 = vunpack.c.0.s8 %v1701
    %v1703 = vlaneseq
    %v1704 = vshrl.u32 %v1703, 7
    %v1705 = vsub.s32 %v1702, %v1704
    %v1706 = vrot.slane %v1684, %v1705
    %v1708 = vunpack.c.l.s4 1966171168
    %v1709 = vunpack.c.0.s8 %v1708
    %v1710 = vlaneseq
    %v1711 = vshrl.u32 %v1710, 7
    %v1712 = vsub.s32 %v1709, %v1711
    %v1713 = vrot.slane %v1685, %v1712
    %v1714 = vcombine.high %v1692, %v1692
    %v1715 = vcombine.high %v1699, %v1699
    %v1716 = vcombine.high %v1706, %v1706
    %v1717 = vcombine.high %v1713, %v1713
    %v1719 = vunpack.c.l.s4 1966171168
    %v1720 = vunpack.c.0.s8 %v1719
    %v1721 = vlaneseq
    %v1722 = vshrl.u32 %v1721, 7
    %v1723 = vsub.s32 %v1720, %v1722
    %v1724 = vrot.slane %v1358, %v1723
    %v1726 = vunpack.c.l.s4 1966171168
    %v1727 = vunpack.c.0.s8 %v1726
    %v1728 = vlaneseq
    %v1729 = vshrl.u32 %v1728, 7
    %v1730 = vsub.s32 %v1727, %v1729
    %v1731 = vrot.slane %v1724, %v1730
    %v1732 = vcombine.high %v1389, %v1389
    %v1734 = vunpack.c.l.s4 1966171168
    %v1735 = vunpack.c.0.s8 %v1734
    %v1736 = vlaneseq
    %v1737 = vshrl.u32 %v1736, 7
    %v1738 = vsub.s32 %v1735, %v1737
    %v1739 = vrot.slane %v1389, %v1738
    %v1741 = vunpack.c.l.s4 1966171168
    %v1742 = vunpack.c.0.s8 %v1741
    %v1743 = vlaneseq
    %v1744 = vshrl.u32 %v1743, 7
    %v1745 = vsub.s32 %v1742, %v1744
    %v1746 = vrot.slane %v1732, %v1745
    %v1747 = vcombine.high %v1739, %v1739
    %v1748 = vcombine.high %v1746, %v1746
    %v1750 = vunpack.c.l.s4 1966171168
    %v1751 = vunpack.c.0.s8 %v1750
    %v1752 = vlaneseq
    %v1753 = vshrl.u32 %v1752, 7
    %v1754 = vsub.s32 %v1751, %v1753
    %v1755 = vrot.slane %v1739, %v1754
    %v1757 = vunpack.c.l.s4 1966171168
    %v1758 = vunpack.c.0.s8 %v1757
    %v1759 = vlaneseq
    %v1760 = vshrl.u32 %v1759, 7
    %v1761 = vsub.s32 %v1758, %v1760
    %v1762 = vrot.slane %v1746, %v1761
    %v1764 = vunpack.c.l.s4 1966171168
    %v1765 = vunpack.c.0.s8 %v1764
    %v1766 = vlaneseq
    %v1767 = vshrl.u32 %v1766, 7
    %v1768 = vsub.s32 %v1765, %v1767
    %v1769 = vrot.slane %v1747, %v1768
    %v1771 = vunpack.c.l.s4 1966171168
    %v1772 = vunpack.c.0.s8 %v1771
    %v1773 = vlaneseq
    %v1774 = vshrl.u32 %v1773, 7
    %v1775 = vsub.s32 %v1772, %v1774
    %v1776 = vrot.slane %v1748, %v1775
    %v1777 = vcombine.high %v1755, %v1755
    %v1778 = vcombine.high %v1762, %v1762
    %v1779 = vcombine.high %v1769, %v1769
    %v1780 = vcombine.high %v1776, %v1776
    %v1782 = vunpack.c.l.s4 1966171168
    %v1783 = vunpack.c.0.s8 %v1782
    %v1784 = vlaneseq
    %v1785 = vshrl.u32 %v1784, 7
    %v1786 = vsub.s32 %v1783, %v1785
    %v1787 = vrot.slane %v1390, %v1786
    %v1789 = vunpack.c.l.s4 1966171168
    %v1790 = vunpack.c.0.s8 %v1789
    %v1791 = vlaneseq
    %v1792 = vshrl.u32 %v1791, 7
    %v1793 = vsub.s32 %v1790, %v1792
    %v1794 = vrot.slane %v1787, %v1793
    %v1795 = vld [vmem:[#allocation10] sm:$0xff]
    %v1796 = vld [vmem:[#allocation10 + $0x8] sm:$0xff]
    %v1797 = vcombine.low %v858, %v872
    %v1798 = vcombine.low %v880, %v882
    %v1799 = vcombine.low %v865, %v879
    %v1800 = vcombine.low %v881, %v883
    %v1802 = vunpack.c.l.s4 1966171168
    %v1803 = vunpack.c.0.s8 %v1802
    %v1804 = vlaneseq
    %v1805 = vshrl.u32 %v1804, 7
    %v1806 = vsub.s32 %v1803, %v1805
    %v1807 = vrot.slane %v1797, %v1806
    %v1809 = vunpack.c.l.s4 1966171168
    %v1810 = vunpack.c.0.s8 %v1809
    %v1811 = vlaneseq
    %v1812 = vshrl.u32 %v1811, 7
    %v1813 = vsub.s32 %v1810, %v1812
    %v1814 = vrot.slane %v1798, %v1813
    %v1816 = vunpack.c.l.s4 1966171168
    %v1817 = vunpack.c.0.s8 %v1816
    %v1818 = vlaneseq
    %v1819 = vshrl.u32 %v1818, 7
    %v1820 = vsub.s32 %v1817, %v1819
    %v1821 = vrot.slane %v1799, %v1820
    %v1823 = vunpack.c.l.s4 1966171168
    %v1824 = vunpack.c.0.s8 %v1823
    %v1825 = vlaneseq
    %v1826 = vshrl.u32 %v1825, 7
    %v1827 = vsub.s32 %v1824, %v1826
    %v1828 = vrot.slane %v1800, %v1827
    %v1829 = vcombine.low %v1807, %v1814
    %v1830 = vcombine.low %v1821, %v1828
    %v1832 = vunpack.c.l.s4 1966171168
    %v1833 = vunpack.c.0.s8 %v1832
    %v1834 = vlaneseq
    %v1835 = vshrl.u32 %v1834, 7
    %v1836 = vsub.s32 %v1833, %v1835
    %v1837 = vrot.slane %v1829, %v1836
    %v1839 = vunpack.c.l.s4 1966171168
    %v1840 = vunpack.c.0.s8 %v1839
    %v1841 = vlaneseq
    %v1842 = vshrl.u32 %v1841, 7
    %v1843 = vsub.s32 %v1840, %v1842
    %v1844 = vrot.slane %v1830, %v1843
    %v1845 = vcombine.low %v1837, %v1844
    %v1846 = vcombine.low %v897, %v921
    %v1847 = vcombine.low %v935, %v943
    %v1848 = vcombine.low %v945, %v928
    %v1849 = vcombine.low %v942, %v944
    %v1851 = vunpack.c.l.s4 1966171168
    %v1852 = vunpack.c.0.s8 %v1851
    %v1853 = vlaneseq
    %v1854 = vshrl.u32 %v1853, 7
    %v1855 = vsub.s32 %v1852, %v1854
    %v1856 = vrot.slane %v1846, %v1855
    %v1858 = vunpack.c.l.s4 1966171168
    %v1859 = vunpack.c.0.s8 %v1858
    %v1860 = vlaneseq
    %v1861 = vshrl.u32 %v1860, 7
    %v1862 = vsub.s32 %v1859, %v1861
    %v1863 = vrot.slane %v1847, %v1862
    %v1865 = vunpack.c.l.s4 1966171168
    %v1866 = vunpack.c.0.s8 %v1865
    %v1867 = vlaneseq
    %v1868 = vshrl.u32 %v1867, 7
    %v1869 = vsub.s32 %v1866, %v1868
    %v1870 = vrot.slane %v1848, %v1869
    %v1872 = vunpack.c.l.s4 1966171168
    %v1873 = vunpack.c.0.s8 %v1872
    %v1874 = vlaneseq
    %v1875 = vshrl.u32 %v1874, 7
    %v1876 = vsub.s32 %v1873, %v1875
    %v1877 = vrot.slane %v1849, %v1876
    %v1878 = vcombine.low %v1856, %v1863
    %v1879 = vcombine.low %v1870, %v1877
    %v1881 = vunpack.c.l.s4 1966171168
    %v1882 = vunpack.c.0.s8 %v1881
    %v1883 = vlaneseq
    %v1884 = vshrl.u32 %v1883, 7
    %v1885 = vsub.s32 %v1882, %v1884
    %v1886 = vrot.slane %v1878, %v1885
    %v1888 = vunpack.c.l.s4 1966171168
    %v1889 = vunpack.c.0.s8 %v1888
    %v1890 = vlaneseq
    %v1891 = vshrl.u32 %v1890, 7
    %v1892 = vsub.s32 %v1889, %v1891
    %v1893 = vrot.slane %v1879, %v1892
    %v1894 = vcombine.low %v1886, %v1893
    %v1895 = vcombine.low %v946, %v960
    %v1896 = vcombine.low %v984, %v998
    %v1897 = vcombine.low %v1006, %v1008
    %v1898 = vcombine.low %v991, %v1005
    %v1900 = vunpack.c.l.s4 1966171168
    %v1901 = vunpack.c.0.s8 %v1900
    %v1902 = vlaneseq
    %v1903 = vshrl.u32 %v1902, 7
    %v1904 = vsub.s32 %v1901, %v1903
    %v1905 = vrot.slane %v1895, %v1904
    %v1907 = vunpack.c.l.s4 1966171168
    %v1908 = vunpack.c.0.s8 %v1907
    %v1909 = vlaneseq
    %v1910 = vshrl.u32 %v1909, 7
    %v1911 = vsub.s32 %v1908, %v1910
    %v1912 = vrot.slane %v1896, %v1911
    %v1914 = vunpack.c.l.s4 1966171168
    %v1915 = vunpack.c.0.s8 %v1914
    %v1916 = vlaneseq
    %v1917 = vshrl.u32 %v1916, 7
    %v1918 = vsub.s32 %v1915, %v1917
    %v1919 = vrot.slane %v1897, %v1918
    %v1921 = vunpack.c.l.s4 1966171168
    %v1922 = vunpack.c.0.s8 %v1921
    %v1923 = vlaneseq
    %v1924 = vshrl.u32 %v1923, 7
    %v1925 = vsub.s32 %v1922, %v1924
    %v1926 = vrot.slane %v1898, %v1925
    %v1927 = vcombine.low %v1905, %v1912
    %v1928 = vcombine.low %v1919, %v1926
    %v1930 = vunpack.c.l.s4 1966171168
    %v1931 = vunpack.c.0.s8 %v1930
    %v1932 = vlaneseq
    %v1933 = vshrl.u32 %v1932, 7
    %v1934 = vsub.s32 %v1931, %v1933
    %v1935 = vrot.slane %v1927, %v1934
    %v1937 = vunpack.c.l.s4 1966171168
    %v1938 = vunpack.c.0.s8 %v1937
    %v1939 = vlaneseq
    %v1940 = vshrl.u32 %v1939, 7
    %v1941 = vsub.s32 %v1938, %v1940
    %v1942 = vrot.slane %v1928, %v1941
    %v1943 = vcombine.low %v1935, %v1942
    %v1944 = vcombine.low %v1007, %v1009
    %v1945 = vcombine.low %v1023, %v1047
    %v1946 = vcombine.low %v1061, %v1069
    %v1947 = vcombine.low %v1071, %v1054
    %v1949 = vunpack.c.l.s4 1966171168
    %v1950 = vunpack.c.0.s8 %v1949
    %v1951 = vlaneseq
    %v1952 = vshrl.u32 %v1951, 7
    %v1953 = vsub.s32 %v1950, %v1952
    %v1954 = vrot.slane %v1944, %v1953
    %v1956 = vunpack.c.l.s4 1966171168
    %v1957 = vunpack.c.0.s8 %v1956
    %v1958 = vlaneseq
    %v1959 = vshrl.u32 %v1958, 7
    %v1960 = vsub.s32 %v1957, %v1959
    %v1961 = vrot.slane %v1945, %v1960
    %v1963 = vunpack.c.l.s4 1966171168
    %v1964 = vunpack.c.0.s8 %v1963
    %v1965 = vlaneseq
    %v1966 = vshrl.u32 %v1965, 7
    %v1967 = vsub.s32 %v1964, %v1966
    %v1968 = vrot.slane %v1946, %v1967
    %v1970 = vunpack.c.l.s4 1966171168
    %v1971 = vunpack.c.0.s8 %v1970
    %v1972 = vlaneseq
    %v1973 = vshrl.u32 %v1972, 7
    %v1974 = vsub.s32 %v1971, %v1973
    %v1975 = vrot.slane %v1947, %v1974
    %v1976 = vcombine.low %v1954, %v1961
    %v1977 = vcombine.low %v1968, %v1975
    %v1979 = vunpack.c.l.s4 1966171168
    %v1980 = vunpack.c.0.s8 %v1979
    %v1981 = vlaneseq
    %v1982 = vshrl.u32 %v1981, 7
    %v1983 = vsub.s32 %v1980, %v1982
    %v1984 = vrot.slane %v1976, %v1983
    %v1986 = vunpack.c.l.s4 1966171168
    %v1987 = vunpack.c.0.s8 %v1986
    %v1988 = vlaneseq
    %v1989 = vshrl.u32 %v1988, 7
    %v1990 = vsub.s32 %v1987, %v1989
    %v1991 = vrot.slane %v1977, %v1990
    %v1992 = vcombine.low %v1984, %v1991
    %v1993 = vcombine.low %v1068, %v1070
    %v1994 = vcombine.low %v1072, %v1086
    %v1995 = vcombine.low %v1110, %v1124
    %v1996 = vcombine.low %v1132, %v1134
    %v1998 = vunpack.c.l.s4 1966171168
    %v1999 = vunpack.c.0.s8 %v1998
    %v2000 = vlaneseq
    %v2001 = vshrl.u32 %v2000, 7
    %v2002 = vsub.s32 %v1999, %v2001
    %v2003 = vrot.slane %v1993, %v2002
    %v2005 = vunpack.c.l.s4 1966171168
    %v2006 = vunpack.c.0.s8 %v2005
    %v2007 = vlaneseq
    %v2008 = vshrl.u32 %v2007, 7
    %v2009 = vsub.s32 %v2006, %v2008
    %v2010 = vrot.slane %v1994, %v2009
    %v2012 = vunpack.c.l.s4 1966171168
    %v2013 = vunpack.c.0.s8 %v2012
    %v2014 = vlaneseq
    %v2015 = vshrl.u32 %v2014, 7
    %v2016 = vsub.s32 %v2013, %v2015
    %v2017 = vrot.slane %v1995, %v2016
    %v2019 = vunpack.c.l.s4 1966171168
    %v2020 = vunpack.c.0.s8 %v2019
    %v2021 = vlaneseq
    %v2022 = vshrl.u32 %v2021, 7
    %v2023 = vsub.s32 %v2020, %v2022
    %v2024 = vrot.slane %v1996, %v2023
    %v2025 = vcombine.low %v2003, %v2010
    %v2026 = vcombine.low %v2017, %v2024
    %v2028 = vunpack.c.l.s4 1966171168
    %v2029 = vunpack.c.0.s8 %v2028
    %v2030 = vlaneseq
    %v2031 = vshrl.u32 %v2030, 7
    %v2032 = vsub.s32 %v2029, %v2031
    %v2033 = vrot.slane %v2025, %v2032
    %v2035 = vunpack.c.l.s4 1966171168
    %v2036 = vunpack.c.0.s8 %v2035
    %v2037 = vlaneseq
    %v2038 = vshrl.u32 %v2037, 7
    %v2039 = vsub.s32 %v2036, %v2038
    %v2040 = vrot.slane %v2026, %v2039
    %v2041 = vcombine.low %v2033, %v2040
    %v2042 = vcombine.low %v1117, %v1131
    %v2043 = vcombine.low %v1133, %v1135
    %v2044 = vcombine.low %v1149, %v1173
    %v2045 = vcombine.low %v1187, %v1195
    %v2047 = vunpack.c.l.s4 1966171168
    %v2048 = vunpack.c.0.s8 %v2047
    %v2049 = vlaneseq
    %v2050 = vshrl.u32 %v2049, 7
    %v2051 = vsub.s32 %v2048, %v2050
    %v2052 = vrot.slane %v2042, %v2051
    %v2054 = vunpack.c.l.s4 1966171168
    %v2055 = vunpack.c.0.s8 %v2054
    %v2056 = vlaneseq
    %v2057 = vshrl.u32 %v2056, 7
    %v2058 = vsub.s32 %v2055, %v2057
    %v2059 = vrot.slane %v2043, %v2058
    %v2061 = vunpack.c.l.s4 1966171168
    %v2062 = vunpack.c.0.s8 %v2061
    %v2063 = vlaneseq
    %v2064 = vshrl.u32 %v2063, 7
    %v2065 = vsub.s32 %v2062, %v2064
    %v2066 = vrot.slane %v2044, %v2065
    %v2068 = vunpack.c.l.s4 1966171168
    %v2069 = vunpack.c.0.s8 %v2068
    %v2070 = vlaneseq
    %v2071 = vshrl.u32 %v2070, 7
    %v2072 = vsub.s32 %v2069, %v2071
    %v2073 = vrot.slane %v2045, %v2072
    %v2074 = vcombine.low %v2052, %v2059
    %v2075 = vcombine.low %v2066, %v2073
    %v2077 = vunpack.c.l.s4 1966171168
    %v2078 = vunpack.c.0.s8 %v2077
    %v2079 = vlaneseq
    %v2080 = vshrl.u32 %v2079, 7
    %v2081 = vsub.s32 %v2078, %v2080
    %v2082 = vrot.slane %v2074, %v2081
    %v2084 = vunpack.c.l.s4 1966171168
    %v2085 = vunpack.c.0.s8 %v2084
    %v2086 = vlaneseq
    %v2087 = vshrl.u32 %v2086, 7
    %v2088 = vsub.s32 %v2085, %v2087
    %v2089 = vrot.slane %v2075, %v2088
    %v2090 = vcombine.low %v2082, %v2089
    %v2091 = vcombine.low %v1197, %v1180
    %v2092 = vcombine.low %v1194, %v1196
    %v2093 = vcombine.low %v1198, %v1212
    %v2095 = vunpack.c.l.s4 1966171168
    %v2096 = vunpack.c.0.s8 %v2095
    %v2097 = vlaneseq
    %v2098 = vshrl.u32 %v2097, 7
    %v2099 = vsub.s32 %v2096, %v2098
    %v2100 = vrot.slane %v2091, %v2099
    %v2102 = vunpack.c.l.s4 1966171168
    %v2103 = vunpack.c.0.s8 %v2102
    %v2104 = vlaneseq
    %v2105 = vshrl.u32 %v2104, 7
    %v2106 = vsub.s32 %v2103, %v2105
    %v2107 = vrot.slane %v2092, %v2106
    %v2109 = vunpack.c.l.s4 1966171168
    %v2110 = vunpack.c.0.s8 %v2109
    %v2111 = vlaneseq
    %v2112 = vshrl.u32 %v2111, 7
    %v2113 = vsub.s32 %v2110, %v2112
    %v2114 = vrot.slane %v2093, %v2113
    %v2115 = vcombine.low %v2100, %v2107
    %v2117 = vunpack.c.l.s4 1966171168
    %v2118 = vunpack.c.0.s8 %v2117
    %v2119 = vlaneseq
    %v2120 = vshrl.u32 %v2119, 7
    %v2121 = vsub.s32 %v2118, %v2120
    %v2122 = vrot.slane %v2115, %v2121
    %v2124 = vunpack.c.l.s4 1966171168
    %v2125 = vunpack.c.0.s8 %v2124
    %v2126 = vlaneseq
    %v2127 = vshrl.u32 %v2126, 7
    %v2128 = vsub.s32 %v2125, %v2127
    %v2129 = vrot.slane %v2114, %v2128
    %v2130 = vcombine.low %v2122, %v2129
    %v2131 = vsel %vm287, %v1845, 0
    %v2133 = vsel %vm287, %v1894, 0
    %v2135 = vsel %vm287, %v1943, 0
    %v2137 = vsel %vm287, %v1992, 0
    %v2139 = vsel %vm287, %v2041, 0
    %v2141 = vsel %vm287, %v2090, 0
    %v2143 = vsel %vm287, %v2130, 0
    %2145 = vmatprep.subr.mxu0 0.0
    %2146 = vmatpush1.msra.mxu0 0.0
    %2147 = vmatprep.subr.mxu0 0.0
    %2148 = vmatpush1.msra.mxu0 0.0
    %2149 = vmatprep.subr.mxu0 0.0
    %2150 = vmatpush1.msra.mxu0 0.0
    %2151 = vmatprep.subr.mxu0 0.0
    %2152 = vmatpush1.msra.mxu0 0.0
    %2153 = vmatprep.subr.mxu0 0.0
    %2154 = vmatpush1.msra.mxu0 0.0
    %2155 = vmatprep.subr.mxu0 0.0
    %2156 = vmatpush1.msra.mxu0 0.0
    %2157 = vmatprep.subr.mxu0 0.0
    %2158 = vmatpush1.msra.mxu0 0.0
    %2159 = vmatprep.subr.mxu0 0.0
    %2160 = vmatpush1.msra.mxu0 0.0
    %2161 = vmatprep.subr.mxu0 0.0
    %2162 = vmatpush1.msra.mxu0 0.0
    %2163 = vmatprep.subr.mxu0 0.0
    %2164 = vmatpush1.msra.mxu0 0.0
    %2165 = vmatprep.subr.mxu0 0.0
    %2166 = vmatpush1.msra.mxu0 0.0
    %2167 = vmatprep.subr.mxu0 0.0
    %2168 = vmatpush1.msra.mxu0 0.0
    %2169 = vmatprep.subr.mxu0 0.0
    %2170 = vmatpush1.msra.mxu0 0.0
    %2171 = vmatprep.subr.mxu0 0.0
    %2172 = vmatpush1.msra.mxu0 0.0
    %2173 = vmatprep.subr.mxu0 0.0
    %2174 = vmatpush1.msra.mxu0 %v1796
    %2175 = vmatprep.subr.mxu0 0.0
    %2176 = vmatpush1.msra.mxu0 %v1795
    %2177 = vmatprep.subr.mxu0 0.0
    %2178 = vmatpush2.msra.mxu0 0.0
    %2179 = vmatprep.subr.mxu0 0.0
    %2180 = vmatpush2.msra.mxu0 0.0
    %2181 = vmatprep.subr.mxu0 0.0
    %2182 = vmatpush2.msra.mxu0 0.0
    %2183 = vmatprep.subr.mxu0 0.0
    %2184 = vmatpush2.msra.mxu0 0.0
    %2185 = vmatprep.subr.mxu0 0.0
    %2186 = vmatpush2.msra.mxu0 0.0
    %2187 = vmatprep.subr.mxu0 0.0
    %2188 = vmatpush2.msra.mxu0 0.0
    %2189 = vmatprep.subr.mxu0 0.0
    %2190 = vmatpush2.msra.mxu0 0.0
    %2191 = vmatprep.subr.mxu0 0.0
    %2192 = vmatpush2.msra.mxu0 0.0
    %2193 = vmatprep.subr.mxu0 0.0
    %2194 = vmatpush2.msra.mxu0 0.0
    %2195 = vmatprep.subr.mxu0 0.0
    %2196 = vmatpush2.msra.mxu0 0.0
    %2197 = vmatprep.subr.mxu0 0.0
    %2198 = vmatpush2.msra.mxu0 0.0
    %2199 = vmatprep.subr.mxu0 0.0
    %2200 = vmatpush2.msra.mxu0 0.0
    %2201 = vmatprep.subr.mxu0 0.0
    %2202 = vmatpush2.msra.mxu0 0.0
    %2203 = vmatprep.subr.mxu0 0.0
    %2204 = vmatpush2.msra.mxu0 0.0
    %2205 = vmatprep.subr.mxu0 0.0
    %2206 = vmatpush2.msra.mxu0 0.0
    %2207 = vmatprep.subr.mxu0 0.0
    %2208 = vmatpush2.msra.mxu0 0.0
    %2209 = vmatprep.mubr.f32.mxu0 0.0
    %2210 = vmatmul.mubr.f32.gmra.mxu0 %v2131
    %v2211 = vpop.f32.mrf.mxu0
    %v2212 = vadd.f32 0.0, %v2211
    %v2213 = vpop.f32.mrf.mxu0
    %2214 = vmatprep.mubr.f32.mxu0 0.0
    %2215 = vmatmul.mubr.f32.gmra.mxu0 %v2133
    %v2216 = vpop.f32.mrf.mxu0
    %v2217 = vadd.f32 0.0, %v2216
    %v2218 = vpop.f32.mrf.mxu0
    %2219 = vmatprep.mubr.f32.mxu0 0.0
    %2220 = vmatmul.mubr.f32.gmra.mxu0 %v2135
    %v2221 = vpop.f32.mrf.mxu0
    %v2222 = vadd.f32 0.0, %v2221
    %v2223 = vpop.f32.mrf.mxu0
    %2224 = vmatprep.mubr.f32.mxu0 0.0
    %2225 = vmatmul.mubr.f32.gmra.mxu0 %v2137
    %v2226 = vpop.f32.mrf.mxu0
    %v2227 = vadd.f32 0.0, %v2226
    %v2228 = vpop.f32.mrf.mxu0
    %2229 = vmatprep.mubr.f32.mxu0 0.0
    %2230 = vmatmul.mubr.f32.gmra.mxu0 %v2139
    %v2231 = vpop.f32.mrf.mxu0
    %v2232 = vadd.f32 0.0, %v2231
    %v2233 = vpop.f32.mrf.mxu0
    %2234 = vmatprep.mubr.f32.mxu0 0.0
    %2235 = vmatmul.mubr.f32.gmra.mxu0 %v2141
    %v2236 = vpop.f32.mrf.mxu0
    %v2237 = vadd.f32 0.0, %v2236
    %v2238 = vpop.f32.mrf.mxu0
    %2239 = vmatprep.mubr.f32.mxu0 0.0
    %2240 = vmatmul.mubr.f32.gmra.mxu0 %v2143
    %v2241 = vpop.f32.mrf.mxu0
    %v2242 = vadd.f32 0.0, %v2241
    %v2243 = vpop.f32.mrf.mxu0
    %2244 = vdwg.mxu0
    %v2245 = vld [vmem:[#allocation11] sm:$0xff]
    %v2246 = vld [vmem:[#allocation11 + $0x8] sm:$0xff]
    %v2247 = vcombine.low %v1440, %v1454
    %v2248 = vcombine.low %v1462, %v1464
    %v2249 = vcombine.low %v1447, %v1461
    %v2250 = vcombine.low %v1463, %v1465
    %v2252 = vunpack.c.l.s4 1966171168
    %v2253 = vunpack.c.0.s8 %v2252
    %v2254 = vlaneseq
    %v2255 = vshrl.u32 %v2254, 7
    %v2256 = vsub.s32 %v2253, %v2255
    %v2257 = vrot.slane %v2247, %v2256
    %v2259 = vunpack.c.l.s4 1966171168
    %v2260 = vunpack.c.0.s8 %v2259
    %v2261 = vlaneseq
    %v2262 = vshrl.u32 %v2261, 7
    %v2263 = vsub.s32 %v2260, %v2262
    %v2264 = vrot.slane %v2248, %v2263
    %v2266 = vunpack.c.l.s4 1966171168
    %v2267 = vunpack.c.0.s8 %v2266
    %v2268 = vlaneseq
    %v2269 = vshrl.u32 %v2268, 7
    %v2270 = vsub.s32 %v2267, %v2269
    %v2271 = vrot.slane %v2249, %v2270
    %v2273 = vunpack.c.l.s4 1966171168
    %v2274 = vunpack.c.0.s8 %v2273
    %v2275 = vlaneseq
    %v2276 = vshrl.u32 %v2275, 7
    %v2277 = vsub.s32 %v2274, %v2276
    %v2278 = vrot.slane %v2250, %v2277
    %v2279 = vcombine.low %v2257, %v2264
    %v2280 = vcombine.low %v2271, %v2278
    %v2282 = vunpack.c.l.s4 1966171168
    %v2283 = vunpack.c.0.s8 %v2282
    %v2284 = vlaneseq
    %v2285 = vshrl.u32 %v2284, 7
    %v2286 = vsub.s32 %v2283, %v2285
    %v2287 = vrot.slane %v2279, %v2286
    %v2289 = vunpack.c.l.s4 1966171168
    %v2290 = vunpack.c.0.s8 %v2289
    %v2291 = vlaneseq
    %v2292 = vshrl.u32 %v2291, 7
    %v2293 = vsub.s32 %v2290, %v2292
    %v2294 = vrot.slane %v2280, %v2293
    %v2295 = vcombine.low %v2287, %v2294
    %v2296 = vcombine.low %v1479, %v1503
    %v2297 = vcombine.low %v1517, %v1525
    %v2298 = vcombine.low %v1527, %v1510
    %v2299 = vcombine.low %v1524, %v1526
    %v2301 = vunpack.c.l.s4 1966171168
    %v2302 = vunpack.c.0.s8 %v2301
    %v2303 = vlaneseq
    %v2304 = vshrl.u32 %v2303, 7
    %v2305 = vsub.s32 %v2302, %v2304
    %v2306 = vrot.slane %v2296, %v2305
    %v2308 = vunpack.c.l.s4 1966171168
    %v2309 = vunpack.c.0.s8 %v2308
    %v2310 = vlaneseq
    %v2311 = vshrl.u32 %v2310, 7
    %v2312 = vsub.s32 %v2309, %v2311
    %v2313 = vrot.slane %v2297, %v2312
    %v2315 = vunpack.c.l.s4 1966171168
    %v2316 = vunpack.c.0.s8 %v2315
    %v2317 = vlaneseq
    %v2318 = vshrl.u32 %v2317, 7
    %v2319 = vsub.s32 %v2316, %v2318
    %v2320 = vrot.slane %v2298, %v2319
    %v2322 = vunpack.c.l.s4 1966171168
    %v2323 = vunpack.c.0.s8 %v2322
    %v2324 = vlaneseq
    %v2325 = vshrl.u32 %v2324, 7
    %v2326 = vsub.s32 %v2323, %v2325
    %v2327 = vrot.slane %v2299, %v2326
    %v2328 = vcombine.low %v2306, %v2313
    %v2329 = vcombine.low %v2320, %v2327
    %v2331 = vunpack.c.l.s4 1966171168
    %v2332 = vunpack.c.0.s8 %v2331
    %v2333 = vlaneseq
    %v2334 = vshrl.u32 %v2333, 7
    %v2335 = vsub.s32 %v2332, %v2334
    %v2336 = vrot.slane %v2328, %v2335
    %v2338 = vunpack.c.l.s4 1966171168
    %v2339 = vunpack.c.0.s8 %v2338
    %v2340 = vlaneseq
    %v2341 = vshrl.u32 %v2340, 7
    %v2342 = vsub.s32 %v2339, %v2341
    %v2343 = vrot.slane %v2329, %v2342
    %v2344 = vcombine.low %v2336, %v2343
    %v2345 = vcombine.low %v1528, %v1542
    %v2346 = vcombine.low %v1566, %v1580
    %v2347 = vcombine.low %v1588, %v1590
    %v2348 = vcombine.low %v1573, %v1587
    %v2350 = vunpack.c.l.s4 1966171168
    %v2351 = vunpack.c.0.s8 %v2350
    %v2352 = vlaneseq
    %v2353 = vshrl.u32 %v2352, 7
    %v2354 = vsub.s32 %v2351, %v2353
    %v2355 = vrot.slane %v2345, %v2354
    %v2357 = vunpack.c.l.s4 1966171168
    %v2358 = vunpack.c.0.s8 %v2357
    %v2359 = vlaneseq
    %v2360 = vshrl.u32 %v2359, 7
    %v2361 = vsub.s32 %v2358, %v2360
    %v2362 = vrot.slane %v2346, %v2361
    %v2364 = vunpack.c.l.s4 1966171168
    %v2365 = vunpack.c.0.s8 %v2364
    %v2366 = vlaneseq
    %v2367 = vshrl.u32 %v2366, 7
    %v2368 = vsub.s32 %v2365, %v2367
    %v2369 = vrot.slane %v2347, %v2368
    %v2371 = vunpack.c.l.s4 1966171168
    %v2372 = vunpack.c.0.s8 %v2371
    %v2373 = vlaneseq
    %v2374 = vshrl.u32 %v2373, 7
    %v2375 = vsub.s32 %v2372, %v2374
    %v2376 = vrot.slane %v2348, %v2375
    %v2377 = vcombine.low %v2355, %v2362
    %v2378 = vcombine.low %v2369, %v2376
    %v2380 = vunpack.c.l.s4 1966171168
    %v2381 = vunpack.c.0.s8 %v2380
    %v2382 = vlaneseq
    %v2383 = vshrl.u32 %v2382, 7
    %v2384 = vsub.s32 %v2381, %v2383
    %v2385 = vrot.slane %v2377, %v2384
    %v2387 = vunpack.c.l.s4 1966171168
    %v2388 = vunpack.c.0.s8 %v2387
    %v2389 = vlaneseq
    %v2390 = vshrl.u32 %v2389, 7
    %v2391 = vsub.s32 %v2388, %v2390
    %v2392 = vrot.slane %v2378, %v2391
    %v2393 = vcombine.low %v2385, %v2392
    %v2394 = vcombine.low %v1589, %v1591
    %v2395 = vcombine.low %v1605, %v1629
    %v2396 = vcombine.low %v1643, %v1651
    %v2397 = vcombine.low %v1653, %v1636
    %v2399 = vunpack.c.l.s4 1966171168
    %v2400 = vunpack.c.0.s8 %v2399
    %v2401 = vlaneseq
    %v2402 = vshrl.u32 %v2401, 7
    %v2403 = vsub.s32 %v2400, %v2402
    %v2404 = vrot.slane %v2394, %v2403
    %v2406 = vunpack.c.l.s4 1966171168
    %v2407 = vunpack.c.0.s8 %v2406
    %v2408 = vlaneseq
    %v2409 = vshrl.u32 %v2408, 7
    %v2410 = vsub.s32 %v2407, %v2409
    %v2411 = vrot.slane %v2395, %v2410
    %v2413 = vunpack.c.l.s4 1966171168
    %v2414 = vunpack.c.0.s8 %v2413
    %v2415 = vlaneseq
    %v2416 = vshrl.u32 %v2415, 7
    %v2417 = vsub.s32 %v2414, %v2416
    %v2418 = vrot.slane %v2396, %v2417
    %v2420 = vunpack.c.l.s4 1966171168
    %v2421 = vunpack.c.0.s8 %v2420
    %v2422 = vlaneseq
    %v2423 = vshrl.u32 %v2422, 7
    %v2424 = vsub.s32 %v2421, %v2423
    %v2425 = vrot.slane %v2397, %v2424
    %v2426 = vcombine.low %v2404, %v2411
    %v2427 = vcombine.low %v2418, %v2425
    %v2429 = vunpack.c.l.s4 1966171168
    %v2430 = vunpack.c.0.s8 %v2429
    %v2431 = vlaneseq
    %v2432 = vshrl.u32 %v2431, 7
    %v2433 = vsub.s32 %v2430, %v2432
    %v2434 = vrot.slane %v2426, %v2433
    %v2436 = vunpack.c.l.s4 1966171168
    %v2437 = vunpack.c.0.s8 %v2436
    %v2438 = vlaneseq
    %v2439 = vshrl.u32 %v2438, 7
    %v2440 = vsub.s32 %v2437, %v2439
    %v2441 = vrot.slane %v2427, %v2440
    %v2442 = vcombine.low %v2434, %v2441
    %v2443 = vcombine.low %v1650, %v1652
    %v2444 = vcombine.low %v1654, %v1668
    %v2445 = vcombine.low %v1692, %v1706
    %v2446 = vcombine.low %v1714, %v1716
    %v2448 = vunpack.c.l.s4 1966171168
    %v2449 = vunpack.c.0.s8 %v2448
    %v2450 = vlaneseq
    %v2451 = vshrl.u32 %v2450, 7
    %v2452 = vsub.s32 %v2449, %v2451
    %v2453 = vrot.slane %v2443, %v2452
    %v2455 = vunpack.c.l.s4 1966171168
    %v2456 = vunpack.c.0.s8 %v2455
    %v2457 = vlaneseq
    %v2458 = vshrl.u32 %v2457, 7
    %v2459 = vsub.s32 %v2456, %v2458
    %v2460 = vrot.slane %v2444, %v2459
    %v2462 = vunpack.c.l.s4 1966171168
    %v2463 = vunpack.c.0.s8 %v2462
    %v2464 = vlaneseq
    %v2465 = vshrl.u32 %v2464, 7
    %v2466 = vsub.s32 %v2463, %v2465
    %v2467 = vrot.slane %v2445, %v2466
    %v2469 = vunpack.c.l.s4 1966171168
    %v2470 = vunpack.c.0.s8 %v2469
    %v2471 = vlaneseq
    %v2472 = vshrl.u32 %v2471, 7
    %v2473 = vsub.s32 %v2470, %v2472
    %v2474 = vrot.slane %v2446, %v2473
    %v2475 = vcombine.low %v2453, %v2460
    %v2476 = vcombine.low %v2467, %v2474
    %v2478 = vunpack.c.l.s4 1966171168
    %v2479 = vunpack.c.0.s8 %v2478
    %v2480 = vlaneseq
    %v2481 = vshrl.u32 %v2480, 7
    %v2482 = vsub.s32 %v2479, %v2481
    %v2483 = vrot.slane %v2475, %v2482
    %v2485 = vunpack.c.l.s4 1966171168
    %v2486 = vunpack.c.0.s8 %v2485
    %v2487 = vlaneseq
    %v2488 = vshrl.u32 %v2487, 7
    %v2489 = vsub.s32 %v2486, %v2488
    %v2490 = vrot.slane %v2476, %v2489
    %v2491 = vcombine.low %v2483, %v2490
    %v2492 = vcombine.low %v1699, %v1713
    %v2493 = vcombine.low %v1715, %v1717
    %v2494 = vcombine.low %v1731, %v1755
    %v2495 = vcombine.low %v1769, %v1777
    %v2497 = vunpack.c.l.s4 1966171168
    %v2498 = vunpack.c.0.s8 %v2497
    %v2499 = vlaneseq
    %v2500 = vshrl.u32 %v2499, 7
    %v2501 = vsub.s32 %v2498, %v2500
    %v2502 = vrot.slane %v2492, %v2501
    %v2504 = vunpack.c.l.s4 1966171168
    %v2505 = vunpack.c.0.s8 %v2504
    %v2506 = vlaneseq
    %v2507 = vshrl.u32 %v2506, 7
    %v2508 = vsub.s32 %v2505, %v2507
    %v2509 = vrot.slane %v2493, %v2508
    %v2511 = vunpack.c.l.s4 1966171168
    %v2512 = vunpack.c.0.s8 %v2511
    %v2513 = vlaneseq
    %v2514 = vshrl.u32 %v2513, 7
    %v2515 = vsub.s32 %v2512, %v2514
    %v2516 = vrot.slane %v2494, %v2515
    %v2518 = vunpack.c.l.s4 1966171168
    %v2519 = vunpack.c.0.s8 %v2518
    %v2520 = vlaneseq
    %v2521 = vshrl.u32 %v2520, 7
    %v2522 = vsub.s32 %v2519, %v2521
    %v2523 = vrot.slane %v2495, %v2522
    %v2524 = vcombine.low %v2502, %v2509
    %v2525 = vcombine.low %v2516, %v2523
    %v2527 = vunpack.c.l.s4 1966171168
    %v2528 = vunpack.c.0.s8 %v2527
    %v2529 = vlaneseq
    %v2530 = vshrl.u32 %v2529, 7
    %v2531 = vsub.s32 %v2528, %v2530
    %v2532 = vrot.slane %v2524, %v2531
    %v2534 = vunpack.c.l.s4 1966171168
    %v2535 = vunpack.c.0.s8 %v2534
    %v2536 = vlaneseq
    %v2537 = vshrl.u32 %v2536, 7
    %v2538 = vsub.s32 %v2535, %v2537
    %v2539 = vrot.slane %v2525, %v2538
    %v2540 = vcombine.low %v2532, %v2539
    %v2541 = vcombine.low %v1779, %v1762
    %v2542 = vcombine.low %v1776, %v1778
    %v2543 = vcombine.low %v1780, %v1794
    %v2545 = vunpack.c.l.s4 1966171168
    %v2546 = vunpack.c.0.s8 %v2545
    %v2547 = vlaneseq
    %v2548 = vshrl.u32 %v2547, 7
    %v2549 = vsub.s32 %v2546, %v2548
    %v2550 = vrot.slane %v2541, %v2549
    %v2552 = vunpack.c.l.s4 1966171168
    %v2553 = vunpack.c.0.s8 %v2552
    %v2554 = vlaneseq
    %v2555 = vshrl.u32 %v2554, 7
    %v2556 = vsub.s32 %v2553, %v2555
    %v2557 = vrot.slane %v2542, %v2556
    %v2559 = vunpack.c.l.s4 1966171168
    %v2560 = vunpack.c.0.s8 %v2559
    %v2561 = vlaneseq
    %v2562 = vshrl.u32 %v2561, 7
    %v2563 = vsub.s32 %v2560, %v2562
    %v2564 = vrot.slane %v2543, %v2563
    %v2565 = vcombine.low %v2550, %v2557
    %v2567 = vunpack.c.l.s4 1966171168
    %v2568 = vunpack.c.0.s8 %v2567
    %v2569 = vlaneseq
    %v2570 = vshrl.u32 %v2569, 7
    %v2571 = vsub.s32 %v2568, %v2570
    %v2572 = vrot.slane %v2565, %v2571
    %v2574 = vunpack.c.l.s4 1966171168
    %v2575 = vunpack.c.0.s8 %v2574
    %v2576 = vlaneseq
    %v2577 = vshrl.u32 %v2576, 7
    %v2578 = vsub.s32 %v2575, %v2577
    %v2579 = vrot.slane %v2564, %v2578
    %v2580 = vcombine.low %v2572, %v2579
    %v2581 = vsel %vm287, %v2295, 0
    %v2583 = vsel %vm287, %v2344, 0
    %v2585 = vsel %vm287, %v2393, 0
    %v2587 = vsel %vm287, %v2442, 0
    %v2589 = vsel %vm287, %v2491, 0
    %v2591 = vsel %vm287, %v2540, 0
    %v2593 = vsel %vm287, %v2580, 0
    %2595 = vmatprep.subr.mxu0 0.0
    %2596 = vmatpush1.msra.mxu0 0.0
    %2597 = vmatprep.subr.mxu0 0.0
    %2598 = vmatpush1.msra.mxu0 0.0
    %2599 = vmatprep.subr.mxu0 0.0
    %2600 = vmatpush1.msra.mxu0 0.0
    %2601 = vmatprep.subr.mxu0 0.0
    %2602 = vmatpush1.msra.mxu0 0.0
    %2603 = vmatprep.subr.mxu0 0.0
    %2604 = vmatpush1.msra.mxu0 0.0
    %2605 = vmatprep.subr.mxu0 0.0
    %2606 = vmatpush1.msra.mxu0 0.0
    %2607 = vmatprep.subr.mxu0 0.0
    %2608 = vmatpush1.msra.mxu0 0.0
    %2609 = vmatprep.subr.mxu0 0.0
    %2610 = vmatpush1.msra.mxu0 0.0
    %2611 = vmatprep.subr.mxu0 0.0
    %2612 = vmatpush1.msra.mxu0 0.0
    %2613 = vmatprep.subr.mxu0 0.0
    %2614 = vmatpush1.msra.mxu0 0.0
    %2615 = vmatprep.subr.mxu0 0.0
    %2616 = vmatpush1.msra.mxu0 0.0
    %2617 = vmatprep.subr.mxu0 0.0
    %2618 = vmatpush1.msra.mxu0 0.0
    %2619 = vmatprep.subr.mxu0 0.0
    %2620 = vmatpush1.msra.mxu0 0.0
    %2621 = vmatprep.subr.mxu0 0.0
    %2622 = vmatpush1.msra.mxu0 0.0
    %2623 = vmatprep.subr.mxu0 0.0
    %2624 = vmatpush1.msra.mxu0 %v2246
    %2625 = vmatprep.subr.mxu0 0.0
    %2626 = vmatpush1.msra.mxu0 %v2245
    %2627 = vmatprep.subr.mxu0 0.0
    %2628 = vmatpush2.msra.mxu0 0.0
    %2629 = vmatprep.subr.mxu0 0.0
    %2630 = vmatpush2.msra.mxu0 0.0
    %2631 = vmatprep.subr.mxu0 0.0
    %2632 = vmatpush2.msra.mxu0 0.0
    %2633 = vmatprep.subr.mxu0 0.0
    %2634 = vmatpush2.msra.mxu0 0.0
    %2635 = vmatprep.subr.mxu0 0.0
    %2636 = vmatpush2.msra.mxu0 0.0
    %2637 = vmatprep.subr.mxu0 0.0
    %2638 = vmatpush2.msra.mxu0 0.0
    %2639 = vmatprep.subr.mxu0 0.0
    %2640 = vmatpush2.msra.mxu0 0.0
    %2641 = vmatprep.subr.mxu0 0.0
    %2642 = vmatpush2.msra.mxu0 0.0
    %2643 = vmatprep.subr.mxu0 0.0
    %2644 = vmatpush2.msra.mxu0 0.0
    %2645 = vmatprep.subr.mxu0 0.0
    %2646 = vmatpush2.msra.mxu0 0.0
    %2647 = vmatprep.subr.mxu0 0.0
    %2648 = vmatpush2.msra.mxu0 0.0
    %2649 = vmatprep.subr.mxu0 0.0
    %2650 = vmatpush2.msra.mxu0 0.0
    %2651 = vmatprep.subr.mxu0 0.0
    %2652 = vmatpush2.msra.mxu0 0.0
    %2653 = vmatprep.subr.mxu0 0.0
    %2654 = vmatpush2.msra.mxu0 0.0
    %2655 = vmatprep.subr.mxu0 0.0
    %2656 = vmatpush2.msra.mxu0 0.0
    %2657 = vmatprep.subr.mxu0 0.0
    %2658 = vmatpush2.msra.mxu0 0.0
    %2659 = vmatprep.mubr.f32.mxu0 0.0
    %2660 = vmatmul.mubr.f32.gmra.mxu0 %v2581
    %v2661 = vpop.f32.mrf.mxu0
    %v2662 = vadd.f32 0.0, %v2661
    %v2663 = vpop.f32.mrf.mxu0
    %2664 = vmatprep.mubr.f32.mxu0 0.0
    %2665 = vmatmul.mubr.f32.gmra.mxu0 %v2583
    %v2666 = vpop.f32.mrf.mxu0
    %v2667 = vadd.f32 0.0, %v2666
    %v2668 = vpop.f32.mrf.mxu0
    %2669 = vmatprep.mubr.f32.mxu0 0.0
    %2670 = vmatmul.mubr.f32.gmra.mxu0 %v2585
    %v2671 = vpop.f32.mrf.mxu0
    %v2672 = vadd.f32 0.0, %v2671
    %v2673 = vpop.f32.mrf.mxu0
    %2674 = vmatprep.mubr.f32.mxu0 0.0
    %2675 = vmatmul.mubr.f32.gmra.mxu0 %v2587
    %v2676 = vpop.f32.mrf.mxu0
    %v2677 = vadd.f32 0.0, %v2676
    %v2678 = vpop.f32.mrf.mxu0
    %2679 = vmatprep.mubr.f32.mxu0 0.0
    %2680 = vmatmul.mubr.f32.gmra.mxu0 %v2589
    %v2681 = vpop.f32.mrf.mxu0
    %v2682 = vadd.f32 0.0, %v2681
    %v2683 = vpop.f32.mrf.mxu0
    %2684 = vmatprep.mubr.f32.mxu0 0.0
    %2685 = vmatmul.mubr.f32.gmra.mxu0 %v2591
    %v2686 = vpop.f32.mrf.mxu0
    %v2687 = vadd.f32 0.0, %v2686
    %v2688 = vpop.f32.mrf.mxu0
    %2689 = vmatprep.mubr.f32.mxu0 0.0
    %2690 = vmatmul.mubr.f32.gmra.mxu0 %v2593
    %v2691 = vpop.f32.mrf.mxu0
    %v2692 = vadd.f32 0.0, %v2691
    %v2693 = vpop.f32.mrf.mxu0
    %2694 = vdwg.mxu0
    %v2695 = vsub.f32 %v2212, %v2662
    %v2696 = vsub.f32 %v2217, %v2667
    %v2697 = vsub.f32 %v2222, %v2672
    %v2698 = vsub.f32 %v2227, %v2677
    %v2699 = vsub.f32 %v2232, %v2682
    %v2700 = vsub.f32 %v2237, %v2687
    %v2701 = vsub.f32 %v2242, %v2692
    %2702 = vmatprep.subr.mxu0 0.0
    %2703 = vmatpush1.msra.mxu0 0.0
    %2704 = vmatprep.subr.mxu0 0.0
    %2705 = vmatpush1.msra.mxu0 0.0
    %2706 = vmatprep.subr.mxu0 0.0
    %2707 = vmatpush1.msra.mxu0 0.0
    %2708 = vmatprep.subr.mxu0 0.0
    %2709 = vmatpush1.msra.mxu0 0.0
    %2710 = vmatprep.subr.mxu0 0.0
    %2711 = vmatpush1.msra.mxu0 0.0
    %2712 = vmatprep.subr.mxu0 0.0
    %2713 = vmatpush1.msra.mxu0 0.0
    %2714 = vmatprep.subr.mxu0 0.0
    %2715 = vmatpush1.msra.mxu0 0.0
    %2716 = vmatprep.subr.mxu0 0.0
    %2717 = vmatpush1.msra.mxu0 0.0
    %2718 = vmatprep.subr.mxu0 0.0
    %2719 = vmatpush1.msra.mxu0 0.0
    %2720 = vmatprep.subr.mxu0 0.0
    %2721 = vmatpush1.msra.mxu0 0.0
    %2722 = vmatprep.subr.mxu0 0.0
    %2723 = vmatpush1.msra.mxu0 0.0
    %2724 = vmatprep.subr.mxu0 0.0
    %2725 = vmatpush1.msra.mxu0 0.0
    %2726 = vmatprep.subr.mxu0 0.0
    %2727 = vmatpush1.msra.mxu0 0.0
    %2728 = vmatprep.subr.mxu0 0.0
    %2729 = vmatpush1.msra.mxu0 0.0
    %2730 = vmatprep.subr.mxu0 0.0
    %2731 = vmatpush1.msra.mxu0 %v1796
    %2732 = vmatprep.subr.mxu0 0.0
    %2733 = vmatpush1.msra.mxu0 %v1795
    %2734 = vmatprep.subr.mxu0 0.0
    %2735 = vmatpush2.msra.mxu0 0.0
    %2736 = vmatprep.subr.mxu0 0.0
    %2737 = vmatpush2.msra.mxu0 0.0
    %2738 = vmatprep.subr.mxu0 0.0
    %2739 = vmatpush2.msra.mxu0 0.0
    %2740 = vmatprep.subr.mxu0 0.0
    %2741 = vmatpush2.msra.mxu0 0.0
    %2742 = vmatprep.subr.mxu0 0.0
    %2743 = vmatpush2.msra.mxu0 0.0
    %2744 = vmatprep.subr.mxu0 0.0
    %2745 = vmatpush2.msra.mxu0 0.0
    %2746 = vmatprep.subr.mxu0 0.0
    %2747 = vmatpush2.msra.mxu0 0.0
    %2748 = vmatprep.subr.mxu0 0.0
    %2749 = vmatpush2.msra.mxu0 0.0
    %2750 = vmatprep.subr.mxu0 0.0
    %2751 = vmatpush2.msra.mxu0 0.0
    %2752 = vmatprep.subr.mxu0 0.0
    %2753 = vmatpush2.msra.mxu0 0.0
    %2754 = vmatprep.subr.mxu0 0.0
    %2755 = vmatpush2.msra.mxu0 0.0
    %2756 = vmatprep.subr.mxu0 0.0
    %2757 = vmatpush2.msra.mxu0 0.0
    %2758 = vmatprep.subr.mxu0 0.0
    %2759 = vmatpush2.msra.mxu0 0.0
    %2760 = vmatprep.subr.mxu0 0.0
    %2761 = vmatpush2.msra.mxu0 0.0
    %2762 = vmatprep.subr.mxu0 0.0
    %2763 = vmatpush2.msra.mxu0 0.0
    %2764 = vmatprep.subr.mxu0 0.0
    %2765 = vmatpush2.msra.mxu0 0.0
    %2766 = vmatprep.mubr.f32.mxu0 0.0
    %2767 = vmatmul.mubr.f32.gmra.mxu0 %v2581
    %v2768 = vpop.f32.mrf.mxu0
    %v2769 = vadd.f32 0.0, %v2768
    %v2770 = vpop.f32.mrf.mxu0
    %2771 = vmatprep.mubr.f32.mxu0 0.0
    %2772 = vmatmul.mubr.f32.gmra.mxu0 %v2583
    %v2773 = vpop.f32.mrf.mxu0
    %v2774 = vadd.f32 0.0, %v2773
    %v2775 = vpop.f32.mrf.mxu0
    %2776 = vmatprep.mubr.f32.mxu0 0.0
    %2777 = vmatmul.mubr.f32.gmra.mxu0 %v2585
    %v2778 = vpop.f32.mrf.mxu0
    %v2779 = vadd.f32 0.0, %v2778
    %v2780 = vpop.f32.mrf.mxu0
    %2781 = vmatprep.mubr.f32.mxu0 0.0
    %2782 = vmatmul.mubr.f32.gmra.mxu0 %v2587
    %v2783 = vpop.f32.mrf.mxu0
    %v2784 = vadd.f32 0.0, %v2783
    %v2785 = vpop.f32.mrf.mxu0
    %2786 = vmatprep.mubr.f32.mxu0 0.0
    %2787 = vmatmul.mubr.f32.gmra.mxu0 %v2589
    %v2788 = vpop.f32.mrf.mxu0
    %v2789 = vadd.f32 0.0, %v2788
    %v2790 = vpop.f32.mrf.mxu0
    %2791 = vmatprep.mubr.f32.mxu0 0.0
    %2792 = vmatmul.mubr.f32.gmra.mxu0 %v2591
    %v2793 = vpop.f32.mrf.mxu0
    %v2794 = vadd.f32 0.0, %v2793
    %v2795 = vpop.f32.mrf.mxu0
    %2796 = vmatprep.mubr.f32.mxu0 0.0
    %2797 = vmatmul.mubr.f32.gmra.mxu0 %v2593
    %v2798 = vpop.f32.mrf.mxu0
    %v2799 = vadd.f32 0.0, %v2798
    %v2800 = vpop.f32.mrf.mxu0
    %2801 = vdwg.mxu0
    %2802 = vmatprep.subr.mxu0 0.0
    %2803 = vmatpush1.msra.mxu0 0.0
    %2804 = vmatprep.subr.mxu0 0.0
    %2805 = vmatpush1.msra.mxu0 0.0
    %2806 = vmatprep.subr.mxu0 0.0
    %2807 = vmatpush1.msra.mxu0 0.0
    %2808 = vmatprep.subr.mxu0 0.0
    %2809 = vmatpush1.msra.mxu0 0.0
    %2810 = vmatprep.subr.mxu0 0.0
    %2811 = vmatpush1.msra.mxu0 0.0
    %2812 = vmatprep.subr.mxu0 0.0
    %2813 = vmatpush1.msra.mxu0 0.0
    %2814 = vmatprep.subr.mxu0 0.0
    %2815 = vmatpush1.msra.mxu0 0.0
    %2816 = vmatprep.subr.mxu0 0.0
    %2817 = vmatpush1.msra.mxu0 0.0
    %2818 = vmatprep.subr.mxu0 0.0
    %2819 = vmatpush1.msra.mxu0 0.0
    %2820 = vmatprep.subr.mxu0 0.0
    %2821 = vmatpush1.msra.mxu0 0.0
    %2822 = vmatprep.subr.mxu0 0.0
    %2823 = vmatpush1.msra.mxu0 0.0
    %2824 = vmatprep.subr.mxu0 0.0
    %2825 = vmatpush1.msra.mxu0 0.0
    %2826 = vmatprep.subr.mxu0 0.0
    %2827 = vmatpush1.msra.mxu0 0.0
    %2828 = vmatprep.subr.mxu0 0.0
    %2829 = vmatpush1.msra.mxu0 0.0
    %2830 = vmatprep.subr.mxu0 0.0
    %2831 = vmatpush1.msra.mxu0 %v2246
    %2832 = vmatprep.subr.mxu0 0.0
    %2833 = vmatpush1.msra.mxu0 %v2245
    %2834 = vmatprep.subr.mxu0 0.0
    %2835 = vmatpush2.msra.mxu0 0.0
    %2836 = vmatprep.subr.mxu0 0.0
    %2837 = vmatpush2.msra.mxu0 0.0
    %2838 = vmatprep.subr.mxu0 0.0
    %2839 = vmatpush2.msra.mxu0 0.0
    %2840 = vmatprep.subr.mxu0 0.0
    %2841 = vmatpush2.msra.mxu0 0.0
    %2842 = vmatprep.subr.mxu0 0.0
    %2843 = vmatpush2.msra.mxu0 0.0
    %2844 = vmatprep.subr.mxu0 0.0
    %2845 = vmatpush2.msra.mxu0 0.0
    %2846 = vmatprep.subr.mxu0 0.0
    %2847 = vmatpush2.msra.mxu0 0.0
    %2848 = vmatprep.subr.mxu0 0.0
    %2849 = vmatpush2.msra.mxu0 0.0
    %2850 = vmatprep.subr.mxu0 0.0
    %2851 = vmatpush2.msra.mxu0 0.0
    %2852 = vmatprep.subr.mxu0 0.0
    %2853 = vmatpush2.msra.mxu0 0.0
    %2854 = vmatprep.subr.mxu0 0.0
    %2855 = vmatpush2.msra.mxu0 0.0
    %2856 = vmatprep.subr.mxu0 0.0
    %2857 = vmatpush2.msra.mxu0 0.0
    %2858 = vmatprep.subr.mxu0 0.0
    %2859 = vmatpush2.msra.mxu0 0.0
    %2860 = vmatprep.subr.mxu0 0.0
    %2861 = vmatpush2.msra.mxu0 0.0
    %2862 = vmatprep.subr.mxu0 0.0
    %2863 = vmatpush2.msra.mxu0 0.0
    %2864 = vmatprep.subr.mxu0 0.0
    %2865 = vmatpush2.msra.mxu0 0.0
    %2866 = vmatprep.mubr.f32.mxu0 0.0
    %2867 = vmatmul.mubr.f32.gmra.mxu0 %v2131
    %v2868 = vpop.f32.mrf.mxu0
    %v2869 = vadd.f32 %v2769, %v2868
    %v2870 = vpop.f32.mrf.mxu0
    %2871 = vmatprep.mubr.f32.mxu0 0.0
    %2872 = vmatmul.mubr.f32.gmra.mxu0 %v2133
    %v2873 = vpop.f32.mrf.mxu0
    %v2874 = vadd.f32 %v2774, %v2873
    %v2875 = vpop.f32.mrf.mxu0
    %2876 = vmatprep.mubr.f32.mxu0 0.0
    %2877 = vmatmul.mubr.f32.gmra.mxu0 %v2135
    %v2878 = vpop.f32.mrf.mxu0
    %v2879 = vadd.f32 %v2779, %v2878
    %v2880 = vpop.f32.mrf.mxu0
    %2881 = vmatprep.mubr.f32.mxu0 0.0
    %2882 = vmatmul.mubr.f32.gmra.mxu0 %v2137
    %v2883 = vpop.f32.mrf.mxu0
    %v2884 = vadd.f32 %v2784, %v2883
    %v2885 = vpop.f32.mrf.mxu0
    %2886 = vmatprep.mubr.f32.mxu0 0.0
    %2887 = vmatmul.mubr.f32.gmra.mxu0 %v2139
    %v2888 = vpop.f32.mrf.mxu0
    %v2889 = vadd.f32 %v2789, %v2888
    %v2890 = vpop.f32.mrf.mxu0
    %2891 = vmatprep.mubr.f32.mxu0 0.0
    %2892 = vmatmul.mubr.f32.gmra.mxu0 %v2141
    %v2893 = vpop.f32.mrf.mxu0
    %v2894 = vadd.f32 %v2794, %v2893
    %v2895 = vpop.f32.mrf.mxu0
    %2896 = vmatprep.mubr.f32.mxu0 0.0
    %2897 = vmatmul.mubr.f32.gmra.mxu0 %v2143
    %v2898 = vpop.f32.mrf.mxu0
    %v2899 = vadd.f32 %v2799, %v2898
    %v2900 = vpop.f32.mrf.mxu0
    %2901 = vdwg.mxu0
    %v2902 = vlaneseq
    %v2903 = vshrl.u32 %v2902, 7
    %v2904 = vadd.s32 %v2903, 8
    %v2905 = vadd.s32 %v2903, 16
    %v2906 = vadd.s32 %v2903, 24
    %v2907 = vadd.s32 %v2903, 32
    %v2908 = vadd.s32 %v2903, 40
    %v2909 = vadd.s32 %v2903, 48
    %vm2910 = vcmp.lt.s32.totalorder %v2903, 0
    %v2911 = vsub.s32 0, %v2903
    %v2912 = vsel %vm2910, %v2911, %v2903
    %v2913 = vmul.u32.u64.compose %v2912, 3817748708
    %v2914 = vextract.low.u32 %v2913
    %v2915 = vextract.high.u32 %v2913
    %v2916 = vshrl.u32 %v2915, 3
    %v2917 = vmul.u32 %v2916, 9
    %v2918 = vsub.s32 %v2912, %v2917
    %v2919 = vsub.s32 0, %v2918
    %v2920 = vsel %vm2910, %v2919, %v2918
    %vm2921 = vcmp.lt.s32.totalorder %v2904, 0
    %v2922 = vsub.s32 0, %v2904
    %v2923 = vsel %vm2921, %v2922, %v2904
    %v2924 = vmul.u32.u64.compose %v2923, 3817748708
    %v2925 = vextract.low.u32 %v2924
    %v2926 = vextract.high.u32 %v2924
    %v2927 = vshrl.u32 %v2926, 3
    %v2928 = vmul.u32 %v2927, 9
    %v2929 = vsub.s32 %v2923, %v2928
    %v2930 = vsub.s32 0, %v2929
    %v2931 = vsel %vm2921, %v2930, %v2929
    %vm2932 = vcmp.lt.s32.totalorder %v2905, 0
    %v2933 = vsub.s32 0, %v2905
    %v2934 = vsel %vm2932, %v2933, %v2905
    %v2935 = vmul.u32.u64.compose %v2934, 3817748708
    %v2936 = vextract.low.u32 %v2935
    %v2937 = vextract.high.u32 %v2935
    %v2938 = vshrl.u32 %v2937, 3
    %v2939 = vmul.u32 %v2938, 9
    %v2940 = vsub.s32 %v2934, %v2939
    %v2941 = vsub.s32 0, %v2940
    %v2942 = vsel %vm2932, %v2941, %v2940
    %vm2943 = vcmp.lt.s32.totalorder %v2906, 0
    %v2944 = vsub.s32 0, %v2906
    %v2945 = vsel %vm2943, %v2944, %v2906
    %v2946 = vmul.u32.u64.compose %v2945, 3817748708
    %v2947 = vextract.low.u32 %v2946
    %v2948 = vextract.high.u32 %v2946
    %v2949 = vshrl.u32 %v2948, 3
    %v2950 = vmul.u32 %v2949, 9
    %v2951 = vsub.s32 %v2945, %v2950
    %v2952 = vsub.s32 0, %v2951
    %v2953 = vsel %vm2943, %v2952, %v2951
    %vm2954 = vcmp.lt.s32.totalorder %v2907, 0
    %v2955 = vsub.s32 0, %v2907
    %v2956 = vsel %vm2954, %v2955, %v2907
    %v2957 = vmul.u32.u64.compose %v2956, 3817748708
    %v2958 = vextract.low.u32 %v2957
    %v2959 = vextract.high.u32 %v2957
    %v2960 = vshrl.u32 %v2959, 3
    %v2961 = vmul.u32 %v2960, 9
    %v2962 = vsub.s32 %v2956, %v2961
    %v2963 = vsub.s32 0, %v2962
    %v2964 = vsel %vm2954, %v2963, %v2962
    %vm2965 = vcmp.lt.s32.totalorder %v2908, 0
    %v2966 = vsub.s32 0, %v2908
    %v2967 = vsel %vm2965, %v2966, %v2908
    %v2968 = vmul.u32.u64.compose %v2967, 3817748708
    %v2969 = vextract.low.u32 %v2968
    %v2970 = vextract.high.u32 %v2968
    %v2971 = vshrl.u32 %v2970, 3
    %v2972 = vmul.u32 %v2971, 9
    %v2973 = vsub.s32 %v2967, %v2972
    %v2974 = vsub.s32 0, %v2973
    %v2975 = vsel %vm2965, %v2974, %v2973
    %vm2976 = vcmp.lt.s32.totalorder %v2909, 0
    %v2977 = vsub.s32 0, %v2909
    %v2978 = vsel %vm2976, %v2977, %v2909
    %v2979 = vmul.u32.u64.compose %v2978, 3817748708
    %v2980 = vextract.low.u32 %v2979
    %v2981 = vextract.high.u32 %v2979
    %v2982 = vshrl.u32 %v2981, 3
    %v2983 = vmul.u32 %v2982, 9
    %v2984 = vsub.s32 %v2978, %v2983
    %v2985 = vsub.s32 0, %v2984
    %v2986 = vsel %vm2976, %v2985, %v2984
    %vm2987 = vcmp.ne.s32.totalorder %v2920, 0
    %vm2988 = vcmp.ne.s32.totalorder %v2931, 0
    %vm2989 = vcmp.ne.s32.totalorder %v2942, 0
    %vm2990 = vcmp.ne.s32.totalorder %v2953, 0
    %vm2991 = vcmp.ne.s32.totalorder %v2964, 0
    %vm2992 = vcmp.ne.s32.totalorder %v2975, 0
    %vm2993 = vcmp.ne.s32.totalorder %v2986, 0
    %vm2994 = vcmp.lt.s32.totalorder %v2920, 0
    %vm2995 = vcmp.lt.s32.totalorder %v2931, 0
    %vm2996 = vcmp.lt.s32.totalorder %v2942, 0
    %vm2997 = vcmp.lt.s32.totalorder %v2953, 0
    %vm2998 = vcmp.lt.s32.totalorder %v2964, 0
    %vm2999 = vcmp.lt.s32.totalorder %v2975, 0
    %vm3000 = vcmp.lt.s32.totalorder %v2986, 0
    %vm3001 = vmand %vm2994, %vm2987
    %vm3002 = vmand %vm2995, %vm2988
    %vm3003 = vmand %vm2996, %vm2989
    %vm3004 = vmand %vm2997, %vm2990
    %vm3005 = vmand %vm2998, %vm2991
    %vm3006 = vmand %vm2999, %vm2992
    %vm3007 = vmand %vm3000, %vm2993
    %v3008 = vadd.s32 %v2920, 9
    %v3009 = vadd.s32 %v2931, 9
    %v3010 = vadd.s32 %v2942, 9
    %v3011 = vadd.s32 %v2953, 9
    %v3012 = vadd.s32 %v2964, 9
    %v3013 = vadd.s32 %v2975, 9
    %v3014 = vadd.s32 %v2986, 9
    %v3015 = vsel %vm3001, %v3008, %v2920
    %v3016 = vsel %vm3002, %v3009, %v2931
    %v3017 = vsel %vm3003, %v3010, %v2942
    %v3018 = vsel %vm3004, %v3011, %v2953
    %v3019 = vsel %vm3005, %v3012, %v2964
    %v3020 = vsel %vm3006, %v3013, %v2975
    %v3021 = vsel %vm3007, %v3014, %v2986
    %vm3022 = vcmp.eq.s32.totalorder %v3015, 0
    %vm3023 = vcmp.eq.s32.totalorder %v3016, 0
    %vm3024 = vcmp.eq.s32.totalorder %v3017, 0
    %vm3025 = vcmp.eq.s32.totalorder %v3018, 0
    %vm3026 = vcmp.eq.s32.totalorder %v3019, 0
    %vm3027 = vcmp.eq.s32.totalorder %v3020, 0
    %vm3028 = vcmp.eq.s32.totalorder %v3021, 0
    %vm3029 = vcmp.eq.s32.totalorder %v3015, 8
    %vm3030 = vcmp.eq.s32.totalorder %v3016, 8
    %vm3031 = vcmp.eq.s32.totalorder %v3017, 8
    %vm3032 = vcmp.eq.s32.totalorder %v3018, 8
    %vm3033 = vcmp.eq.s32.totalorder %v3019, 8
    %vm3034 = vcmp.eq.s32.totalorder %v3020, 8
    %vm3035 = vcmp.eq.s32.totalorder %v3021, 8
    %vm3036 = vmor %vm3022, %vm3029
    %vm3037 = vmor %vm3023, %vm3030
    %vm3038 = vmor %vm3024, %vm3031
    %vm3039 = vmor %vm3025, %vm3032
    %vm3040 = vmor %vm3026, %vm3033
    %vm3041 = vmor %vm3027, %vm3034
    %vm3042 = vmor %vm3028, %vm3035
    %v3043 = vsel %vm3036, 1.0, 2.0
    %v3044 = vsel %vm3037, 1.0, 2.0
    %v3045 = vsel %vm3038, 1.0, 2.0
    %v3046 = vsel %vm3039, 1.0, 2.0
    %v3047 = vsel %vm3040, 1.0, 2.0
    %v3048 = vsel %vm3041, 1.0, 2.0
    %v3049 = vsel %vm3042, 1.0, 2.0
    %v3050 = vand.u32 2147483647, %v2695
    %v3051 = vand.u32 2147483647, %v2696
    %v3052 = vand.u32 2147483647, %v2697
    %v3053 = vand.u32 2147483647, %v2698
    %v3054 = vand.u32 2147483647, %v2699
    %v3055 = vand.u32 2147483647, %v2700
    %v3056 = vand.u32 2147483647, %v2701
    %v3057 = vand.u32 2147483647, %v2869
    %v3058 = vand.u32 2147483647, %v2874
    %v3059 = vand.u32 2147483647, %v2879
    %v3060 = vand.u32 2147483647, %v2884
    %v3061 = vand.u32 2147483647, %v2889
    %v3062 = vand.u32 2147483647, %v2894
    %v3063 = vand.u32 2147483647, %v2899
    %v3064 = vadd.f32 %v3050, %v3057
    %v3065 = vadd.f32 %v3051, %v3058
    %v3066 = vadd.f32 %v3052, %v3059
    %v3067 = vadd.f32 %v3053, %v3060
    %v3068 = vadd.f32 %v3054, %v3061
    %v3069 = vadd.f32 %v3055, %v3062
    %v3070 = vadd.f32 %v3056, %v3063
    %v3071 = vmul.f32 %v3043, %v3064
    %v3072 = vmul.f32 %v3044, %v3065
    %v3073 = vmul.f32 %v3045, %v3066
    %v3074 = vmul.f32 %v3046, %v3067
    %v3075 = vmul.f32 %v3047, %v3068
    %v3076 = vmul.f32 %v3048, %v3069
    %v3077 = vmul.f32 %v3049, %v3070
    %v3078 = vsel %vm287, %v3071, 0.0
    %3079 = vadd.xlane.f32.xlu0 %v3078
    %v3080 = vpop.xlane.xlu0 %3079
    %v3081 = vsel %vm287, %v3072, 0.0
    %3082 = vadd.xlane.f32.xlu0 %v3081
    %v3083 = vpop.xlane.xlu0 %3082
    %v3084 = vsel %vm287, %v3073, 0.0
    %3085 = vadd.xlane.f32.xlu0 %v3084
    %v3086 = vpop.xlane.xlu0 %3085
    %v3087 = vsel %vm287, %v3074, 0.0
    %3088 = vadd.xlane.f32.xlu0 %v3087
    %v3089 = vpop.xlane.xlu0 %3088
    %v3090 = vsel %vm287, %v3075, 0.0
    %3091 = vadd.xlane.f32.xlu0 %v3090
    %v3092 = vpop.xlane.xlu0 %3091
    %v3093 = vsel %vm287, %v3076, 0.0
    %3094 = vadd.xlane.f32.xlu0 %v3093
    %v3095 = vpop.xlane.xlu0 %3094
    %vm3096 = vcmask 128000
    %v3097 = vsel %vm3096, %v3077, 0.0
    %3098 = vadd.xlane.f32.xlu0 %v3097
    %v3099 = vpop.xlane.xlu0 %3098
    %v3100 = vadd.f32 %v3080, %v3083
    %v3101 = vadd.f32 %v3100, %v3086
    %v3102 = vadd.f32 %v3101, %v3089
    %v3103 = vadd.f32 %v3102, %v3092
    %v3104 = vadd.f32 %v3103, %v3095
    %vm3105 = vcmask 1045504
    %v3106 = vsel %vm3105, %v3099, 0.0
    %v3107 = vadd.f32 %v3104, %v3106
    %v3108 = vrot.slane %v3107, 4
    %v3109 = vadd.f32 %v3107, %v3108
    %v3110 = vrot.slane %v3109, 2
    %v3111 = vadd.f32 %v3109, %v3110
    %v3112 = vrot.slane %v3111, 1
    %v3113 = vadd.f32 %v3111, %v3112
    %v3114 = vld [vmem:[#allocation14] sm:$0xff]
    %v3115 = vld [vmem:[#allocation14 + $0x8] sm:$0xff]
    %3116 = vmatprep.subr.mxu0 0.0
    %3117 = vmatpush1.msra.mxu0 0.0
    %3118 = vmatprep.subr.mxu0 0.0
    %3119 = vmatpush1.msra.mxu0 0.0
    %3120 = vmatprep.subr.mxu0 0.0
    %3121 = vmatpush1.msra.mxu0 0.0
    %3122 = vmatprep.subr.mxu0 0.0
    %3123 = vmatpush1.msra.mxu0 0.0
    %3124 = vmatprep.subr.mxu0 0.0
    %3125 = vmatpush1.msra.mxu0 0.0
    %3126 = vmatprep.subr.mxu0 0.0
    %3127 = vmatpush1.msra.mxu0 0.0
    %3128 = vmatprep.subr.mxu0 0.0
    %3129 = vmatpush1.msra.mxu0 0.0
    %3130 = vmatprep.subr.mxu0 0.0
    %3131 = vmatpush1.msra.mxu0 0.0
    %3132 = vmatprep.subr.mxu0 0.0
    %3133 = vmatpush1.msra.mxu0 0.0
    %3134 = vmatprep.subr.mxu0 0.0
    %3135 = vmatpush1.msra.mxu0 0.0
    %3136 = vmatprep.subr.mxu0 0.0
    %3137 = vmatpush1.msra.mxu0 0.0
    %3138 = vmatprep.subr.mxu0 0.0
    %3139 = vmatpush1.msra.mxu0 0.0
    %3140 = vmatprep.subr.mxu0 0.0
    %3141 = vmatpush1.msra.mxu0 0.0
    %3142 = vmatprep.subr.mxu0 0.0
    %3143 = vmatpush1.msra.mxu0 0.0
    %3144 = vmatprep.subr.mxu0 0.0
    %3145 = vmatpush1.msra.mxu0 %v3115
    %3146 = vmatprep.subr.mxu0 0.0
    %3147 = vmatpush1.msra.mxu0 %v3114
    %3148 = vmatprep.subr.mxu0 0.0
    %3149 = vmatpush2.msra.mxu0 0.0
    %3150 = vmatprep.subr.mxu0 0.0
    %3151 = vmatpush2.msra.mxu0 0.0
    %3152 = vmatprep.subr.mxu0 0.0
    %3153 = vmatpush2.msra.mxu0 0.0
    %3154 = vmatprep.subr.mxu0 0.0
    %3155 = vmatpush2.msra.mxu0 0.0
    %3156 = vmatprep.subr.mxu0 0.0
    %3157 = vmatpush2.msra.mxu0 0.0
    %3158 = vmatprep.subr.mxu0 0.0
    %3159 = vmatpush2.msra.mxu0 0.0
    %3160 = vmatprep.subr.mxu0 0.0
    %3161 = vmatpush2.msra.mxu0 0.0
    %3162 = vmatprep.subr.mxu0 0.0
    %3163 = vmatpush2.msra.mxu0 0.0
    %3164 = vmatprep.subr.mxu0 0.0
    %3165 = vmatpush2.msra.mxu0 0.0
    %3166 = vmatprep.subr.mxu0 0.0
    %3167 = vmatpush2.msra.mxu0 0.0
    %3168 = vmatprep.subr.mxu0 0.0
    %3169 = vmatpush2.msra.mxu0 0.0
    %3170 = vmatprep.subr.mxu0 0.0
    %3171 = vmatpush2.msra.mxu0 0.0
    %3172 = vmatprep.subr.mxu0 0.0
    %3173 = vmatpush2.msra.mxu0 0.0
    %3174 = vmatprep.subr.mxu0 0.0
    %3175 = vmatpush2.msra.mxu0 0.0
    %3176 = vmatprep.subr.mxu0 0.0
    %3177 = vmatpush2.msra.mxu0 0.0
    %3178 = vmatprep.subr.mxu0 0.0
    %3179 = vmatpush2.msra.mxu0 0.0
    %3180 = vmatprep.mubr.f32.mxu0 0.0
    %3181 = vmatmul.mubr.f32.gmra.mxu0 %v344
    %v3182 = vpop.f32.mrf.mxu0
    %v3183 = vadd.f32 0.0, %v3182
    %v3184 = vpop.f32.mrf.mxu0
    %3185 = vmatprep.mubr.f32.mxu0 0.0
    %3186 = vmatmul.mubr.f32.gmra.mxu0 %v347
    %v3187 = vpop.f32.mrf.mxu0
    %v3188 = vadd.f32 0.0, %v3187
    %v3189 = vpop.f32.mrf.mxu0
    %3190 = vmatprep.mubr.f32.mxu0 0.0
    %3191 = vmatmul.mubr.f32.gmra.mxu0 %v350
    %v3192 = vpop.f32.mrf.mxu0
    %v3193 = vadd.f32 0.0, %v3192
    %v3194 = vpop.f32.mrf.mxu0
    %3195 = vmatprep.mubr.f32.mxu0 0.0
    %3196 = vmatmul.mubr.f32.gmra.mxu0 %v353
    %v3197 = vpop.f32.mrf.mxu0
    %v3198 = vadd.f32 0.0, %v3197
    %v3199 = vpop.f32.mrf.mxu0
    %3200 = vmatprep.mubr.f32.mxu0 0.0
    %3201 = vmatmul.mubr.f32.gmra.mxu0 %v356
    %v3202 = vpop.f32.mrf.mxu0
    %v3203 = vadd.f32 0.0, %v3202
    %v3204 = vpop.f32.mrf.mxu0
    %3205 = vmatprep.mubr.f32.mxu0 0.0
    %3206 = vmatmul.mubr.f32.gmra.mxu0 %v359
    %v3207 = vpop.f32.mrf.mxu0
    %v3208 = vadd.f32 0.0, %v3207
    %v3209 = vpop.f32.mrf.mxu0
    %3210 = vmatprep.mubr.f32.mxu0 0.0
    %3211 = vmatmul.mubr.f32.gmra.mxu0 %v362
    %v3212 = vpop.f32.mrf.mxu0
    %v3213 = vadd.f32 0.0, %v3212
    %v3214 = vpop.f32.mrf.mxu0
    %3215 = vmatprep.mubr.f32.mxu0 0.0
    %3216 = vmatmul.mubr.f32.gmra.mxu0 %v365
    %v3217 = vpop.f32.mrf.mxu0
    %v3218 = vadd.f32 0.0, %v3217
    %v3219 = vpop.f32.mrf.mxu0
    %3220 = vmatprep.mubr.f32.mxu0 0.0
    %3221 = vmatmul.mubr.f32.gmra.mxu0 %v368
    %v3222 = vpop.f32.mrf.mxu0
    %v3223 = vadd.f32 0.0, %v3222
    %v3224 = vpop.f32.mrf.mxu0
    %3225 = vmatprep.mubr.f32.mxu0 0.0
    %3226 = vmatmul.mubr.f32.gmra.mxu0 %v371
    %v3227 = vpop.f32.mrf.mxu0
    %v3228 = vadd.f32 0.0, %v3227
    %v3229 = vpop.f32.mrf.mxu0
    %3230 = vmatprep.mubr.f32.mxu0 0.0
    %3231 = vmatmul.mubr.f32.gmra.mxu0 %v374
    %v3232 = vpop.f32.mrf.mxu0
    %v3233 = vadd.f32 0.0, %v3232
    %v3234 = vpop.f32.mrf.mxu0
    %3235 = vmatprep.mubr.f32.mxu0 0.0
    %3236 = vmatmul.mubr.f32.gmra.mxu0 %v377
    %v3237 = vpop.f32.mrf.mxu0
    %v3238 = vadd.f32 0.0, %v3237
    %v3239 = vpop.f32.mrf.mxu0
    %3240 = vdwg.mxu0
    %3241 = vxpose.xlu0.b32.start [1/16] %v3183, 128
    %3242 = vxpose.xlu0.b32.cont [2/16] %v3188, 128
    %3243 = vxpose.xlu0.b32.cont [3/16] 0.0, 128
    %3244 = vxpose.xlu0.b32.cont [4/16] 0.0, 128
    %3245 = vxpose.xlu0.b32.cont [5/16] 0.0, 128
    %3246 = vxpose.xlu0.b32.cont [6/16] 0.0, 128
    %3247 = vxpose.xlu0.b32.cont [7/16] 0.0, 128
    %3248 = vxpose.xlu0.b32.cont [8/16] 0.0, 128
    %3249 = vxpose.xlu0.b32.cont [9/16] 0.0, 128
    %3250 = vxpose.xlu0.b32.cont [10/16] 0.0, 128
    %3251 = vxpose.xlu0.b32.cont [11/16] 0.0, 128
    %3252 = vxpose.xlu0.b32.cont [12/16] 0.0, 128
    %3253 = vxpose.xlu0.b32.cont [13/16] 0.0, 128
    %3254 = vxpose.xlu0.b32.cont [14/16] 0.0, 128
    %3255 = vxpose.xlu0.b32.cont [15/16] 0.0, 128
    %3256 = vxpose.xlu0.b32.end [16/16] 0.0, 128
    %v3257 = vpop.trf.xlu0
    %v3258 = vpop.trf.xlu0
    %v3259 = vpop.trf.xlu0
    %v3260 = vpop.trf.xlu0
    %v3261 = vpop.trf.xlu0
    %v3262 = vpop.trf.xlu0
    %v3263 = vpop.trf.xlu0
    %v3264 = vpop.trf.xlu0
    %v3265 = vpop.trf.xlu0
    %v3266 = vpop.trf.xlu0
    %v3267 = vpop.trf.xlu0
    %v3268 = vpop.trf.xlu0
    %v3269 = vpop.trf.xlu0
    %v3270 = vpop.trf.xlu0
    %v3271 = vpop.trf.xlu0
    %v3272 = vpop.trf.xlu0
    %3273 = vxpose.xlu0.b32.start [1/16] %v3193, 128
    %3274 = vxpose.xlu0.b32.cont [2/16] %v3198, 128
    %3275 = vxpose.xlu0.b32.cont [3/16] 0.0, 128
    %3276 = vxpose.xlu0.b32.cont [4/16] 0.0, 128
    %3277 = vxpose.xlu0.b32.cont [5/16] 0.0, 128
    %3278 = vxpose.xlu0.b32.cont [6/16] 0.0, 128
    %3279 = vxpose.xlu0.b32.cont [7/16] 0.0, 128
    %3280 = vxpose.xlu0.b32.cont [8/16] 0.0, 128
    %3281 = vxpose.xlu0.b32.cont [9/16] 0.0, 128
    %3282 = vxpose.xlu0.b32.cont [10/16] 0.0, 128
    %3283 = vxpose.xlu0.b32.cont [11/16] 0.0, 128
    %3284 = vxpose.xlu0.b32.cont [12/16] 0.0, 128
    %3285 = vxpose.xlu0.b32.cont [13/16] 0.0, 128
    %3286 = vxpose.xlu0.b32.cont [14/16] 0.0, 128
    %3287 = vxpose.xlu0.b32.cont [15/16] 0.0, 128
    %3288 = vxpose.xlu0.b32.end [16/16] 0.0, 128
    %v3289 = vpop.trf.xlu0
    %v3290 = vpop.trf.xlu0
    %v3291 = vpop.trf.xlu0
    %v3292 = vpop.trf.xlu0
    %v3293 = vpop.trf.xlu0
    %v3294 = vpop.trf.xlu0
    %v3295 = vpop.trf.xlu0
    %v3296 = vpop.trf.xlu0
    %v3297 = vpop.trf.xlu0
    %v3298 = vpop.trf.xlu0
    %v3299 = vpop.trf.xlu0
    %v3300 = vpop.trf.xlu0
    %v3301 = vpop.trf.xlu0
    %v3302 = vpop.trf.xlu0
    %v3303 = vpop.trf.xlu0
    %v3304 = vpop.trf.xlu0
    %3305 = vxpose.xlu0.b32.start [1/16] %v3203, 128
    %3306 = vxpose.xlu0.b32.cont [2/16] %v3208, 128
    %3307 = vxpose.xlu0.b32.cont [3/16] 0.0, 128
    %3308 = vxpose.xlu0.b32.cont [4/16] 0.0, 128
    %3309 = vxpose.xlu0.b32.cont [5/16] 0.0, 128
    %3310 = vxpose.xlu0.b32.cont [6/16] 0.0, 128
    %3311 = vxpose.xlu0.b32.cont [7/16] 0.0, 128
    %3312 = vxpose.xlu0.b32.cont [8/16] 0.0, 128
    %3313 = vxpose.xlu0.b32.cont [9/16] 0.0, 128
    %3314 = vxpose.xlu0.b32.cont [10/16] 0.0, 128
    %3315 = vxpose.xlu0.b32.cont [11/16] 0.0, 128
    %3316 = vxpose.xlu0.b32.cont [12/16] 0.0, 128
    %3317 = vxpose.xlu0.b32.cont [13/16] 0.0, 128
    %3318 = vxpose.xlu0.b32.cont [14/16] 0.0, 128
    %3319 = vxpose.xlu0.b32.cont [15/16] 0.0, 128
    %3320 = vxpose.xlu0.b32.end [16/16] 0.0, 128
    %v3321 = vpop.trf.xlu0
    %v3322 = vpop.trf.xlu0
    %v3323 = vpop.trf.xlu0
    %v3324 = vpop.trf.xlu0
    %v3325 = vpop.trf.xlu0
    %v3326 = vpop.trf.xlu0
    %v3327 = vpop.trf.xlu0
    %v3328 = vpop.trf.xlu0
    %v3329 = vpop.trf.xlu0
    %v3330 = vpop.trf.xlu0
    %v3331 = vpop.trf.xlu0
    %v3332 = vpop.trf.xlu0
    %v3333 = vpop.trf.xlu0
    %v3334 = vpop.trf.xlu0
    %v3335 = vpop.trf.xlu0
    %v3336 = vpop.trf.xlu0
    %3337 = vxpose.xlu0.b32.start [1/16] %v3213, 128
    %3338 = vxpose.xlu0.b32.cont [2/16] %v3218, 128
    %3339 = vxpose.xlu0.b32.cont [3/16] 0.0, 128
    %3340 = vxpose.xlu0.b32.cont [4/16] 0.0, 128
    %3341 = vxpose.xlu0.b32.cont [5/16] 0.0, 128
    %3342 = vxpose.xlu0.b32.cont [6/16] 0.0, 128
    %3343 = vxpose.xlu0.b32.cont [7/16] 0.0, 128
    %3344 = vxpose.xlu0.b32.cont [8/16] 0.0, 128
    %3345 = vxpose.xlu0.b32.cont [9/16] 0.0, 128
    %3346 = vxpose.xlu0.b32.cont [10/16] 0.0, 128
    %3347 = vxpose.xlu0.b32.cont [11/16] 0.0, 128
    %3348 = vxpose.xlu0.b32.cont [12/16] 0.0, 128
    %3349 = vxpose.xlu0.b32.cont [13/16] 0.0, 128
    %3350 = vxpose.xlu0.b32.cont [14/16] 0.0, 128
    %3351 = vxpose.xlu0.b32.cont [15/16] 0.0, 128
    %3352 = vxpose.xlu0.b32.end [16/16] 0.0, 128
    %v3353 = vpop.trf.xlu0
    %v3354 = vpop.trf.xlu0
    %v3355 = vpop.trf.xlu0
    %v3356 = vpop.trf.xlu0
    %v3357 = vpop.trf.xlu0
    %v3358 = vpop.trf.xlu0
    %v3359 = vpop.trf.xlu0
    %v3360 = vpop.trf.xlu0
    %v3361 = vpop.trf.xlu0
    %v3362 = vpop.trf.xlu0
    %v3363 = vpop.trf.xlu0
    %v3364 = vpop.trf.xlu0
    %v3365 = vpop.trf.xlu0
    %v3366 = vpop.trf.xlu0
    %v3367 = vpop.trf.xlu0
    %v3368 = vpop.trf.xlu0
    %3369 = vxpose.xlu0.b32.start [1/16] %v3223, 128
    %3370 = vxpose.xlu0.b32.cont [2/16] %v3228, 128
    %3371 = vxpose.xlu0.b32.cont [3/16] 0.0, 128
    %3372 = vxpose.xlu0.b32.cont [4/16] 0.0, 128
    %3373 = vxpose.xlu0.b32.cont [5/16] 0.0, 128
    %3374 = vxpose.xlu0.b32.cont [6/16] 0.0, 128
    %3375 = vxpose.xlu0.b32.cont [7/16] 0.0, 128
    %3376 = vxpose.xlu0.b32.cont [8/16] 0.0, 128
    %3377 = vxpose.xlu0.b32.cont [9/16] 0.0, 128
    %3378 = vxpose.xlu0.b32.cont [10/16] 0.0, 128
    %3379 = vxpose.xlu0.b32.cont [11/16] 0.0, 128
    %3380 = vxpose.xlu0.b32.cont [12/16] 0.0, 128
    %3381 = vxpose.xlu0.b32.cont [13/16] 0.0, 128
    %3382 = vxpose.xlu0.b32.cont [14/16] 0.0, 128
    %3383 = vxpose.xlu0.b32.cont [15/16] 0.0, 128
    %3384 = vxpose.xlu0.b32.end [16/16] 0.0, 128
    %v3385 = vpop.trf.xlu0
    %v3386 = vpop.trf.xlu0
    %v3387 = vpop.trf.xlu0
    %v3388 = vpop.trf.xlu0
    %v3389 = vpop.trf.xlu0
    %v3390 = vpop.trf.xlu0
    %v3391 = vpop.trf.xlu0
    %v3392 = vpop.trf.xlu0
    %v3393 = vpop.trf.xlu0
    %v3394 = vpop.trf.xlu0
    %v3395 = vpop.trf.xlu0
    %v3396 = vpop.trf.xlu0
    %v3397 = vpop.trf.xlu0
    %v3398 = vpop.trf.xlu0
    %v3399 = vpop.trf.xlu0
    %v3400 = vpop.trf.xlu0
    %3401 = vxpose.xlu0.b32.start [1/16] %v3233, 128
    %3402 = vxpose.xlu0.b32.cont [2/16] %v3238, 128
    %3403 = vxpose.xlu0.b32.cont [3/16] 0.0, 128
    %3404 = vxpose.xlu0.b32.cont [4/16] 0.0, 128
    %3405 = vxpose.xlu0.b32.cont [5/16] 0.0, 128
    %3406 = vxpose.xlu0.b32.cont [6/16] 0.0, 128
    %3407 = vxpose.xlu0.b32.cont [7/16] 0.0, 128
    %3408 = vxpose.xlu0.b32.cont [8/16] 0.0, 128
    %3409 = vxpose.xlu0.b32.cont [9/16] 0.0, 128
    %3410 = vxpose.xlu0.b32.cont [10/16] 0.0, 128
    %3411 = vxpose.xlu0.b32.cont [11/16] 0.0, 128
    %3412 = vxpose.xlu0.b32.cont [12/16] 0.0, 128
    %3413 = vxpose.xlu0.b32.cont [13/16] 0.0, 128
    %3414 = vxpose.xlu0.b32.cont [14/16] 0.0, 128
    %3415 = vxpose.xlu0.b32.cont [15/16] 0.0, 128
    %3416 = vxpose.xlu0.b32.end [16/16] 0.0, 128
    %v3417 = vpop.trf.xlu0
    %v3418 = vpop.trf.xlu0
    %v3419 = vpop.trf.xlu0
    %v3420 = vpop.trf.xlu0
    %v3421 = vpop.trf.xlu0
    %v3422 = vpop.trf.xlu0
    %v3423 = vpop.trf.xlu0
    %v3424 = vpop.trf.xlu0
    %v3425 = vpop.trf.xlu0
    %v3426 = vpop.trf.xlu0
    %v3427 = vpop.trf.xlu0
    %v3428 = vpop.trf.xlu0
    %v3429 = vpop.trf.xlu0
    %v3430 = vpop.trf.xlu0
    %v3431 = vpop.trf.xlu0
    %v3432 = vpop.trf.xlu0
    %v3433 = vld [vmem:[#allocation13] sm:$0xff]
    %v3434 = vld [vmem:[#allocation13 + $0x8] sm:$0xff]
    %v3436 = vsel %vm287, %v3257, 0
    %v3439 = vsel %vm287, %v3258, 0
    %v3442 = vsel %vm287, %v3289, 0
    %v3445 = vsel %vm287, %v3290, 0
    %v3448 = vsel %vm287, %v3321, 0
    %v3451 = vsel %vm287, %v3322, 0
    %v3454 = vsel %vm287, %v3353, 0
    %v3457 = vsel %vm287, %v3354, 0
    %v3460 = vsel %vm287, %v3385, 0
    %v3463 = vsel %vm287, %v3386, 0
    %v3466 = vsel %vm287, %v3417, 0
    %v3469 = vsel %vm287, %v3418, 0
    %3471 = vmatprep.subr.mxu0 0.0
    %3472 = vmatpush1.msra.mxu0 0.0
    %3473 = vmatprep.subr.mxu0 0.0
    %3474 = vmatpush1.msra.mxu0 0.0
    %3475 = vmatprep.subr.mxu0 0.0
    %3476 = vmatpush1.msra.mxu0 0.0
    %3477 = vmatprep.subr.mxu0 0.0
    %3478 = vmatpush1.msra.mxu0 0.0
    %3479 = vmatprep.subr.mxu0 0.0
    %3480 = vmatpush1.msra.mxu0 0.0
    %3481 = vmatprep.subr.mxu0 0.0
    %3482 = vmatpush1.msra.mxu0 0.0
    %3483 = vmatprep.subr.mxu0 0.0
    %3484 = vmatpush1.msra.mxu0 0.0
    %3485 = vmatprep.subr.mxu0 0.0
    %3486 = vmatpush1.msra.mxu0 0.0
    %3487 = vmatprep.subr.mxu0 0.0
    %3488 = vmatpush1.msra.mxu0 0.0
    %3489 = vmatprep.subr.mxu0 0.0
    %3490 = vmatpush1.msra.mxu0 0.0
    %3491 = vmatprep.subr.mxu0 0.0
    %3492 = vmatpush1.msra.mxu0 0.0
    %3493 = vmatprep.subr.mxu0 0.0
    %3494 = vmatpush1.msra.mxu0 0.0
    %3495 = vmatprep.subr.mxu0 0.0
    %3496 = vmatpush1.msra.mxu0 0.0
    %3497 = vmatprep.subr.mxu0 0.0
    %3498 = vmatpush1.msra.mxu0 0.0
    %3499 = vmatprep.subr.mxu0 0.0
    %3500 = vmatpush1.msra.mxu0 %v3434
    %3501 = vmatprep.subr.mxu0 0.0
    %3502 = vmatpush1.msra.mxu0 %v3433
    %3503 = vmatprep.subr.mxu0 0.0
    %3504 = vmatpush2.msra.mxu0 0.0
    %3505 = vmatprep.subr.mxu0 0.0
    %3506 = vmatpush2.msra.mxu0 0.0
    %3507 = vmatprep.subr.mxu0 0.0
    %3508 = vmatpush2.msra.mxu0 0.0
    %3509 = vmatprep.subr.mxu0 0.0
    %3510 = vmatpush2.msra.mxu0 0.0
    %3511 = vmatprep.subr.mxu0 0.0
    %3512 = vmatpush2.msra.mxu0 0.0
    %3513 = vmatprep.subr.mxu0 0.0
    %3514 = vmatpush2.msra.mxu0 0.0
    %3515 = vmatprep.subr.mxu0 0.0
    %3516 = vmatpush2.msra.mxu0 0.0
    %3517 = vmatprep.subr.mxu0 0.0
    %3518 = vmatpush2.msra.mxu0 0.0
    %3519 = vmatprep.subr.mxu0 0.0
    %3520 = vmatpush2.msra.mxu0 0.0
    %3521 = vmatprep.subr.mxu0 0.0
    %3522 = vmatpush2.msra.mxu0 0.0
    %3523 = vmatprep.subr.mxu0 0.0
    %3524 = vmatpush2.msra.mxu0 0.0
    %3525 = vmatprep.subr.mxu0 0.0
    %3526 = vmatpush2.msra.mxu0 0.0
    %3527 = vmatprep.subr.mxu0 0.0
    %3528 = vmatpush2.msra.mxu0 0.0
    %3529 = vmatprep.subr.mxu0 0.0
    %3530 = vmatpush2.msra.mxu0 0.0
    %3531 = vmatprep.subr.mxu0 0.0
    %3532 = vmatpush2.msra.mxu0 0.0
    %3533 = vmatprep.subr.mxu0 0.0
    %3534 = vmatpush2.msra.mxu0 0.0
    %3535 = vmatprep.mubr.f32.mxu0 0.0
    %3536 = vmatmul.mubr.f32.gmra.mxu0 %v3436
    %v3537 = vpop.f32.mrf.mxu0
    %v3538 = vadd.f32 0.0, %v3537
    %v3539 = vpop.f32.mrf.mxu0
    %3540 = vmatprep.mubr.f32.mxu0 0.0
    %3541 = vmatmul.mubr.f32.gmra.mxu0 %v3439
    %v3542 = vpop.f32.mrf.mxu0
    %v3543 = vadd.f32 0.0, %v3542
    %v3544 = vpop.f32.mrf.mxu0
    %3545 = vmatprep.mubr.f32.mxu0 0.0
    %3546 = vmatmul.mubr.f32.gmra.mxu0 %v3442
    %v3547 = vpop.f32.mrf.mxu0
    %v3548 = vadd.f32 0.0, %v3547
    %v3549 = vpop.f32.mrf.mxu0
    %3550 = vmatprep.mubr.f32.mxu0 0.0
    %3551 = vmatmul.mubr.f32.gmra.mxu0 %v3445
    %v3552 = vpop.f32.mrf.mxu0
    %v3553 = vadd.f32 0.0, %v3552
    %v3554 = vpop.f32.mrf.mxu0
    %3555 = vmatprep.mubr.f32.mxu0 0.0
    %3556 = vmatmul.mubr.f32.gmra.mxu0 %v3448
    %v3557 = vpop.f32.mrf.mxu0
    %v3558 = vadd.f32 0.0, %v3557
    %v3559 = vpop.f32.mrf.mxu0
    %3560 = vmatprep.mubr.f32.mxu0 0.0
    %3561 = vmatmul.mubr.f32.gmra.mxu0 %v3451
    %v3562 = vpop.f32.mrf.mxu0
    %v3563 = vadd.f32 0.0, %v3562
    %v3564 = vpop.f32.mrf.mxu0
    %3565 = vmatprep.mubr.f32.mxu0 0.0
    %3566 = vmatmul.mubr.f32.gmra.mxu0 %v3454
    %v3567 = vpop.f32.mrf.mxu0
    %v3568 = vadd.f32 0.0, %v3567
    %v3569 = vpop.f32.mrf.mxu0
    %3570 = vmatprep.mubr.f32.mxu0 0.0
    %3571 = vmatmul.mubr.f32.gmra.mxu0 %v3457
    %v3572 = vpop.f32.mrf.mxu0
    %v3573 = vadd.f32 0.0, %v3572
    %v3574 = vpop.f32.mrf.mxu0
    %3575 = vmatprep.mubr.f32.mxu0 0.0
    %3576 = vmatmul.mubr.f32.gmra.mxu0 %v3460
    %v3577 = vpop.f32.mrf.mxu0
    %v3578 = vadd.f32 0.0, %v3577
    %v3579 = vpop.f32.mrf.mxu0
    %3580 = vmatprep.mubr.f32.mxu0 0.0
    %3581 = vmatmul.mubr.f32.gmra.mxu0 %v3463
    %v3582 = vpop.f32.mrf.mxu0
    %v3583 = vadd.f32 0.0, %v3582
    %v3584 = vpop.f32.mrf.mxu0
    %3585 = vmatprep.mubr.f32.mxu0 0.0
    %3586 = vmatmul.mubr.f32.gmra.mxu0 %v3466
    %v3587 = vpop.f32.mrf.mxu0
    %v3588 = vadd.f32 0.0, %v3587
    %v3589 = vpop.f32.mrf.mxu0
    %3590 = vmatprep.mubr.f32.mxu0 0.0
    %3591 = vmatmul.mubr.f32.gmra.mxu0 %v3469
    %v3592 = vpop.f32.mrf.mxu0
    %v3593 = vadd.f32 0.0, %v3592
    %v3594 = vpop.f32.mrf.mxu0
    %3595 = vdwg.mxu0
    %3596 = vxpose.xlu0.b32.start [1/16] %v3538, 128
    %3597 = vxpose.xlu0.b32.cont [2/16] %v3543, 128
    %3598 = vxpose.xlu0.b32.cont [3/16] 0.0, 128
    %3599 = vxpose.xlu0.b32.cont [4/16] 0.0, 128
    %3600 = vxpose.xlu0.b32.cont [5/16] 0.0, 128
    %3601 = vxpose.xlu0.b32.cont [6/16] 0.0, 128
    %3602 = vxpose.xlu0.b32.cont [7/16] 0.0, 128
    %3603 = vxpose.xlu0.b32.cont [8/16] 0.0, 128
    %3604 = vxpose.xlu0.b32.cont [9/16] 0.0, 128
    %3605 = vxpose.xlu0.b32.cont [10/16] 0.0, 128
    %3606 = vxpose.xlu0.b32.cont [11/16] 0.0, 128
    %3607 = vxpose.xlu0.b32.cont [12/16] 0.0, 128
    %3608 = vxpose.xlu0.b32.cont [13/16] 0.0, 128
    %3609 = vxpose.xlu0.b32.cont [14/16] 0.0, 128
    %3610 = vxpose.xlu0.b32.cont [15/16] 0.0, 128
    %3611 = vxpose.xlu0.b32.end [16/16] 0.0, 128
    %v3612 = vpop.trf.xlu0
    %v3613 = vpop.trf.xlu0
    %v3614 = vpop.trf.xlu0
    %v3615 = vpop.trf.xlu0
    %v3616 = vpop.trf.xlu0
    %v3617 = vpop.trf.xlu0
    %v3618 = vpop.trf.xlu0
    %v3619 = vpop.trf.xlu0
    %v3620 = vpop.trf.xlu0
    %v3621 = vpop.trf.xlu0
    %v3622 = vpop.trf.xlu0
    %v3623 = vpop.trf.xlu0
    %v3624 = vpop.trf.xlu0
    %v3625 = vpop.trf.xlu0
    %v3626 = vpop.trf.xlu0
    %v3627 = vpop.trf.xlu0
    %3628 = vxpose.xlu0.b32.start [1/16] %v3548, 128
    %3629 = vxpose.xlu0.b32.cont [2/16] %v3553, 128
    %3630 = vxpose.xlu0.b32.cont [3/16] 0.0, 128
    %3631 = vxpose.xlu0.b32.cont [4/16] 0.0, 128
    %3632 = vxpose.xlu0.b32.cont [5/16] 0.0, 128
    %3633 = vxpose.xlu0.b32.cont [6/16] 0.0, 128
    %3634 = vxpose.xlu0.b32.cont [7/16] 0.0, 128
    %3635 = vxpose.xlu0.b32.cont [8/16] 0.0, 128
    %3636 = vxpose.xlu0.b32.cont [9/16] 0.0, 128
    %3637 = vxpose.xlu0.b32.cont [10/16] 0.0, 128
    %3638 = vxpose.xlu0.b32.cont [11/16] 0.0, 128
    %3639 = vxpose.xlu0.b32.cont [12/16] 0.0, 128
    %3640 = vxpose.xlu0.b32.cont [13/16] 0.0, 128
    %3641 = vxpose.xlu0.b32.cont [14/16] 0.0, 128
    %3642 = vxpose.xlu0.b32.cont [15/16] 0.0, 128
    %3643 = vxpose.xlu0.b32.end [16/16] 0.0, 128
    %v3644 = vpop.trf.xlu0
    %v3645 = vpop.trf.xlu0
    %v3646 = vpop.trf.xlu0
    %v3647 = vpop.trf.xlu0
    %v3648 = vpop.trf.xlu0
    %v3649 = vpop.trf.xlu0
    %v3650 = vpop.trf.xlu0
    %v3651 = vpop.trf.xlu0
    %v3652 = vpop.trf.xlu0
    %v3653 = vpop.trf.xlu0
    %v3654 = vpop.trf.xlu0
    %v3655 = vpop.trf.xlu0
    %v3656 = vpop.trf.xlu0
    %v3657 = vpop.trf.xlu0
    %v3658 = vpop.trf.xlu0
    %v3659 = vpop.trf.xlu0
    %3660 = vxpose.xlu0.b32.start [1/16] %v3558, 128
    %3661 = vxpose.xlu0.b32.cont [2/16] %v3563, 128
    %3662 = vxpose.xlu0.b32.cont [3/16] 0.0, 128
    %3663 = vxpose.xlu0.b32.cont [4/16] 0.0, 128
    %3664 = vxpose.xlu0.b32.cont [5/16] 0.0, 128
    %3665 = vxpose.xlu0.b32.cont [6/16] 0.0, 128
    %3666 = vxpose.xlu0.b32.cont [7/16] 0.0, 128
    %3667 = vxpose.xlu0.b32.cont [8/16] 0.0, 128
    %3668 = vxpose.xlu0.b32.cont [9/16] 0.0, 128
    %3669 = vxpose.xlu0.b32.cont [10/16] 0.0, 128
    %3670 = vxpose.xlu0.b32.cont [11/16] 0.0, 128
    %3671 = vxpose.xlu0.b32.cont [12/16] 0.0, 128
    %3672 = vxpose.xlu0.b32.cont [13/16] 0.0, 128
    %3673 = vxpose.xlu0.b32.cont [14/16] 0.0, 128
    %3674 = vxpose.xlu0.b32.cont [15/16] 0.0, 128
    %3675 = vxpose.xlu0.b32.end [16/16] 0.0, 128
    %v3676 = vpop.trf.xlu0
    %v3677 = vpop.trf.xlu0
    %v3678 = vpop.trf.xlu0
    %v3679 = vpop.trf.xlu0
    %v3680 = vpop.trf.xlu0
    %v3681 = vpop.trf.xlu0
    %v3682 = vpop.trf.xlu0
    %v3683 = vpop.trf.xlu0
    %v3684 = vpop.trf.xlu0
    %v3685 = vpop.trf.xlu0
    %v3686 = vpop.trf.xlu0
    %v3687 = vpop.trf.xlu0
    %v3688 = vpop.trf.xlu0
    %v3689 = vpop.trf.xlu0
    %v3690 = vpop.trf.xlu0
    %v3691 = vpop.trf.xlu0
    %3692 = vxpose.xlu0.b32.start [1/16] %v3568, 128
    %3693 = vxpose.xlu0.b32.cont [2/16] %v3573, 128
    %3694 = vxpose.xlu0.b32.cont [3/16] 0.0, 128
    %3695 = vxpose.xlu0.b32.cont [4/16] 0.0, 128
    %3696 = vxpose.xlu0.b32.cont [5/16] 0.0, 128
    %3697 = vxpose.xlu0.b32.cont [6/16] 0.0, 128
    %3698 = vxpose.xlu0.b32.cont [7/16] 0.0, 128
    %3699 = vxpose.xlu0.b32.cont [8/16] 0.0, 128
    %3700 = vxpose.xlu0.b32.cont [9/16] 0.0, 128
    %3701 = vxpose.xlu0.b32.cont [10/16] 0.0, 128
    %3702 = vxpose.xlu0.b32.cont [11/16] 0.0, 128
    %3703 = vxpose.xlu0.b32.cont [12/16] 0.0, 128
    %3704 = vxpose.xlu0.b32.cont [13/16] 0.0, 128
    %3705 = vxpose.xlu0.b32.cont [14/16] 0.0, 128
    %3706 = vxpose.xlu0.b32.cont [15/16] 0.0, 128
    %3707 = vxpose.xlu0.b32.end [16/16] 0.0, 128
    %v3708 = vpop.trf.xlu0
    %v3709 = vpop.trf.xlu0
    %v3710 = vpop.trf.xlu0
    %v3711 = vpop.trf.xlu0
    %v3712 = vpop.trf.xlu0
    %v3713 = vpop.trf.xlu0
    %v3714 = vpop.trf.xlu0
    %v3715 = vpop.trf.xlu0
    %v3716 = vpop.trf.xlu0
    %v3717 = vpop.trf.xlu0
    %v3718 = vpop.trf.xlu0
    %v3719 = vpop.trf.xlu0
    %v3720 = vpop.trf.xlu0
    %v3721 = vpop.trf.xlu0
    %v3722 = vpop.trf.xlu0
    %v3723 = vpop.trf.xlu0
    %3724 = vxpose.xlu0.b32.start [1/16] %v3578, 128
    %3725 = vxpose.xlu0.b32.cont [2/16] %v3583, 128
    %3726 = vxpose.xlu0.b32.cont [3/16] 0.0, 128
    %3727 = vxpose.xlu0.b32.cont [4/16] 0.0, 128
    %3728 = vxpose.xlu0.b32.cont [5/16] 0.0, 128
    %3729 = vxpose.xlu0.b32.cont [6/16] 0.0, 128
    %3730 = vxpose.xlu0.b32.cont [7/16] 0.0, 128
    %3731 = vxpose.xlu0.b32.cont [8/16] 0.0, 128
    %3732 = vxpose.xlu0.b32.cont [9/16] 0.0, 128
    %3733 = vxpose.xlu0.b32.cont [10/16] 0.0, 128
    %3734 = vxpose.xlu0.b32.cont [11/16] 0.0, 128
    %3735 = vxpose.xlu0.b32.cont [12/16] 0.0, 128
    %3736 = vxpose.xlu0.b32.cont [13/16] 0.0, 128
    %3737 = vxpose.xlu0.b32.cont [14/16] 0.0, 128
    %3738 = vxpose.xlu0.b32.cont [15/16] 0.0, 128
    %3739 = vxpose.xlu0.b32.end [16/16] 0.0, 128
    %v3740 = vpop.trf.xlu0
    %v3741 = vpop.trf.xlu0
    %v3742 = vpop.trf.xlu0
    %v3743 = vpop.trf.xlu0
    %v3744 = vpop.trf.xlu0
    %v3745 = vpop.trf.xlu0
    %v3746 = vpop.trf.xlu0
    %v3747 = vpop.trf.xlu0
    %v3748 = vpop.trf.xlu0
    %v3749 = vpop.trf.xlu0
    %v3750 = vpop.trf.xlu0
    %v3751 = vpop.trf.xlu0
    %v3752 = vpop.trf.xlu0
    %v3753 = vpop.trf.xlu0
    %v3754 = vpop.trf.xlu0
    %v3755 = vpop.trf.xlu0
    %3756 = vxpose.xlu0.b32.start [1/16] %v3588, 128
    %3757 = vxpose.xlu0.b32.cont [2/16] %v3593, 128
    %3758 = vxpose.xlu0.b32.cont [3/16] 0.0, 128
    %3759 = vxpose.xlu0.b32.cont [4/16] 0.0, 128
    %3760 = vxpose.xlu0.b32.cont [5/16] 0.0, 128
    %3761 = vxpose.xlu0.b32.cont [6/16] 0.0, 128
    %3762 = vxpose.xlu0.b32.cont [7/16] 0.0, 128
    %3763 = vxpose.xlu0.b32.cont [8/16] 0.0, 128
    %3764 = vxpose.xlu0.b32.cont [9/16] 0.0, 128
    %3765 = vxpose.xlu0.b32.cont [10/16] 0.0, 128
    %3766 = vxpose.xlu0.b32.cont [11/16] 0.0, 128
    %3767 = vxpose.xlu0.b32.cont [12/16] 0.0, 128
    %3768 = vxpose.xlu0.b32.cont [13/16] 0.0, 128
    %3769 = vxpose.xlu0.b32.cont [14/16] 0.0, 128
    %3770 = vxpose.xlu0.b32.cont [15/16] 0.0, 128
    %3771 = vxpose.xlu0.b32.end [16/16] 0.0, 128
    %v3772 = vpop.trf.xlu0
    %v3773 = vpop.trf.xlu0
    %v3774 = vpop.trf.xlu0
    %v3775 = vpop.trf.xlu0
    %v3776 = vpop.trf.xlu0
    %v3777 = vpop.trf.xlu0
    %v3778 = vpop.trf.xlu0
    %v3779 = vpop.trf.xlu0
    %v3780 = vpop.trf.xlu0
    %v3781 = vpop.trf.xlu0
    %v3782 = vpop.trf.xlu0
    %v3783 = vpop.trf.xlu0
    %v3784 = vpop.trf.xlu0
    %v3785 = vpop.trf.xlu0
    %v3786 = vpop.trf.xlu0
    %v3787 = vpop.trf.xlu0
    %v3788 = vsub.f32 %v167, %v3612
    %v3789 = vsub.f32 %v168, %v3613
    %v3790 = vsub.f32 %v169, %v3644
    %v3791 = vsub.f32 %v170, %v3645
    %v3792 = vsub.f32 %v171, %v3676
    %v3793 = vsub.f32 %v172, %v3677
    %v3794 = vsub.f32 %v173, %v3708
    %v3795 = vsub.f32 %v174, %v3709
    %v3796 = vsub.f32 %v175, %v3740
    %v3797 = vsub.f32 %v176, %v3741
    %v3798 = vsub.f32 %v177, %v3772
    %v3799 = vsub.f32 %v178, %v3773
    %v3800 = vand.u32 2147483647, %v3788
    %v3801 = vand.u32 2147483647, %v3789
    %v3802 = vand.u32 2147483647, %v3790
    %v3803 = vand.u32 2147483647, %v3791
    %v3804 = vand.u32 2147483647, %v3792
    %v3805 = vand.u32 2147483647, %v3793
    %v3806 = vand.u32 2147483647, %v3794
    %v3807 = vand.u32 2147483647, %v3795
    %v3808 = vand.u32 2147483647, %v3796
    %v3809 = vand.u32 2147483647, %v3797
    %v3810 = vand.u32 2147483647, %v3798
    %v3811 = vand.u32 2147483647, %v3799
    %v3812 = vsel %vm287, %v3800, 0.0
    %3813 = vadd.xlane.f32.xlu0 %v3812
    %v3814 = vpop.xlane.xlu0 %3813
    %v3815 = vsel %vm287, %v3801, 0.0
    %3816 = vadd.xlane.f32.xlu0 %v3815
    %v3817 = vpop.xlane.xlu0 %3816
    %v3818 = vsel %vm287, %v3802, 0.0
    %3819 = vadd.xlane.f32.xlu0 %v3818
    %v3820 = vpop.xlane.xlu0 %3819
    %v3821 = vsel %vm287, %v3803, 0.0
    %3822 = vadd.xlane.f32.xlu0 %v3821
    %v3823 = vpop.xlane.xlu0 %3822
    %v3824 = vsel %vm287, %v3804, 0.0
    %3825 = vadd.xlane.f32.xlu0 %v3824
    %v3826 = vpop.xlane.xlu0 %3825
    %v3827 = vsel %vm287, %v3805, 0.0
    %3828 = vadd.xlane.f32.xlu0 %v3827
    %v3829 = vpop.xlane.xlu0 %3828
    %v3830 = vsel %vm287, %v3806, 0.0
    %3831 = vadd.xlane.f32.xlu0 %v3830
    %v3832 = vpop.xlane.xlu0 %3831
    %v3833 = vsel %vm287, %v3807, 0.0
    %3834 = vadd.xlane.f32.xlu0 %v3833
    %v3835 = vpop.xlane.xlu0 %3834
    %v3836 = vsel %vm287, %v3808, 0.0
    %3837 = vadd.xlane.f32.xlu0 %v3836
    %v3838 = vpop.xlane.xlu0 %3837
    %v3839 = vsel %vm287, %v3809, 0.0
    %3840 = vadd.xlane.f32.xlu0 %v3839
    %v3841 = vpop.xlane.xlu0 %3840
    %v3842 = vsel %vm287, %v3810, 0.0
    %3843 = vadd.xlane.f32.xlu0 %v3842
    %v3844 = vpop.xlane.xlu0 %3843
    %v3845 = vsel %vm287, %v3811, 0.0
    %3846 = vadd.xlane.f32.xlu0 %v3845
    %v3847 = vpop.xlane.xlu0 %3846
    %v3848 = vadd.f32 %v3814, %v3817
    %v3849 = vadd.f32 %v3848, %v3820
    %v3850 = vadd.f32 %v3849, %v3823
    %v3851 = vadd.f32 %v3850, %v3826
    %v3852 = vadd.f32 %v3851, %v3829
    %v3853 = vadd.f32 %v3852, %v3832
    %v3854 = vadd.f32 %v3853, %v3835
    %v3855 = vadd.f32 %v3854, %v3838
    %v3856 = vadd.f32 %v3855, %v3841
    %v3857 = vadd.f32 %v3856, %v3844
    %v3858 = vadd.f32 %v3857, %v3847
    %v3859 = vrot.slane %v3858, 4
    %v3860 = vadd.f32 %v3858, %v3859
    %v3861 = vrot.slane %v3860, 2
    %v3862 = vadd.f32 %v3860, %v3861
    %v3863 = vrot.slane %v3862, 1
    %v3864 = vadd.f32 %v3862, %v3863
    %3865 = vst [vmem:[#allocation16] sm:$0xff] %v340
    %3866 = vst [vmem:[#allocation17] sm:$0xff] %v3113
    %3867 = vst [vmem:[#allocation19] sm:$0xff] %v3864
    // Predicated region
    $region66: #{tpu_custom_call.1} parent=1 // pred_check
      _
    $region67: #{tpu_custom_call.1} parent=1 // pred_check_branch
      %3869 = sbr.rel (0) target = $region69
    $region68: #{tpu_custom_call.1} parent=1 // pred_region
      %s3871 = ssub.s32 128, 128
      %3872 = vsyncadd [#allocation4], %s3871
      %s3874 = sshll.u32 [#allocation16], 4
      %s3875 = int_to_ptr.vmem [resolvable:$true] %s3874
      %3877 = dma.vmem_to_hbm [thread:$0]  %s3875, 128, %s8, [#allocation4]
    $region69: #{tpu_custom_call.1} parent=1 // pred_fallthru
      _
    // Predicated region
    $region70: #{tpu_custom_call.1} parent=1 // pred_check
      _
    $region71: #{tpu_custom_call.1} parent=1 // pred_check_branch
      %3879 = sbr.rel (0) target = $region73
    $region72: #{tpu_custom_call.1} parent=1 // pred_region
      %s3881 = ssub.s32 128, 128
      %3882 = vsyncadd [#allocation18], %s3881
      %s3884 = sshll.u32 [#allocation17], 4
      %s3885 = int_to_ptr.vmem [resolvable:$true] %s3884
      %3887 = dma.vmem_to_hbm [thread:$0]  %s3885, 128, %s9, [#allocation18]
    $region73: #{tpu_custom_call.1} parent=1 // pred_fallthru
      _
    // Predicated region
    $region74: #{tpu_custom_call.1} parent=1 // pred_check
      _
    $region75: #{tpu_custom_call.1} parent=1 // pred_check_branch
      %3889 = sbr.rel (0) target = $region77
    $region76: #{tpu_custom_call.1} parent=1 // pred_region
      %s3891 = ssub.s32 128, 128
      %3892 = vsyncadd [#allocation18], %s3891
      %s3894 = sshll.u32 [#allocation19], 4
      %s3895 = int_to_ptr.vmem [resolvable:$true] %s3894
      %3897 = dma.vmem_to_hbm [thread:$0]  %s3895, 128, %s10, [#allocation18]
    $region77: #{tpu_custom_call.1} parent=1 // pred_fallthru
      _
    // Predicated region
    $region78: #{tpu_custom_call.1} parent=1 // pred_check
      _
    $region79: #{tpu_custom_call.1} parent=1 // pred_check_branch
      %3899 = sbr.rel (0) target = $region81
    $region80: #{tpu_custom_call.1} parent=1 // pred_region
      %3900 = dma.done [#allocation4], 128
    $region81: #{tpu_custom_call.1} parent=1 // pred_fallthru
      _
    // Predicated region
    $region82: #{tpu_custom_call.1} parent=1 // pred_check
      _
    $region83: #{tpu_custom_call.1} parent=1 // pred_check_branch
      %3902 = sbr.rel (0) target = $region85
    $region84: #{tpu_custom_call.1} parent=1 // pred_region
      %3903 = dma.done [#allocation18], 128
    $region85: #{tpu_custom_call.1} parent=1 // pred_fallthru
      _
    // Predicated region
    $region86: #{tpu_custom_call.1} parent=1 // pred_check
      _
    $region87: #{tpu_custom_call.1} parent=1 // pred_check_branch
      %3905 = sbr.rel (0) target = $region89
    $region88: #{tpu_custom_call.1} parent=1 // pred_region
      %3906 = dma.done [#allocation18], 128
    $region89: #{tpu_custom_call.1} parent=1 // pred_fallthru
      _
    %3907 = vsyncpa [#allocation3], 1
    %3908 = vsyncpa [#allocation6], 1
    %3909 = vsyncpa [#allocation9], 1
    %3910 = vsyncpa [#allocation12], 1
    %3911 = vsyncpa [#allocation15], 1
    %3912 = vsyncpa [#allocation4], 1
    %3913 = vsyncpa [#allocation18], 1

</llo_original>
